<compile_context>
chip_gen: v7x
topology: tpu7x:2x2x1
jax: 0.10.0
libtpu: 0.0.40
codegen_flags: <defaults>
</compile_context>

<pallas_src>
import jax
import jax.numpy as jnp
import numpy as np
from jax.experimental import pallas as pl
from jax.experimental.pallas import tpu as pltpu

PAD = 8   # sublane-tile-aligned row offset of the conv interior in the scratch


def _residual_group_kernel(x_ref, cw_ref, cb_ref, caw1_ref, cab1_ref,
                           caw2_ref, cab2_ref, o_ref, pad_ref):
    # x_ref, o_ref : (H, W*C)              lane-dense slab, one image per step
    # cw_ref       : (n_conv, 3*W*C, W*C)  K-stacked block-banded 3x3 weights
    # cb_ref       : (n_conv, 1, W*C)      channel-tiled conv biases
    # caw1_ref     : (nb, W*C, R)          mean-pool matrix @ 1x1-down (R-padded)
    # cab1_ref     : (nb, 1, R)
    # caw2_ref     : (nb, R, W*C)          1x1-up @ channel-spread matrix
    # cab2_ref     : (nb, 1, W*C)
    # pad_ref      : (2*PAD + H, W*C)      y-padded VMEM scratch
    H, WC = o_ref.shape
    nb = caw1_ref.shape[0]
    n_conv = cw_ref.shape[0]

    # Re-zero the y-halo every grid step with aligned (PAD, WC) tile stores so
    # the kernel is correct when the batch axis is sharded across TensorCores.
    ztile = jnp.zeros((PAD, WC), jnp.float32)
    pad_ref[pl.ds(0, PAD), :] = ztile            # covers halo row PAD-1
    pad_ref[pl.ds(PAD + H, PAD), :] = ztile      # covers halo row PAD+H

    def conv3x3(h2d, idx):
        # Interior store: lane offset 0, sublane offset PAD -> fully aligned.
        pad_ref[pl.ds(PAD, H), :] = h2d
        # Fused-K LHS: the 3 dy row-windows side by side (128-aligned lanes),
        # one MXU matmul per conv instead of three.
        lhs = jnp.concatenate(
            [pad_ref[pl.ds(PAD - 1 + dy, H), :] for dy in range(3)], axis=1)
        return jnp.dot(lhs, cw_ref[idx],
                       preferred_element_type=jnp.float32) + cb_ref[idx]

    x2d = x_ref[...].astype(jnp.float32)                  # (H, W*C)

    h = x2d
    for b in range(nb):                                   # RCAB blocks
        t = jnp.maximum(conv3x3(h, 2 * b), 0.0)           # conv1 + ReLU
        t = conv3x3(t, 2 * b + 1)                         # conv2
        # Channel attention (mean-pool / channel-spread folded into weights).
        pooled = jnp.sum(t, axis=0, keepdims=True)        # (1, W*C)
        z = jnp.maximum(
            jnp.dot(pooled, caw1_ref[b],
                    preferred_element_type=jnp.float32) + cab1_ref[b], 0.0)
        s = jax.nn.sigmoid(
            jnp.dot(z, caw2_ref[b],
                    preferred_element_type=jnp.float32) + cab2_ref[b])
        h = h + t * s                                     # RCAB residual
    tail = conv3x3(h, n_conv - 1)                         # trailing conv
    o_ref[...] = (x2d + tail).astype(o_ref.dtype)         # group residual


def _prep_params(params, H, W, r_lanes=128):
    """Host-side weight preprocessing into the lane-dense K-stacked form."""
    conv_w, conv_b, d1w, d1b, d2w, d2b = [np.asarray(p, np.float32) for p in params]
    n_conv = conv_w.shape[0]
    C = conv_w.shape[3]
    WC = W * C

    # K-stacked block-banded conv weights (x-padding columns dropped — the
    # zero padding contributes nothing, so the interior can live at lane 0):
    #   cw[i, dy*WC + xin*C + ci, x*C + co] = w[i, dy, xin - x + 1, ci, co]
    cw = np.zeros((n_conv, 3, WC, WC), np.float32)
    for i in range(n_conv):
        for dy in range(3):
            for x in range(W):
                for dx in range(3):
                    xin = x + dx - 1
                    if 0 <= xin < W:
                        cw[i, dy, xin * C:(xin + 1) * C, x * C:(x + 1) * C] = \
                            conv_w[i, dy, dx]
    cw = cw.reshape(n_conv, 3 * WC, WC)
    cb = np.tile(conv_b.reshape(n_conv, 1, C), (1, 1, W))              # (n_conv,1,WC)

    # Channel attention: fold mean-pool and channel-spread matrices into the
    # 1x1 convs; pad the reduced width C//r up to r_lanes so the tiny dots
    # produce full-lane-width (unmasked) outputs.
    nb, _, cr = d1w.shape
    pool = np.tile(np.eye(C, dtype=np.float32), (W, 1)) / float(H * W)  # (WC, C)
    spread = np.tile(np.eye(C, dtype=np.float32), (1, W))               # (C, WC)
    R = max(r_lanes, cr)
    caw1 = np.zeros((nb, WC, R), np.float32)
    caw1[:, :, :cr] = np.einsum('kc,bcr->bkr', pool, d1w)
    cab1 = np.zeros((nb, 1, R), np.float32)
    cab1[:, :, :cr] = d1b
    caw2 = np.zeros((nb, R, WC), np.float32)
    caw2[:, :cr, :] = np.einsum('brc,ck->brk', d2w, spread)
    cab2 = np.einsum('boc,ck->bok', d2b, spread)                        # (nb,1,WC)
    return tuple(jnp.asarray(a) for a in (cw, cb, caw1, cab1, caw2, cab2))


def _residual_group_2d(x2d, kp, *, N, H, W, C):
    cw, cb, caw1, cab1, caw2, cab2 = kp
    WC = W * C
    assert H % 8 == 0 and WC % 128 == 0, "toy kernel assumes (8,128)-tiled slabs"

    def const_spec(a):
        # Constant block index -> weights stay resident, never re-fetched.
        # (Could additionally use pipeline_mode=pl.Buffered(1) to drop the
        #  second weight buffer when scaling toward v7x's 64 MiB VMEM.)
        nd = a.ndim
        return pl.BlockSpec(a.shape, lambda i, _nd=nd: (0,) * _nd)

    return pl.pallas_call(
        _residual_group_kernel,
        out_shape=jax.ShapeDtypeStruct((N * H, WC), x2d.dtype),
        grid_spec=pltpu.PrefetchScalarGridSpec(
            num_scalar_prefetch=0,
            grid=(N,),                                  # one image per step
            in_specs=[pl.BlockSpec((H, WC), lambda i: (i, 0)),
                      const_spec(cw), const_spec(cb),
                      const_spec(caw1), const_spec(cab1),
                      const_spec(caw2), const_spec(cab2)],
            out_specs=pl.BlockSpec((H, WC), lambda i: (i, 0)),
            scratch_shapes=[pltpu.VMEM((2 * PAD + H, WC), jnp.float32)],
        ),
        compiler_params=pltpu.CompilerParams(
            # Images are independent -> v7x runs them on its two TensorCores;
            # on v5e/v6e the grid is a cheap 2-step loop with resident weights.
            dimension_semantics=("parallel",),
            vmem_limit_bytes=32 * 1024 * 1024),
    )(x2d, cw, cb, caw1, cab1, caw2, cab2)


def residual_group_nchw(x_nchw, params):
    """Public wrapper: NCHW in / NCHW out (matches the PyTorch module)."""
    N, C, H, W = x_nchw.shape
    kp = _prep_params(params, H, W)
    x2d = jnp.transpose(x_nchw, (0, 2, 3, 1)).reshape(N * H, W * C)
    out2d = _residual_group_2d(x2d, kp, N=N, H=H, W=W, C=C)
    return jnp.transpose(out2d.reshape(N, H, W, C), (0, 3, 1, 2))


def residual_group_ref_nhwc(x, params):
    """Pure-JAX reference for validation."""
    conv_w, conv_b, d1w, d1b, d2w, d2b = params
    nb = d1w.shape[0]
    dn = ('NHWC', 'HWIO', 'NHWC')

    def conv(h, i):
        return (jax.lax.conv_general_dilated(h, conv_w[i], (1, 1), 'SAME',
                                             dimension_numbers=dn)
                + conv_b[i].reshape(1, 1, 1, -1))

    h = x
    for b in range(nb):
        t = jnp.maximum(conv(h, 2 * b), 0.0)
        t = conv(t, 2 * b + 1)
        y = jnp.mean(t, axis=(1, 2), keepdims=True)
        z = jnp.maximum(jnp.einsum('nijc,cr->nijr', y, d1w[b])
                        + d1b[b].reshape(1, 1, 1, -1), 0.0)
        s = jax.nn.sigmoid(jnp.einsum('nijr,rc->nijc', z, d2w[b])
                           + d2b[b].reshape(1, 1, 1, -1))
        h = h + t * s
    t = conv(h, 2 * nb)
    return x + t


def make_params(key, n_feat, reduction, n_resblocks):
    cr = n_feat // reduction
    n_conv = 2 * n_resblocks + 1
    ks = jax.random.split(key, 6)
    s = 0.1
    conv_w = s * jax.random.normal(ks[0], (n_conv, 3, 3, n_feat, n_feat), jnp.float32)
    conv_b = s * jax.random.normal(ks[1], (n_conv, 1, n_feat), jnp.float32)
    d1w = s * jax.random.normal(ks[2], (n_resblocks, n_feat, cr), jnp.float32)
    d1b = s * jax.random.normal(ks[3], (n_resblocks, 1, cr), jnp.float32)
    d2w = s * jax.random.normal(ks[4], (n_resblocks, cr, n_feat), jnp.float32)
    d2b = s * jax.random.normal(ks[5], (n_resblocks, 1, n_feat), jnp.float32)
    return conv_w, conv_b, d1w, d1b, d2w, d2b


if __name__ == "__main__":
    # ResidualGroup(default_conv, n_feat=16, kernel_size=3, reduction=4,
    #               act=ReLU(True), n_resblocks=2) on a (2, 16, 16, 16) NCHW input.
    N, C, H, W = 2, 16, 16, 16
    reduction, n_resblocks = 4, 2

    key = jax.random.PRNGKey(0)
    k_x, k_p = jax.random.split(key)
    x_nchw = jax.random.normal(k_x, (N, C, H, W), jnp.float32)
    params = make_params(k_p, C, reduction, n_resblocks)

    out = residual_group_nchw(x_nchw, params)
    out = jax.block_until_ready(out)

    x_nhwc = jnp.transpose(x_nchw, (0, 2, 3, 1))
    ref = jnp.transpose(residual_group_ref_nhwc(x_nhwc, params), (0, 3, 1, 2))
    assert out.shape == (N, C, H, W)
    err = float(jnp.max(jnp.abs(out - ref)))
    assert err < 1e-4, f"mismatch vs reference: {err}"
    print("KERNEL_OK")
</pallas_src>

<mosaic_0001>
module attributes {stable_mosaic.version = 11 : i64} {
  func.func @_residual_group_kernel(%arg0: i32, %arg1: memref<16x256xf32, #tpu.memory_space<vmem>>, %arg2: memref<5x768x256xf32, #tpu.memory_space<vmem>>, %arg3: memref<5x1x256xf32, #tpu.memory_space<vmem>>, %arg4: memref<2x256x128xf32, #tpu.memory_space<vmem>>, %arg5: memref<2x1x128xf32, #tpu.memory_space<vmem>>, %arg6: memref<2x128x256xf32, #tpu.memory_space<vmem>>, %arg7: memref<2x1x256xf32, #tpu.memory_space<vmem>>, %arg8: memref<16x256xf32, #tpu.memory_space<vmem>>, %arg9: memref<32x256xf32, #tpu.memory_space<vmem>>) attributes {dimension_semantics = [#tpu.dimension_semantics<parallel>], iteration_bounds = array<i64: 2>, scalar_prefetch = 0 : i64, scratch_operands = 1 : i64, tpu.core_type = #tpu.core_type<tc>, window_params = [{transform_indices = @transform_0, window_bounds = array<i64: 16, 256>}, {pipeline_mode = #tpu.pipeline_mode<synchronous>, transform_indices = @transform_1, window_bounds = array<i64: 5, 768, 256>}, {pipeline_mode = #tpu.pipeline_mode<synchronous>, transform_indices = @transform_2, window_bounds = array<i64: 5, 1, 256>}, {pipeline_mode = #tpu.pipeline_mode<synchronous>, transform_indices = @transform_3, window_bounds = array<i64: 2, 256, 128>}, {pipeline_mode = #tpu.pipeline_mode<synchronous>, transform_indices = @transform_4, window_bounds = array<i64: 2, 1, 128>}, {pipeline_mode = #tpu.pipeline_mode<synchronous>, transform_indices = @transform_5, window_bounds = array<i64: 2, 128, 256>}, {pipeline_mode = #tpu.pipeline_mode<synchronous>, transform_indices = @transform_6, window_bounds = array<i64: 2, 1, 256>}, {transform_indices = @transform_7, window_bounds = array<i64: 16, 256>}]} {
    %cst = arith.constant 0.000000e+00 : f32
    %0 = vector.broadcast %cst : f32 to vector<8x256xf32>
    %c0 = arith.constant 0 : index
    %c0_0 = arith.constant 0 : index
    %1 = vector.load %arg9[%c0, %c0_0] : memref<32x256xf32, #tpu.memory_space<vmem>>, vector<8x256xf32>
    tpu.vector_store %arg9[%c0, %c0_0], %0 {strides = array<i32>} : memref<32x256xf32, #tpu.memory_space<vmem>>, vector<8x256xf32>,
    %c24 = arith.constant 24 : index
    %c0_1 = arith.constant 0 : index
    %2 = vector.load %arg9[%c24, %c0_1] : memref<32x256xf32, #tpu.memory_space<vmem>>, vector<8x256xf32>
    tpu.vector_store %arg9[%c24, %c0_1], %0 {strides = array<i32>} : memref<32x256xf32, #tpu.memory_space<vmem>>, vector<8x256xf32>,
    %c0_2 = arith.constant 0 : index
    %c0_3 = arith.constant 0 : index
    %3 = vector.load %arg1[%c0_2, %c0_3] : memref<16x256xf32, #tpu.memory_space<vmem>>, vector<16x256xf32>
    %c8 = arith.constant 8 : index
    %c0_4 = arith.constant 0 : index
    %4 = vector.load %arg9[%c8, %c0_4] : memref<32x256xf32, #tpu.memory_space<vmem>>, vector<16x256xf32>
    tpu.vector_store %arg9[%c8, %c0_4], %3 {strides = array<i32>} : memref<32x256xf32, #tpu.memory_space<vmem>>, vector<16x256xf32>,
    %c7 = arith.constant 7 : index
    %c0_5 = arith.constant 0 : index
    %5 = vector.load %arg9[%c7, %c0_5] : memref<32x256xf32, #tpu.memory_space<vmem>>, vector<16x256xf32>
    %c8_6 = arith.constant 8 : index
    %c0_7 = arith.constant 0 : index
    %6 = vector.load %arg9[%c8_6, %c0_7] : memref<32x256xf32, #tpu.memory_space<vmem>>, vector<16x256xf32>
    %c9 = arith.constant 9 : index
    %c0_8 = arith.constant 0 : index
    %7 = vector.load %arg9[%c9, %c0_8] : memref<32x256xf32, #tpu.memory_space<vmem>>, vector<16x256xf32>
    %8 = tpu.concatenate %5, %6, %7 in 1 : vector<16x256xf32>, vector<16x256xf32>, vector<16x256xf32> -> vector<16x768xf32>
    %c0_9 = arith.constant 0 : index
    %c0_10 = arith.constant 0 : index
    %c0_11 = arith.constant 0 : index
    %9 = vector.load %arg2[%c0_9, %c0_10, %c0_11] : memref<5x768x256xf32, #tpu.memory_space<vmem>>, vector<1x768x256xf32>
    %10 = vector.shape_cast %9 : vector<1x768x256xf32> to vector<768x256xf32>
    %cst_12 = arith.constant dense<0.000000e+00> : vector<16x256xf32>
    %11 = tpu.matmul %8, %10, %cst_12 {dimension_numbers = #tpu.dot_dimension_numbers<[1], [0], [0], [1], [0, 0, 1, 1], [], []>} : vector<16x768xf32>, vector<768x256xf32>, vector<16x256xf32> -> vector<16x256xf32>
    %c0_13 = arith.constant 0 : index
    %c0_14 = arith.constant 0 : index
    %c0_15 = arith.constant 0 : index
    %12 = vector.load %arg3[%c0_13, %c0_14, %c0_15] : memref<5x1x256xf32, #tpu.memory_space<vmem>>, vector<1x1x256xf32>
    %13 = vector.shape_cast %12 : vector<1x1x256xf32> to vector<1x256xf32>
    %14 = vector.broadcast %13 : vector<1x256xf32> to vector<16x256xf32>
    %15 = arith.addf %11, %14 : vector<16x256xf32>
    %cst_16 = arith.constant 0.000000e+00 : f32
    %16 = vector.broadcast %cst_16 : f32 to vector<16x256xf32>
    %17 = arith.maximumf %15, %16 : vector<16x256xf32>
    %c8_17 = arith.constant 8 : index
    %c0_18 = arith.constant 0 : index
    %18 = vector.load %arg9[%c8_17, %c0_18] : memref<32x256xf32, #tpu.memory_space<vmem>>, vector<16x256xf32>
    tpu.vector_store %arg9[%c8_17, %c0_18], %17 {strides = array<i32>} : memref<32x256xf32, #tpu.memory_space<vmem>>, vector<16x256xf32>,
    %c7_19 = arith.constant 7 : index
    %c0_20 = arith.constant 0 : index
    %19 = vector.load %arg9[%c7_19, %c0_20] : memref<32x256xf32, #tpu.memory_space<vmem>>, vector<16x256xf32>
    %c8_21 = arith.constant 8 : index
    %c0_22 = arith.constant 0 : index
    %20 = vector.load %arg9[%c8_21, %c0_22] : memref<32x256xf32, #tpu.memory_space<vmem>>, vector<16x256xf32>
    %c9_23 = arith.constant 9 : index
    %c0_24 = arith.constant 0 : index
    %21 = vector.load %arg9[%c9_23, %c0_24] : memref<32x256xf32, #tpu.memory_space<vmem>>, vector<16x256xf32>
    %22 = tpu.concatenate %19, %20, %21 in 1 : vector<16x256xf32>, vector<16x256xf32>, vector<16x256xf32> -> vector<16x768xf32>
    %c1 = arith.constant 1 : index
    %c0_25 = arith.constant 0 : index
    %c0_26 = arith.constant 0 : index
    %23 = vector.load %arg2[%c1, %c0_25, %c0_26] : memref<5x768x256xf32, #tpu.memory_space<vmem>>, vector<1x768x256xf32>
    %24 = vector.shape_cast %23 : vector<1x768x256xf32> to vector<768x256xf32>
    %cst_27 = arith.constant dense<0.000000e+00> : vector<16x256xf32>
    %25 = tpu.matmul %22, %24, %cst_27 {dimension_numbers = #tpu.dot_dimension_numbers<[1], [0], [0], [1], [0, 0, 1, 1], [], []>} : vector<16x768xf32>, vector<768x256xf32>, vector<16x256xf32> -> vector<16x256xf32>
    %c1_28 = arith.constant 1 : index
    %c0_29 = arith.constant 0 : index
    %c0_30 = arith.constant 0 : index
    %26 = vector.load %arg3[%c1_28, %c0_29, %c0_30] : memref<5x1x256xf32, #tpu.memory_space<vmem>>, vector<1x1x256xf32>
    %27 = vector.shape_cast %26 : vector<1x1x256xf32> to vector<1x256xf32>
    %28 = vector.broadcast %27 : vector<1x256xf32> to vector<16x256xf32>
    %29 = arith.addf %25, %28 : vector<16x256xf32>
    %cst_31 = arith.constant dense<0.000000e+00> : vector<256xf32>
    %30 = vector.multi_reduction <add>, %29, %cst_31 [0] : vector<16x256xf32> to vector<256xf32>
    %31 = vector.shape_cast %30 : vector<256xf32> to vector<1x256xf32>
    %c0_32 = arith.constant 0 : index
    %c0_33 = arith.constant 0 : index
    %c0_34 = arith.constant 0 : index
    %32 = vector.load %arg4[%c0_32, %c0_33, %c0_34] : memref<2x256x128xf32, #tpu.memory_space<vmem>>, vector<1x256x128xf32>
    %33 = vector.shape_cast %32 : vector<1x256x128xf32> to vector<256x128xf32>
    %cst_35 = arith.constant dense<0.000000e+00> : vector<1x128xf32>
    %34 = tpu.matmul %31, %33, %cst_35 {dimension_numbers = #tpu.dot_dimension_numbers<[1], [0], [0], [1], [0, 0, 1, 1], [], []>} : vector<1x256xf32>, vector<256x128xf32>, vector<1x128xf32> -> vector<1x128xf32>
    %c0_36 = arith.constant 0 : index
    %c0_37 = arith.constant 0 : index
    %c0_38 = arith.constant 0 : index
    %35 = vector.load %arg5[%c0_36, %c0_37, %c0_38] : memref<2x1x128xf32, #tpu.memory_space<vmem>>, vector<1x1x128xf32>
    %36 = vector.shape_cast %35 : vector<1x1x128xf32> to vector<1x128xf32>
    %37 = arith.addf %34, %36 : vector<1x128xf32>
    %cst_39 = arith.constant 0.000000e+00 : f32
    %38 = vector.broadcast %cst_39 : f32 to vector<1x128xf32>
    %39 = arith.maximumf %37, %38 : vector<1x128xf32>
    %c0_40 = arith.constant 0 : index
    %c0_41 = arith.constant 0 : index
    %c0_42 = arith.constant 0 : index
    %40 = vector.load %arg6[%c0_40, %c0_41, %c0_42] : memref<2x128x256xf32, #tpu.memory_space<vmem>>, vector<1x128x256xf32>
    %41 = vector.shape_cast %40 : vector<1x128x256xf32> to vector<128x256xf32>
    %cst_43 = arith.constant dense<0.000000e+00> : vector<1x256xf32>
    %42 = tpu.matmul %39, %41, %cst_43 {dimension_numbers = #tpu.dot_dimension_numbers<[1], [0], [0], [1], [0, 0, 1, 1], [], []>} : vector<1x128xf32>, vector<128x256xf32>, vector<1x256xf32> -> vector<1x256xf32>
    %c0_44 = arith.constant 0 : index
    %c0_45 = arith.constant 0 : index
    %c0_46 = arith.constant 0 : index
    %43 = vector.load %arg7[%c0_44, %c0_45, %c0_46] : memref<2x1x256xf32, #tpu.memory_space<vmem>>, vector<1x1x256xf32>
    %44 = vector.shape_cast %43 : vector<1x1x256xf32> to vector<1x256xf32>
    %45 = arith.addf %42, %44 : vector<1x256xf32>
    %46 = arith.negf %45 : vector<1x256xf32>
    %47 = math.exp %46 : vector<1x256xf32>
    %cst_47 = arith.constant 1.000000e+00 : f32
    %48 = vector.broadcast %cst_47 : f32 to vector<1x256xf32>
    %49 = arith.addf %48, %47 : vector<1x256xf32>
    %50 = arith.divf %48, %49 : vector<1x256xf32>
    %51 = vector.broadcast %50 : vector<1x256xf32> to vector<16x256xf32>
    %52 = arith.mulf %29, %51 : vector<16x256xf32>
    %53 = arith.addf %3, %52 : vector<16x256xf32>
    %c8_48 = arith.constant 8 : index
    %c0_49 = arith.constant 0 : index
    %54 = vector.load %arg9[%c8_48, %c0_49] : memref<32x256xf32, #tpu.memory_space<vmem>>, vector<16x256xf32>
    tpu.vector_store %arg9[%c8_48, %c0_49], %53 {strides = array<i32>} : memref<32x256xf32, #tpu.memory_space<vmem>>, vector<16x256xf32>,
    %c7_50 = arith.constant 7 : index
    %c0_51 = arith.constant 0 : index
    %55 = vector.load %arg9[%c7_50, %c0_51] : memref<32x256xf32, #tpu.memory_space<vmem>>, vector<16x256xf32>
    %c8_52 = arith.constant 8 : index
    %c0_53 = arith.constant 0 : index
    %56 = vector.load %arg9[%c8_52, %c0_53] : memref<32x256xf32, #tpu.memory_space<vmem>>, vector<16x256xf32>
    %c9_54 = arith.constant 9 : index
    %c0_55 = arith.constant 0 : index
    %57 = vector.load %arg9[%c9_54, %c0_55] : memref<32x256xf32, #tpu.memory_space<vmem>>, vector<16x256xf32>
    %58 = tpu.concatenate %55, %56, %57 in 1 : vector<16x256xf32>, vector<16x256xf32>, vector<16x256xf32> -> vector<16x768xf32>
    %c2 = arith.constant 2 : index
    %c0_56 = arith.constant 0 : index
    %c0_57 = arith.constant 0 : index
    %59 = vector.load %arg2[%c2, %c0_56, %c0_57] : memref<5x768x256xf32, #tpu.memory_space<vmem>>, vector<1x768x256xf32>
    %60 = vector.shape_cast %59 : vector<1x768x256xf32> to vector<768x256xf32>
    %cst_58 = arith.constant dense<0.000000e+00> : vector<16x256xf32>
    %61 = tpu.matmul %58, %60, %cst_58 {dimension_numbers = #tpu.dot_dimension_numbers<[1], [0], [0], [1], [0, 0, 1, 1], [], []>} : vector<16x768xf32>, vector<768x256xf32>, vector<16x256xf32> -> vector<16x256xf32>
    %c2_59 = arith.constant 2 : index
    %c0_60 = arith.constant 0 : index
    %c0_61 = arith.constant 0 : index
    %62 = vector.load %arg3[%c2_59, %c0_60, %c0_61] : memref<5x1x256xf32, #tpu.memory_space<vmem>>, vector<1x1x256xf32>
    %63 = vector.shape_cast %62 : vector<1x1x256xf32> to vector<1x256xf32>
    %64 = vector.broadcast %63 : vector<1x256xf32> to vector<16x256xf32>
    %65 = arith.addf %61, %64 : vector<16x256xf32>
    %cst_62 = arith.constant 0.000000e+00 : f32
    %66 = vector.broadcast %cst_62 : f32 to vector<16x256xf32>
    %67 = arith.maximumf %65, %66 : vector<16x256xf32>
    %c8_63 = arith.constant 8 : index
    %c0_64 = arith.constant 0 : index
    %68 = vector.load %arg9[%c8_63, %c0_64] : memref<32x256xf32, #tpu.memory_space<vmem>>, vector<16x256xf32>
    tpu.vector_store %arg9[%c8_63, %c0_64], %67 {strides = array<i32>} : memref<32x256xf32, #tpu.memory_space<vmem>>, vector<16x256xf32>,
    %c7_65 = arith.constant 7 : index
    %c0_66 = arith.constant 0 : index
    %69 = vector.load %arg9[%c7_65, %c0_66] : memref<32x256xf32, #tpu.memory_space<vmem>>, vector<16x256xf32>
    %c8_67 = arith.constant 8 : index
    %c0_68 = arith.constant 0 : index
    %70 = vector.load %arg9[%c8_67, %c0_68] : memref<32x256xf32, #tpu.memory_space<vmem>>, vector<16x256xf32>
    %c9_69 = arith.constant 9 : index
    %c0_70 = arith.constant 0 : index
    %71 = vector.load %arg9[%c9_69, %c0_70] : memref<32x256xf32, #tpu.memory_space<vmem>>, vector<16x256xf32>
    %72 = tpu.concatenate %69, %70, %71 in 1 : vector<16x256xf32>, vector<16x256xf32>, vector<16x256xf32> -> vector<16x768xf32>
    %c3 = arith.constant 3 : index
    %c0_71 = arith.constant 0 : index
    %c0_72 = arith.constant 0 : index
    %73 = vector.load %arg2[%c3, %c0_71, %c0_72] : memref<5x768x256xf32, #tpu.memory_space<vmem>>, vector<1x768x256xf32>
    %74 = vector.shape_cast %73 : vector<1x768x256xf32> to vector<768x256xf32>
    %cst_73 = arith.constant dense<0.000000e+00> : vector<16x256xf32>
    %75 = tpu.matmul %72, %74, %cst_73 {dimension_numbers = #tpu.dot_dimension_numbers<[1], [0], [0], [1], [0, 0, 1, 1], [], []>} : vector<16x768xf32>, vector<768x256xf32>, vector<16x256xf32> -> vector<16x256xf32>
    %c3_74 = arith.constant 3 : index
    %c0_75 = arith.constant 0 : index
    %c0_76 = arith.constant 0 : index
    %76 = vector.load %arg3[%c3_74, %c0_75, %c0_76] : memref<5x1x256xf32, #tpu.memory_space<vmem>>, vector<1x1x256xf32>
    %77 = vector.shape_cast %76 : vector<1x1x256xf32> to vector<1x256xf32>
    %78 = vector.broadcast %77 : vector<1x256xf32> to vector<16x256xf32>
    %79 = arith.addf %75, %78 : vector<16x256xf32>
    %cst_77 = arith.constant dense<0.000000e+00> : vector<256xf32>
    %80 = vector.multi_reduction <add>, %79, %cst_77 [0] : vector<16x256xf32> to vector<256xf32>
    %81 = vector.shape_cast %80 : vector<256xf32> to vector<1x256xf32>
    %c1_78 = arith.constant 1 : index
    %c0_79 = arith.constant 0 : index
    %c0_80 = arith.constant 0 : index
    %82 = vector.load %arg4[%c1_78, %c0_79, %c0_80] : memref<2x256x128xf32, #tpu.memory_space<vmem>>, vector<1x256x128xf32>
    %83 = vector.shape_cast %82 : vector<1x256x128xf32> to vector<256x128xf32>
    %cst_81 = arith.constant dense<0.000000e+00> : vector<1x128xf32>
    %84 = tpu.matmul %81, %83, %cst_81 {dimension_numbers = #tpu.dot_dimension_numbers<[1], [0], [0], [1], [0, 0, 1, 1], [], []>} : vector<1x256xf32>, vector<256x128xf32>, vector<1x128xf32> -> vector<1x128xf32>
    %c1_82 = arith.constant 1 : index
    %c0_83 = arith.constant 0 : index
    %c0_84 = arith.constant 0 : index
    %85 = vector.load %arg5[%c1_82, %c0_83, %c0_84] : memref<2x1x128xf32, #tpu.memory_space<vmem>>, vector<1x1x128xf32>
    %86 = vector.shape_cast %85 : vector<1x1x128xf32> to vector<1x128xf32>
    %87 = arith.addf %84, %86 : vector<1x128xf32>
    %cst_85 = arith.constant 0.000000e+00 : f32
    %88 = vector.broadcast %cst_85 : f32 to vector<1x128xf32>
    %89 = arith.maximumf %87, %88 : vector<1x128xf32>
    %c1_86 = arith.constant 1 : index
    %c0_87 = arith.constant 0 : index
    %c0_88 = arith.constant 0 : index
    %90 = vector.load %arg6[%c1_86, %c0_87, %c0_88] : memref<2x128x256xf32, #tpu.memory_space<vmem>>, vector<1x128x256xf32>
    %91 = vector.shape_cast %90 : vector<1x128x256xf32> to vector<128x256xf32>
    %cst_89 = arith.constant dense<0.000000e+00> : vector<1x256xf32>
    %92 = tpu.matmul %89, %91, %cst_89 {dimension_numbers = #tpu.dot_dimension_numbers<[1], [0], [0], [1], [0, 0, 1, 1], [], []>} : vector<1x128xf32>, vector<128x256xf32>, vector<1x256xf32> -> vector<1x256xf32>
    %c1_90 = arith.constant 1 : index
    %c0_91 = arith.constant 0 : index
    %c0_92 = arith.constant 0 : index
    %93 = vector.load %arg7[%c1_90, %c0_91, %c0_92] : memref<2x1x256xf32, #tpu.memory_space<vmem>>, vector<1x1x256xf32>
    %94 = vector.shape_cast %93 : vector<1x1x256xf32> to vector<1x256xf32>
    %95 = arith.addf %92, %94 : vector<1x256xf32>
    %96 = arith.negf %95 : vector<1x256xf32>
    %97 = math.exp %96 : vector<1x256xf32>
    %cst_93 = arith.constant 1.000000e+00 : f32
    %98 = vector.broadcast %cst_93 : f32 to vector<1x256xf32>
    %99 = arith.addf %98, %97 : vector<1x256xf32>
    %100 = arith.divf %98, %99 : vector<1x256xf32>
    %101 = vector.broadcast %100 : vector<1x256xf32> to vector<16x256xf32>
    %102 = arith.mulf %79, %101 : vector<16x256xf32>
    %103 = arith.addf %53, %102 : vector<16x256xf32>
    %c8_94 = arith.constant 8 : index
    %c0_95 = arith.constant 0 : index
    %104 = vector.load %arg9[%c8_94, %c0_95] : memref<32x256xf32, #tpu.memory_space<vmem>>, vector<16x256xf32>
    tpu.vector_store %arg9[%c8_94, %c0_95], %103 {strides = array<i32>} : memref<32x256xf32, #tpu.memory_space<vmem>>, vector<16x256xf32>,
    %c7_96 = arith.constant 7 : index
    %c0_97 = arith.constant 0 : index
    %105 = vector.load %arg9[%c7_96, %c0_97] : memref<32x256xf32, #tpu.memory_space<vmem>>, vector<16x256xf32>
    %c8_98 = arith.constant 8 : index
    %c0_99 = arith.constant 0 : index
    %106 = vector.load %arg9[%c8_98, %c0_99] : memref<32x256xf32, #tpu.memory_space<vmem>>, vector<16x256xf32>
    %c9_100 = arith.constant 9 : index
    %c0_101 = arith.constant 0 : index
    %107 = vector.load %arg9[%c9_100, %c0_101] : memref<32x256xf32, #tpu.memory_space<vmem>>, vector<16x256xf32>
    %108 = tpu.concatenate %105, %106, %107 in 1 : vector<16x256xf32>, vector<16x256xf32>, vector<16x256xf32> -> vector<16x768xf32>
    %c4 = arith.constant 4 : index
    %c0_102 = arith.constant 0 : index
    %c0_103 = arith.constant 0 : index
    %109 = vector.load %arg2[%c4, %c0_102, %c0_103] : memref<5x768x256xf32, #tpu.memory_space<vmem>>, vector<1x768x256xf32>
    %110 = vector.shape_cast %109 : vector<1x768x256xf32> to vector<768x256xf32>
    %cst_104 = arith.constant dense<0.000000e+00> : vector<16x256xf32>
    %111 = tpu.matmul %108, %110, %cst_104 {dimension_numbers = #tpu.dot_dimension_numbers<[1], [0], [0], [1], [0, 0, 1, 1], [], []>} : vector<16x768xf32>, vector<768x256xf32>, vector<16x256xf32> -> vector<16x256xf32>
    %c4_105 = arith.constant 4 : index
    %c0_106 = arith.constant 0 : index
    %c0_107 = arith.constant 0 : index
    %112 = vector.load %arg3[%c4_105, %c0_106, %c0_107] : memref<5x1x256xf32, #tpu.memory_space<vmem>>, vector<1x1x256xf32>
    %113 = vector.shape_cast %112 : vector<1x1x256xf32> to vector<1x256xf32>
    %114 = vector.broadcast %113 : vector<1x256xf32> to vector<16x256xf32>
    %115 = arith.addf %111, %114 : vector<16x256xf32>
    %116 = arith.addf %3, %115 : vector<16x256xf32>
    %c0_108 = arith.constant 0 : index
    %c0_109 = arith.constant 0 : index
    %117 = vector.load %arg8[%c0_108, %c0_109] : memref<16x256xf32, #tpu.memory_space<vmem>>, vector<16x256xf32>
    tpu.vector_store %arg8[%c0_108, %c0_109], %116 {strides = array<i32>} : memref<16x256xf32, #tpu.memory_space<vmem>>, vector<16x256xf32>,
    return
  }
  func.func @transform_0(%arg0: i32) -> (i32, i32) {
    %c0_i32 = arith.constant 0 : i32
    %c0_i32_0 = arith.constant 0 : i32
    return %arg0, %c0_i32 : i32, i32
  }
  func.func @transform_1(%arg0: i32) -> (i32, i32, i32) {
    %c0_i32 = arith.constant 0 : i32
    %c0_i32_0 = arith.constant 0 : i32
    %c0_i32_1 = arith.constant 0 : i32
    %c0_i32_2 = arith.constant 0 : i32
    return %c0_i32, %c0_i32_0, %c0_i32_1 : i32, i32, i32
  }
  func.func @transform_2(%arg0: i32) -> (i32, i32, i32) {
    %c0_i32 = arith.constant 0 : i32
    %c0_i32_0 = arith.constant 0 : i32
    %c0_i32_1 = arith.constant 0 : i32
    %c0_i32_2 = arith.constant 0 : i32
    return %c0_i32, %c0_i32_0, %c0_i32_1 : i32, i32, i32
  }
  func.func @transform_3(%arg0: i32) -> (i32, i32, i32) {
    %c0_i32 = arith.constant 0 : i32
    %c0_i32_0 = arith.constant 0 : i32
    %c0_i32_1 = arith.constant 0 : i32
    %c0_i32_2 = arith.constant 0 : i32
    return %c0_i32, %c0_i32_0, %c0_i32_1 : i32, i32, i32
  }
  func.func @transform_4(%arg0: i32) -> (i32, i32, i32) {
    %c0_i32 = arith.constant 0 : i32
    %c0_i32_0 = arith.constant 0 : i32
    %c0_i32_1 = arith.constant 0 : i32
    %c0_i32_2 = arith.constant 0 : i32
    return %c0_i32, %c0_i32_0, %c0_i32_1 : i32, i32, i32
  }
  func.func @transform_5(%arg0: i32) -> (i32, i32, i32) {
    %c0_i32 = arith.constant 0 : i32
    %c0_i32_0 = arith.constant 0 : i32
    %c0_i32_1 = arith.constant 0 : i32
    %c0_i32_2 = arith.constant 0 : i32
    return %c0_i32, %c0_i32_0, %c0_i32_1 : i32, i32, i32
  }
  func.func @transform_6(%arg0: i32) -> (i32, i32, i32) {
    %c0_i32 = arith.constant 0 : i32
    %c0_i32_0 = arith.constant 0 : i32
    %c0_i32_1 = arith.constant 0 : i32
    %c0_i32_2 = arith.constant 0 : i32
    return %c0_i32, %c0_i32_0, %c0_i32_1 : i32, i32, i32
  }
  func.func @transform_7(%arg0: i32) -> (i32, i32) {
    %c0_i32 = arith.constant 0 : i32
    %c0_i32_0 = arith.constant 0 : i32
    return %arg0, %c0_i32 : i32, i32
  }
}

</mosaic_0001>

<llo_original>
// kernel: tpu_custom_call.1
$region0: #{tpu_custom_call.1}
  #allocation0 [shape = 'u32[]', space=smem, size = 0x4, offset = 0x4, fixed_abs, tag = 'smem constant byte address 0x4 - core index']
  #allocation1 [shape = 'u32[144,128]{1,0:T(1,128)}', space=vmem, size = 0x12000, scoped, tag = 'internal scratch']
  #allocation2 [shape = 'f32[32,256]{1,0:T(8,128)}', space=vmem, size = 0x8000, scoped, tag = 'scratch operand']
  %s0 = inlined_call_operand.hbm [shape: f32[32,256], index: 0, kind: input, shape index: {}]
  %s1 = inlined_call_operand.hbm [shape: f32[5,768,256], index: 1, kind: input, shape index: {}]
  %s2 = inlined_call_operand.hbm [shape: f32[5,1,256], index: 2, kind: input, shape index: {}]
  %s3 = inlined_call_operand.hbm [shape: f32[2,256,128], index: 3, kind: input, shape index: {}]
  %s4 = inlined_call_operand.hbm [shape: f32[2,1,128], index: 4, kind: input, shape index: {}]
  %s5 = inlined_call_operand.hbm [shape: f32[2,128,256], index: 5, kind: input, shape index: {}]
  %s6 = inlined_call_operand.hbm [shape: f32[2,1,256], index: 6, kind: input, shape index: {}]
  %s7 = inlined_call_operand.hbm [shape: f32[32,256], index: 7, kind: output, shape index: {}]
  %s8 = sld [smem:[#allocation0]]
  $region89: #{tpu_custom_call.1} parent=0
    _
  %s10 = ssub.s32 1, %s8
  %s11 = scalar_select 0, %s10, %s8
  $region1: #{tpu_custom_call.1} parent=0
    #allocation3 [shape = 'u8[32768]{0}', space=vmem, size = 0x8000, scoped, tag = 'input window, operand 0']
    #allocation4 [shape = 's32[2]{0}', space=sflag, size = 0x8, scoped, tag = 'scoped memory for tpu_custom_call.1']
    #allocation5 [shape = 's32[2]{0}', space=sflag, size = 0x8, scoped, tag = 'scoped memory for tpu_custom_call.1']
    #allocation6 [shape = 'u8[3932160]{0}', space=vmem, size = 0x3c0000, scoped, tag = 'input window, operand 1, single buffered']
    #allocation7 [shape = 's32[1]{0}', space=sflag, size = 0x4, scoped, tag = 'scoped memory for tpu_custom_call.1']
    #allocation8 [shape = 'u8[5120]{0}', space=vmem, size = 0x1400, scoped, tag = 'input window, operand 2, single buffered']
    #allocation9 [shape = 'u8[262144]{0}', space=vmem, size = 0x40000, scoped, tag = 'input window, operand 3, single buffered']
    #allocation10 [shape = 's32[1]{0}', space=sflag, size = 0x4, scoped, tag = 'scoped memory for tpu_custom_call.1']
    #allocation11 [shape = 'u8[1024]{0}', space=vmem, size = 0x400, scoped, tag = 'input window, operand 4, single buffered']
    #allocation12 [shape = 'u8[262144]{0}', space=vmem, size = 0x40000, scoped, tag = 'input window, operand 5, single buffered']
    #allocation13 [shape = 's32[1]{0}', space=sflag, size = 0x4, scoped, tag = 'scoped memory for tpu_custom_call.1']
    #allocation14 [shape = 'u8[2048]{0}', space=vmem, size = 0x800, scoped, tag = 'input window, operand 6, single buffered']
    #allocation15 [shape = 'u8[32768]{0}', space=vmem, size = 0x8000, scoped, tag = 'output window, operand 0']
    %12 = vsyncpa [#allocation4], 0
    %s13 = scalar_lea.sflag [#allocation4], 1
    %14 = vsyncpa %s13, 0
    %15 = vsyncpa [#allocation7], 0
    %16 = vsyncpa [#allocation10], 0
    %17 = vsyncpa [#allocation13], 0
    %18 = vsyncpa [#allocation5], 0
    %s19 = scalar_lea.sflag [#allocation5], 1
    %20 = vsyncpa %s19, 0
    loop: start=0, step=1, limit=4
    $region2: #{tpu_custom_call.1} parent=1 // loop_pre_header
      _
    $region3: #{tpu_custom_call.1} parent=1 // loop_header
      %s22 = sphi 0, %s26
      %p23 = scmp.ge.s32.totalorder %s22, 4
      %s32 = sphi 0, %s34
      %s35 = sphi 0, %s32
      %s36 = sphi 0, %s35
      %s52 = sphi 0, %s36
      %s56 = sphi 0, %s56
      %s58 = sphi 0, %s56
      %s59 = sphi 0, %s58
      %s73 = sphi 0, %s59
      %s77 = sphi 0, %s77
      %s79 = sphi 0, %s77
      %s80 = sphi 0, %s79
      %s94 = sphi 0, %s80
      %s98 = sphi 0, %s98
      %s100 = sphi 0, %s98
      %s101 = sphi 0, %s100
      %s115 = sphi 0, %s101
      %s119 = sphi 0, %s119
      %s121 = sphi 0, %s119
      %s122 = sphi 0, %s121
      %s136 = sphi 0, %s122
      %s140 = sphi 0, %s140
      %s142 = sphi 0, %s140
      %s143 = sphi 0, %s142
      %s157 = sphi 0, %s143
      %s161 = sphi 0, %s161
      %s163 = sphi 0, %s161
      %s164 = sphi 0, %s163
      %s178 = sphi 0, %s164
      %s184 = sphi 0, %s186
      %s187 = sphi 0, %s184
      %s188 = sphi 0, %s187
      %s204 = sphi 0, %s188
    $region4: #{tpu_custom_call.1} parent=1 // loop_header_branch
      %25 = sbr.rel (%p23) target = $region8
    $region5: #{tpu_custom_call.1} parent=1 // loop_body
      %s27 = ssub.s32 %s22, 1
      %s28 = ssub.s32 %s22, 2
      %s29 = sadd.s32 %s22, 1
      %s30 = ssub.s32 %s22, %s29
      %p31 = scmp.eq.s32.totalorder %s30, 0
      %s33 = sadd.s32 %s32, 1
      %s34 = scalar_select %p31, %s32, %s33
      %p37 = pneg %p31
      %p38 = scmp.eq.s32.totalorder %s22, 1
      %p39 = por %p37, %p38
      %p40 = scmp.ne.s32.totalorder %s32, %s35
      %p41 = scmp.eq.s32.totalorder %s22, 0
      %p42 = por %p40, %p41
      %p43 = scmp.ne.s32.totalorder %s32, %s35
      %p44 = scmp.eq.s32.totalorder %s27, 1
      %p45 = por %p43, %p44
      %p46 = scmp.ne.s32.totalorder %s35, %s36
      %p47 = scmp.eq.s32.totalorder %s27, 0
      %p48 = por %p46, %p47
      %p49 = scmp.ne.s32.totalorder %s35, %s36
      %p50 = scmp.eq.s32.totalorder %s28, 1
      %p51 = por %p49, %p50
      %p53 = scmp.ne.s32.totalorder %s36, %s52
      %p54 = scmp.eq.s32.totalorder %s28, 0
      %p55 = por %p53, %p54
      %s57 = sadd.s32 %s56, 1
      %p60 = scmp.eq.s32.totalorder %s22, 1
      %p61 = scmp.ne.s32.totalorder %s56, %s58
      %p62 = scmp.eq.s32.totalorder %s22, 0
      %p63 = por %p61, %p62
      %p64 = scmp.ne.s32.totalorder %s56, %s58
      %p65 = scmp.eq.s32.totalorder %s27, 1
      %p66 = por %p64, %p65
      %p67 = scmp.ne.s32.totalorder %s58, %s59
      %p68 = scmp.eq.s32.totalorder %s27, 0
      %p69 = por %p67, %p68
      %p70 = scmp.ne.s32.totalorder %s58, %s59
      %p71 = scmp.eq.s32.totalorder %s28, 1
      %p72 = por %p70, %p71
      %p74 = scmp.ne.s32.totalorder %s59, %s73
      %p75 = scmp.eq.s32.totalorder %s28, 0
      %p76 = por %p74, %p75
      %s78 = sadd.s32 %s77, 1
      %p81 = scmp.eq.s32.totalorder %s22, 1
      %p82 = scmp.ne.s32.totalorder %s77, %s79
      %p83 = scmp.eq.s32.totalorder %s22, 0
      %p84 = por %p82, %p83
      %p85 = scmp.ne.s32.totalorder %s77, %s79
      %p86 = scmp.eq.s32.totalorder %s27, 1
      %p87 = por %p85, %p86
      %p88 = scmp.ne.s32.totalorder %s79, %s80
      %p89 = scmp.eq.s32.totalorder %s27, 0
      %p90 = por %p88, %p89
      %p91 = scmp.ne.s32.totalorder %s79, %s80
      %p92 = scmp.eq.s32.totalorder %s28, 1
      %p93 = por %p91, %p92
      %p95 = scmp.ne.s32.totalorder %s80, %s94
      %p96 = scmp.eq.s32.totalorder %s28, 0
      %p97 = por %p95, %p96
      %s99 = sadd.s32 %s98, 1
      %p102 = scmp.eq.s32.totalorder %s22, 1
      %p103 = scmp.ne.s32.totalorder %s98, %s100
      %p104 = scmp.eq.s32.totalorder %s22, 0
      %p105 = por %p103, %p104
      %p106 = scmp.ne.s32.totalorder %s98, %s100
      %p107 = scmp.eq.s32.totalorder %s27, 1
      %p108 = por %p106, %p107
      %p109 = scmp.ne.s32.totalorder %s100, %s101
      %p110 = scmp.eq.s32.totalorder %s27, 0
      %p111 = por %p109, %p110
      %p112 = scmp.ne.s32.totalorder %s100, %s101
      %p113 = scmp.eq.s32.totalorder %s28, 1
      %p114 = por %p112, %p113
      %p116 = scmp.ne.s32.totalorder %s101, %s115
      %p117 = scmp.eq.s32.totalorder %s28, 0
      %p118 = por %p116, %p117
      %s120 = sadd.s32 %s119, 1
      %p123 = scmp.eq.s32.totalorder %s22, 1
      %p124 = scmp.ne.s32.totalorder %s119, %s121
      %p125 = scmp.eq.s32.totalorder %s22, 0
      %p126 = por %p124, %p125
      %p127 = scmp.ne.s32.totalorder %s119, %s121
      %p128 = scmp.eq.s32.totalorder %s27, 1
      %p129 = por %p127, %p128
      %p130 = scmp.ne.s32.totalorder %s121, %s122
      %p131 = scmp.eq.s32.totalorder %s27, 0
      %p132 = por %p130, %p131
      %p133 = scmp.ne.s32.totalorder %s121, %s122
      %p134 = scmp.eq.s32.totalorder %s28, 1
      %p135 = por %p133, %p134
      %p137 = scmp.ne.s32.totalorder %s122, %s136
      %p138 = scmp.eq.s32.totalorder %s28, 0
      %p139 = por %p137, %p138
      %s141 = sadd.s32 %s140, 1
      %p144 = scmp.eq.s32.totalorder %s22, 1
      %p145 = scmp.ne.s32.totalorder %s140, %s142
      %p146 = scmp.eq.s32.totalorder %s22, 0
      %p147 = por %p145, %p146
      %p148 = scmp.ne.s32.totalorder %s140, %s142
      %p149 = scmp.eq.s32.totalorder %s27, 1
      %p150 = por %p148, %p149
      %p151 = scmp.ne.s32.totalorder %s142, %s143
      %p152 = scmp.eq.s32.totalorder %s27, 0
      %p153 = por %p151, %p152
      %p154 = scmp.ne.s32.totalorder %s142, %s143
      %p155 = scmp.eq.s32.totalorder %s28, 1
      %p156 = por %p154, %p155
      %p158 = scmp.ne.s32.totalorder %s143, %s157
      %p159 = scmp.eq.s32.totalorder %s28, 0
      %p160 = por %p158, %p159
      %s162 = sadd.s32 %s161, 1
      %p165 = scmp.eq.s32.totalorder %s22, 1
      %p166 = scmp.ne.s32.totalorder %s161, %s163
      %p167 = scmp.eq.s32.totalorder %s22, 0
      %p168 = por %p166, %p167
      %p169 = scmp.ne.s32.totalorder %s161, %s163
      %p170 = scmp.eq.s32.totalorder %s27, 1
      %p171 = por %p169, %p170
      %p172 = scmp.ne.s32.totalorder %s163, %s164
      %p173 = scmp.eq.s32.totalorder %s27, 0
      %p174 = por %p172, %p173
      %p175 = scmp.ne.s32.totalorder %s163, %s164
      %p176 = scmp.eq.s32.totalorder %s28, 1
      %p177 = por %p175, %p176
      %p179 = scmp.ne.s32.totalorder %s164, %s178
      %p180 = scmp.eq.s32.totalorder %s28, 0
      %p181 = por %p179, %p180
      %s182 = ssub.s32 %s22, %s29
      %p183 = scmp.eq.s32.totalorder %s182, 0
      %s185 = sadd.s32 %s184, 1
      %s186 = scalar_select %p183, %s184, %s185
      %p189 = pneg %p183
      %p190 = scmp.eq.s32.totalorder %s22, 1
      %p191 = por %p189, %p190
      %p192 = scmp.ne.s32.totalorder %s184, %s187
      %p193 = scmp.eq.s32.totalorder %s22, 0
      %p194 = por %p192, %p193
      %p195 = scmp.ne.s32.totalorder %s184, %s187
      %p196 = scmp.eq.s32.totalorder %s27, 1
      %p197 = por %p195, %p196
      %p198 = scmp.ne.s32.totalorder %s187, %s188
      %p199 = scmp.eq.s32.totalorder %s27, 0
      %p200 = por %p198, %p199
      %p201 = scmp.ne.s32.totalorder %s187, %s188
      %p202 = scmp.eq.s32.totalorder %s28, 1
      %p203 = por %p201, %p202
      %p205 = scmp.ne.s32.totalorder %s188, %s204
      %p206 = scmp.eq.s32.totalorder %s28, 0
      %p207 = por %p205, %p206
      %p208 = scmp.le.s32.totalorder 1, %s22
      %p209 = scmp.lt.s32.totalorder %s22, 3
      %p210 = pnand %p208, %p209
      %p211 = pneg %p210
      // Predicated region
      $region9: #{tpu_custom_call.1} parent=5 // pred_check
        _
      $region10: #{tpu_custom_call.1} parent=5 // pred_check_branch
        %213 = sbr.rel (%p210) target = $region12
      $region11: #{tpu_custom_call.1} parent=5 // pred_region
        %s214 = ssub.s32 %s22, 1
        // Predicated region
        $region13: #{tpu_custom_call.1} parent=11 // pred_check
          %p215 = pneg %p69
        $region14: #{tpu_custom_call.1} parent=11 // pred_check_branch
          %217 = sbr.rel (%p215) target = $region16
        $region15: #{tpu_custom_call.1} parent=11 // pred_region
          %s219 = ssub.s32 122880, 122880
          %220 = vsyncadd [#allocation7], %s219
          %s221 = sshll.u32 [#allocation6], 4
          %s222 = int_to_ptr.vmem [resolvable:$true] %s221
          %227 = dma.hbm_to_vmem [thread:$0]  %s1, 122880, %s222, [#allocation7], 256, 256, 16
        $region16: #{tpu_custom_call.1} parent=11 // pred_fallthru
          _
        // Predicated region
        $region17: #{tpu_custom_call.1} parent=11 // pred_check
          %p228 = pneg %p90
        $region18: #{tpu_custom_call.1} parent=11 // pred_check_branch
          %230 = sbr.rel (%p228) target = $region20
        $region19: #{tpu_custom_call.1} parent=11 // pred_region
          %s232 = ssub.s32 160, 160
          %233 = vsyncadd [#allocation7], %s232
          %s234 = sshll.u32 [#allocation8], 4
          %s235 = int_to_ptr.vmem [resolvable:$true] %s234
          %240 = dma.hbm_to_vmem [thread:$0]  %s2, 160, %s235, [#allocation7], 32, 32, 2
        $region20: #{tpu_custom_call.1} parent=11 // pred_fallthru
          _
        // Predicated region
        $region21: #{tpu_custom_call.1} parent=11 // pred_check
          %p241 = pneg %p111
        $region22: #{tpu_custom_call.1} parent=11 // pred_check_branch
          %243 = sbr.rel (%p241) target = $region24
        $region23: #{tpu_custom_call.1} parent=11 // pred_region
          %s245 = ssub.s32 8192, 8192
          %246 = vsyncadd [#allocation10], %s245
          %s247 = sshll.u32 [#allocation9], 4
          %s248 = int_to_ptr.vmem [resolvable:$true] %s247
          %253 = dma.hbm_to_vmem [thread:$0]  %s3, 8192, %s248, [#allocation10], 128, 128, 8
        $region24: #{tpu_custom_call.1} parent=11 // pred_fallthru
          _
        // Predicated region
        $region25: #{tpu_custom_call.1} parent=11 // pred_check
          %p254 = pneg %p132
        $region26: #{tpu_custom_call.1} parent=11 // pred_check_branch
          %256 = sbr.rel (%p254) target = $region28
        $region27: #{tpu_custom_call.1} parent=11 // pred_region
          %s258 = ssub.s32 32, 32
          %259 = vsyncadd [#allocation10], %s258
          %s260 = sshll.u32 [#allocation11], 4
          %s261 = int_to_ptr.vmem [resolvable:$true] %s260
          %266 = dma.hbm_to_vmem [thread:$0]  %s4, 32, %s261, [#allocation10], 16, 16, 1
        $region28: #{tpu_custom_call.1} parent=11 // pred_fallthru
          _
        // Predicated region
        $region29: #{tpu_custom_call.1} parent=11 // pred_check
          %p267 = pneg %p153
        $region30: #{tpu_custom_call.1} parent=11 // pred_check_branch
          %269 = sbr.rel (%p267) target = $region32
        $region31: #{tpu_custom_call.1} parent=11 // pred_region
          %s271 = ssub.s32 8192, 8192
          %272 = vsyncadd [#allocation13], %s271
          %s273 = sshll.u32 [#allocation12], 4
          %s274 = int_to_ptr.vmem [resolvable:$true] %s273
          %279 = dma.hbm_to_vmem [thread:$0]  %s5, 8192, %s274, [#allocation13], 256, 256, 16
        $region32: #{tpu_custom_call.1} parent=11 // pred_fallthru
          _
        // Predicated region
        $region33: #{tpu_custom_call.1} parent=11 // pred_check
          %p280 = pneg %p174
        $region34: #{tpu_custom_call.1} parent=11 // pred_check_branch
          %282 = sbr.rel (%p280) target = $region36
        $region35: #{tpu_custom_call.1} parent=11 // pred_region
          %s284 = ssub.s32 64, 64
          %285 = vsyncadd [#allocation13], %s284
          %s286 = sshll.u32 [#allocation14], 4
          %s287 = int_to_ptr.vmem [resolvable:$true] %s286
          %292 = dma.hbm_to_vmem [thread:$0]  %s6, 64, %s287, [#allocation13], 32, 32, 2
        $region36: #{tpu_custom_call.1} parent=11 // pred_fallthru
          _
      $region12: #{tpu_custom_call.1} parent=5 // pred_fallthru
        _
      %p293 = scmp.lt.s32.totalorder %s22, 2
      // Predicated region
      $region37: #{tpu_custom_call.1} parent=5 // pred_check
        %p294 = pneg %p293
      $region38: #{tpu_custom_call.1} parent=5 // pred_check_branch
        %296 = sbr.rel (%p294) target = $region40
      $region39: #{tpu_custom_call.1} parent=5 // pred_region
        // Predicated region
        $region41: #{tpu_custom_call.1} parent=39 // pred_check
          %p297 = pneg %p42
        $region42: #{tpu_custom_call.1} parent=39 // pred_check_branch
          %299 = sbr.rel (%p297) target = $region44
        $region43: #{tpu_custom_call.1} parent=39 // pred_region
          %s300 = sand.u32 %s32, 1
          %s301 = scalar_lea.sflag [#allocation4], %s300
          %s302 = sand.u32 %s32, 1
          %s303 = smul.addr %s302, 32
          %s304 = scalar_lea.vmem [#allocation3], %s303
          %s305 = smul.u32 2, %s22
          %s307 = ssub.s32 512, 512
          %308 = vsyncadd %s301, %s307
          %s309 = smul.addr %s305, 2
          %s310 = smul.addr %s309, 128
          %s311 = scalar_lea.hbm %s0, %s310
          %s312 = sshll.u32 %s304, 4
          %s313 = int_to_ptr.vmem [resolvable:$true] %s312
          %318 = dma.hbm_to_vmem [thread:$0]  %s311, 512, %s313, %s301, 256, 256, 16
        $region44: #{tpu_custom_call.1} parent=39 // pred_fallthru
          _
      $region40: #{tpu_custom_call.1} parent=5 // pred_fallthru
        _
      %p319 = scmp.le.s32.totalorder 1, %s22
      %p320 = scmp.lt.s32.totalorder %s22, 3
      %p321 = pnand %p319, %p320
      %p322 = pneg %p321
      // Predicated region
      $region45: #{tpu_custom_call.1} parent=5 // pred_check
        _
      $region46: #{tpu_custom_call.1} parent=5 // pred_check_branch
        %324 = sbr.rel (%p321) target = $region48
      $region47: #{tpu_custom_call.1} parent=5 // pred_region
        %s325 = ssub.s32 %s22, 1
        %s326 = sand.u32 %s35, 1
        %s327 = scalar_lea.sflag [#allocation4], %s326
        %s328 = sand.u32 %s35, 1
        %s329 = smul.addr %s328, 32
        %s330 = scalar_lea.vmem [#allocation3], %s329
        // Predicated region
        $region49: #{tpu_custom_call.1} parent=47 // pred_check
          %p331 = pneg %p48
        $region50: #{tpu_custom_call.1} parent=47 // pred_check_branch
          %333 = sbr.rel (%p331) target = $region52
        $region51: #{tpu_custom_call.1} parent=47 // pred_region
          %334 = dma.done %s327, 512
        $region52: #{tpu_custom_call.1} parent=47 // pred_fallthru
          _
        // Predicated region
        $region53: #{tpu_custom_call.1} parent=47 // pred_check
          %p335 = pneg %p69
        $region54: #{tpu_custom_call.1} parent=47 // pred_check_branch
          %337 = sbr.rel (%p335) target = $region56
        $region55: #{tpu_custom_call.1} parent=47 // pred_region
          %338 = dma.done [#allocation7], 122880
        $region56: #{tpu_custom_call.1} parent=47 // pred_fallthru
          _
        // Predicated region
        $region57: #{tpu_custom_call.1} parent=47 // pred_check
          %p339 = pneg %p90
        $region58: #{tpu_custom_call.1} parent=47 // pred_check_branch
          %341 = sbr.rel (%p339) target = $region60
        $region59: #{tpu_custom_call.1} parent=47 // pred_region
          %342 = dma.done [#allocation7], 160
        $region60: #{tpu_custom_call.1} parent=47 // pred_fallthru
          _
        // Predicated region
        $region61: #{tpu_custom_call.1} parent=47 // pred_check
          %p343 = pneg %p111
        $region62: #{tpu_custom_call.1} parent=47 // pred_check_branch
          %345 = sbr.rel (%p343) target = $region64
        $region63: #{tpu_custom_call.1} parent=47 // pred_region
          %346 = dma.done [#allocation10], 8192
        $region64: #{tpu_custom_call.1} parent=47 // pred_fallthru
          _
        // Predicated region
        $region65: #{tpu_custom_call.1} parent=47 // pred_check
          %p347 = pneg %p132
        $region66: #{tpu_custom_call.1} parent=47 // pred_check_branch
          %349 = sbr.rel (%p347) target = $region68
        $region67: #{tpu_custom_call.1} parent=47 // pred_region
          %350 = dma.done [#allocation10], 32
        $region68: #{tpu_custom_call.1} parent=47 // pred_fallthru
          _
        // Predicated region
        $region69: #{tpu_custom_call.1} parent=47 // pred_check
          %p351 = pneg %p153
        $region70: #{tpu_custom_call.1} parent=47 // pred_check_branch
          %353 = sbr.rel (%p351) target = $region72
        $region71: #{tpu_custom_call.1} parent=47 // pred_region
          %354 = dma.done [#allocation13], 8192
        $region72: #{tpu_custom_call.1} parent=47 // pred_fallthru
          _
        // Predicated region
        $region73: #{tpu_custom_call.1} parent=47 // pred_check
          %p355 = pneg %p174
        $region74: #{tpu_custom_call.1} parent=47 // pred_check_branch
          %357 = sbr.rel (%p355) target = $region76
        $region75: #{tpu_custom_call.1} parent=47 // pred_region
          %358 = dma.done [#allocation13], 64
        $region76: #{tpu_custom_call.1} parent=47 // pred_fallthru
          _
        %s359 = sand.u32 %s35, 1
        %s360 = scalar_lea.sflag [#allocation4], %s359
        %s361 = sand.u32 %s35, 1
        %s362 = smul.addr %s361, 32
        %s363 = scalar_lea.vmem [#allocation3], %s362
        %p364 = pneg %p48
        %p365 = pneg %p45
        %p366 = pneg %p69
        %p367 = pneg %p66
        %p368 = pneg %p90
        %p369 = pneg %p87
        %p370 = pneg %p111
        %p371 = pneg %p108
        %p372 = pneg %p132
        %p373 = pneg %p129
        %p374 = pneg %p153
        %p375 = pneg %p150
        %p376 = pneg %p174
        %p377 = pneg %p171
        %p378 = pneg %p200
        %p379 = pneg %p197
        %s380 = sand.u32 %s187, 1
        %s381 = scalar_lea.sflag [#allocation5], %s380
        %s382 = sand.u32 %s187, 1
        %s383 = smul.addr %s382, 32
        %s384 = scalar_lea.vmem [#allocation15], %s383
        %s385 = smul.u32 2, %s27
        %s386 = smul.u32 2, %s27
        %387 = vst [vmem:[#allocation2] sm:$0xff] 0.0
        %388 = vst [vmem:[#allocation2 + $0x8] sm:$0xff] 0.0
        %389 = vst [vmem:[#allocation2 + $0x30] sm:$0xff] 0.0
        %390 = vst [vmem:[#allocation2 + $0x38] sm:$0xff] 0.0
        %v391 = vld [vmem:[%s330] sm:$0xff]
        %v392 = vld [vmem:[%s330 + $0x8] sm:$0xff]
        %v393 = vld [vmem:[%s330 + $0x10] sm:$0xff]
        %v394 = vld [vmem:[%s330 + $0x18] sm:$0xff]
        %395 = vst [vmem:[#allocation2 + $0x10] sm:$0xff] %v391
        %396 = vst [vmem:[#allocation2 + $0x18] sm:$0xff] %v392
        %397 = vst [vmem:[#allocation2 + $0x20] sm:$0xff] %v393
        %398 = vst [vmem:[#allocation2 + $0x28] sm:$0xff] %v394
        %v399 = vld [vmem:[#allocation2] sm:$0x80]
        %v400 = vld [vmem:[#allocation2 + $0x8] sm:$0x80]
        %v401 = vld [vmem:[#allocation2 + $0x10] sm:$0xff]
        %v402 = vld [vmem:[#allocation2 + $0x18] sm:$0xff]
        %v403 = vld [vmem:[#allocation2 + $0x20] sm:$0x7f]
        %v404 = vld [vmem:[#allocation2 + $0x28] sm:$0x7f]
        %v405 = vld [vmem:[#allocation2 + $0x20] sm:$0xff]
        %v406 = vld [vmem:[#allocation2 + $0x28] sm:$0xff]
        %v407 = vld [vmem:[#allocation2 + $0x10] sm:$0xfe]
        %v408 = vld [vmem:[#allocation2 + $0x18] sm:$0xfe]
        %v409 = vld [vmem:[#allocation2 + $0x20] sm:$0xff]
        %v410 = vld [vmem:[#allocation2 + $0x28] sm:$0xff]
        %v411 = vld [vmem:[#allocation2 + $0x30] sm:$0x1]
        %v412 = vld [vmem:[#allocation2 + $0x38] sm:$0x1]
        %vm417 = vcmask 1046528
        %v418 = vrot.slane %v401, 1
        %v419 = vrot.slane %v402, 1
        %v420 = vrot.slane %v405, 1
        %v421 = vsel %vm417, %v418, %v420
        %v422 = vrot.slane %v406, 1
        %v423 = vsel %vm417, %v419, %v422
        %vm430 = vcmask 1045504
        %v431 = vrot.slane %v407, 2
        %v432 = vrot.slane %v408, 2
        %v433 = vrot.slane %v409, 2
        %v434 = vsel %vm430, %v431, %v433
        %v435 = vrot.slane %v410, 2
        %v436 = vsel %vm430, %v432, %v435
        %v437 = vrot.slane %v411, 2
        %v438 = vsel %vm430, %v433, %v437
        %v439 = vrot.slane %v412, 2
        %v440 = vsel %vm430, %v435, %v439
        %v441 = vld [vmem:[#allocation6] sm:$0xff]
        %v442 = vld [vmem:[#allocation6 + $0x8] sm:$0xff]
        %v443 = vld [vmem:[#allocation6 + $0x10] sm:$0xff]
        %v444 = vld [vmem:[#allocation6 + $0x18] sm:$0xff]
        %v445 = vld [vmem:[#allocation6 + $0x20] sm:$0xff]
        %v446 = vld [vmem:[#allocation6 + $0x28] sm:$0xff]
        %v447 = vld [vmem:[#allocation6 + $0x30] sm:$0xff]
        %v448 = vld [vmem:[#allocation6 + $0x38] sm:$0xff]
        %v449 = vld [vmem:[#allocation6 + $0x40] sm:$0xff]
        %v450 = vld [vmem:[#allocation6 + $0x48] sm:$0xff]
        %v451 = vld [vmem:[#allocation6 + $0x50] sm:$0xff]
        %v452 = vld [vmem:[#allocation6 + $0x58] sm:$0xff]
        %v453 = vld [vmem:[#allocation6 + $0x60] sm:$0xff]
        %v454 = vld [vmem:[#allocation6 + $0x68] sm:$0xff]
        %v455 = vld [vmem:[#allocation6 + $0x70] sm:$0xff]
        %v456 = vld [vmem:[#allocation6 + $0x78] sm:$0xff]
        %v457 = vld [vmem:[#allocation6 + $0x80] sm:$0xff]
        %v458 = vld [vmem:[#allocation6 + $0x88] sm:$0xff]
        %v459 = vld [vmem:[#allocation6 + $0x90] sm:$0xff]
        %v460 = vld [vmem:[#allocation6 + $0x98] sm:$0xff]
        %v461 = vld [vmem:[#allocation6 + $0xa0] sm:$0xff]
        %v462 = vld [vmem:[#allocation6 + $0xa8] sm:$0xff]
        %v463 = vld [vmem:[#allocation6 + $0xb0] sm:$0xff]
        %v464 = vld [vmem:[#allocation6 + $0xb8] sm:$0xff]
        %v465 = vld [vmem:[#allocation6 + $0xc0] sm:$0xff]
        %v466 = vld [vmem:[#allocation6 + $0xc8] sm:$0xff]
        %v467 = vld [vmem:[#allocation6 + $0xd0] sm:$0xff]
        %v468 = vld [vmem:[#allocation6 + $0xd8] sm:$0xff]
        %v469 = vld [vmem:[#allocation6 + $0xe0] sm:$0xff]
        %v470 = vld [vmem:[#allocation6 + $0xe8] sm:$0xff]
        %v471 = vld [vmem:[#allocation6 + $0xf0] sm:$0xff]
        %v472 = vld [vmem:[#allocation6 + $0xf8] sm:$0xff]
        %v473 = vld [vmem:[#allocation6 + $0x100] sm:$0xff]
        %v474 = vld [vmem:[#allocation6 + $0x108] sm:$0xff]
        %v475 = vld [vmem:[#allocation6 + $0x110] sm:$0xff]
        %v476 = vld [vmem:[#allocation6 + $0x118] sm:$0xff]
        %v477 = vld [vmem:[#allocation6 + $0x120] sm:$0xff]
        %v478 = vld [vmem:[#allocation6 + $0x128] sm:$0xff]
        %v479 = vld [vmem:[#allocation6 + $0x130] sm:$0xff]
        %v480 = vld [vmem:[#allocation6 + $0x138] sm:$0xff]
        %v481 = vld [vmem:[#allocation6 + $0x140] sm:$0xff]
        %v482 = vld [vmem:[#allocation6 + $0x148] sm:$0xff]
        %v483 = vld [vmem:[#allocation6 + $0x150] sm:$0xff]
        %v484 = vld [vmem:[#allocation6 + $0x158] sm:$0xff]
        %v485 = vld [vmem:[#allocation6 + $0x160] sm:$0xff]
        %v486 = vld [vmem:[#allocation6 + $0x168] sm:$0xff]
        %v487 = vld [vmem:[#allocation6 + $0x170] sm:$0xff]
        %v488 = vld [vmem:[#allocation6 + $0x178] sm:$0xff]
        %v489 = vld [vmem:[#allocation6 + $0x180] sm:$0xff]
        %v490 = vld [vmem:[#allocation6 + $0x188] sm:$0xff]
        %v491 = vld [vmem:[#allocation6 + $0x190] sm:$0xff]
        %v492 = vld [vmem:[#allocation6 + $0x198] sm:$0xff]
        %v493 = vld [vmem:[#allocation6 + $0x1a0] sm:$0xff]
        %v494 = vld [vmem:[#allocation6 + $0x1a8] sm:$0xff]
        %v495 = vld [vmem:[#allocation6 + $0x1b0] sm:$0xff]
        %v496 = vld [vmem:[#allocation6 + $0x1b8] sm:$0xff]
        %v497 = vld [vmem:[#allocation6 + $0x1c0] sm:$0xff]
        %v498 = vld [vmem:[#allocation6 + $0x1c8] sm:$0xff]
        %v499 = vld [vmem:[#allocation6 + $0x1d0] sm:$0xff]
        %v500 = vld [vmem:[#allocation6 + $0x1d8] sm:$0xff]
        %v501 = vld [vmem:[#allocation6 + $0x1e0] sm:$0xff]
        %v502 = vld [vmem:[#allocation6 + $0x1e8] sm:$0xff]
        %v503 = vld [vmem:[#allocation6 + $0x1f0] sm:$0xff]
        %v504 = vld [vmem:[#allocation6 + $0x1f8] sm:$0xff]
        %v505 = vld [vmem:[#allocation6 + $0x200] sm:$0xff]
        %v506 = vld [vmem:[#allocation6 + $0x208] sm:$0xff]
        %v507 = vld [vmem:[#allocation6 + $0x210] sm:$0xff]
        %v508 = vld [vmem:[#allocation6 + $0x218] sm:$0xff]
        %v509 = vld [vmem:[#allocation6 + $0x220] sm:$0xff]
        %v510 = vld [vmem:[#allocation6 + $0x228] sm:$0xff]
        %v511 = vld [vmem:[#allocation6 + $0x230] sm:$0xff]
        %v512 = vld [vmem:[#allocation6 + $0x238] sm:$0xff]
        %v513 = vld [vmem:[#allocation6 + $0x240] sm:$0xff]
        %v514 = vld [vmem:[#allocation6 + $0x248] sm:$0xff]
        %v515 = vld [vmem:[#allocation6 + $0x250] sm:$0xff]
        %v516 = vld [vmem:[#allocation6 + $0x258] sm:$0xff]
        %v517 = vld [vmem:[#allocation6 + $0x260] sm:$0xff]
        %v518 = vld [vmem:[#allocation6 + $0x268] sm:$0xff]
        %v519 = vld [vmem:[#allocation6 + $0x270] sm:$0xff]
        %v520 = vld [vmem:[#allocation6 + $0x278] sm:$0xff]
        %v521 = vld [vmem:[#allocation6 + $0x280] sm:$0xff]
        %v522 = vld [vmem:[#allocation6 + $0x288] sm:$0xff]
        %v523 = vld [vmem:[#allocation6 + $0x290] sm:$0xff]
        %v524 = vld [vmem:[#allocation6 + $0x298] sm:$0xff]
        %v525 = vld [vmem:[#allocation6 + $0x2a0] sm:$0xff]
        %v526 = vld [vmem:[#allocation6 + $0x2a8] sm:$0xff]
        %v527 = vld [vmem:[#allocation6 + $0x2b0] sm:$0xff]
        %v528 = vld [vmem:[#allocation6 + $0x2b8] sm:$0xff]
        %v529 = vld [vmem:[#allocation6 + $0x2c0] sm:$0xff]
        %v530 = vld [vmem:[#allocation6 + $0x2c8] sm:$0xff]
        %v531 = vld [vmem:[#allocation6 + $0x2d0] sm:$0xff]
        %v532 = vld [vmem:[#allocation6 + $0x2d8] sm:$0xff]
        %v533 = vld [vmem:[#allocation6 + $0x2e0] sm:$0xff]
        %v534 = vld [vmem:[#allocation6 + $0x2e8] sm:$0xff]
        %v535 = vld [vmem:[#allocation6 + $0x2f0] sm:$0xff]
        %v536 = vld [vmem:[#allocation6 + $0x2f8] sm:$0xff]
        %v537 = vld [vmem:[#allocation6 + $0x300] sm:$0xff]
        %v538 = vld [vmem:[#allocation6 + $0x308] sm:$0xff]
        %v539 = vld [vmem:[#allocation6 + $0x310] sm:$0xff]
        %v540 = vld [vmem:[#allocation6 + $0x318] sm:$0xff]
        %v541 = vld [vmem:[#allocation6 + $0x320] sm:$0xff]
        %v542 = vld [vmem:[#allocation6 + $0x328] sm:$0xff]
        %v543 = vld [vmem:[#allocation6 + $0x330] sm:$0xff]
        %v544 = vld [vmem:[#allocation6 + $0x338] sm:$0xff]
        %v545 = vld [vmem:[#allocation6 + $0x340] sm:$0xff]
        %v546 = vld [vmem:[#allocation6 + $0x348] sm:$0xff]
        %v547 = vld [vmem:[#allocation6 + $0x350] sm:$0xff]
        %v548 = vld [vmem:[#allocation6 + $0x358] sm:$0xff]
        %v549 = vld [vmem:[#allocation6 + $0x360] sm:$0xff]
        %v550 = vld [vmem:[#allocation6 + $0x368] sm:$0xff]
        %v551 = vld [vmem:[#allocation6 + $0x370] sm:$0xff]
        %v552 = vld [vmem:[#allocation6 + $0x378] sm:$0xff]
        %v553 = vld [vmem:[#allocation6 + $0x380] sm:$0xff]
        %v554 = vld [vmem:[#allocation6 + $0x388] sm:$0xff]
        %v555 = vld [vmem:[#allocation6 + $0x390] sm:$0xff]
        %v556 = vld [vmem:[#allocation6 + $0x398] sm:$0xff]
        %v557 = vld [vmem:[#allocation6 + $0x3a0] sm:$0xff]
        %v558 = vld [vmem:[#allocation6 + $0x3a8] sm:$0xff]
        %v559 = vld [vmem:[#allocation6 + $0x3b0] sm:$0xff]
        %v560 = vld [vmem:[#allocation6 + $0x3b8] sm:$0xff]
        %v561 = vld [vmem:[#allocation6 + $0x3c0] sm:$0xff]
        %v562 = vld [vmem:[#allocation6 + $0x3c8] sm:$0xff]
        %v563 = vld [vmem:[#allocation6 + $0x3d0] sm:$0xff]
        %v564 = vld [vmem:[#allocation6 + $0x3d8] sm:$0xff]
        %v565 = vld [vmem:[#allocation6 + $0x3e0] sm:$0xff]
        %v566 = vld [vmem:[#allocation6 + $0x3e8] sm:$0xff]
        %v567 = vld [vmem:[#allocation6 + $0x3f0] sm:$0xff]
        %v568 = vld [vmem:[#allocation6 + $0x3f8] sm:$0xff]
        %v569 = vld [vmem:[#allocation6 + $0x400] sm:$0xff]
        %v570 = vld [vmem:[#allocation6 + $0x408] sm:$0xff]
        %v571 = vld [vmem:[#allocation6 + $0x410] sm:$0xff]
        %v572 = vld [vmem:[#allocation6 + $0x418] sm:$0xff]
        %v573 = vld [vmem:[#allocation6 + $0x420] sm:$0xff]
        %v574 = vld [vmem:[#allocation6 + $0x428] sm:$0xff]
        %v575 = vld [vmem:[#allocation6 + $0x430] sm:$0xff]
        %v576 = vld [vmem:[#allocation6 + $0x438] sm:$0xff]
        %v577 = vld [vmem:[#allocation6 + $0x440] sm:$0xff]
        %v578 = vld [vmem:[#allocation6 + $0x448] sm:$0xff]
        %v579 = vld [vmem:[#allocation6 + $0x450] sm:$0xff]
        %v580 = vld [vmem:[#allocation6 + $0x458] sm:$0xff]
        %v581 = vld [vmem:[#allocation6 + $0x460] sm:$0xff]
        %v582 = vld [vmem:[#allocation6 + $0x468] sm:$0xff]
        %v583 = vld [vmem:[#allocation6 + $0x470] sm:$0xff]
        %v584 = vld [vmem:[#allocation6 + $0x478] sm:$0xff]
        %v585 = vld [vmem:[#allocation6 + $0x480] sm:$0xff]
        %v586 = vld [vmem:[#allocation6 + $0x488] sm:$0xff]
        %v587 = vld [vmem:[#allocation6 + $0x490] sm:$0xff]
        %v588 = vld [vmem:[#allocation6 + $0x498] sm:$0xff]
        %v589 = vld [vmem:[#allocation6 + $0x4a0] sm:$0xff]
        %v590 = vld [vmem:[#allocation6 + $0x4a8] sm:$0xff]
        %v591 = vld [vmem:[#allocation6 + $0x4b0] sm:$0xff]
        %v592 = vld [vmem:[#allocation6 + $0x4b8] sm:$0xff]
        %v593 = vld [vmem:[#allocation6 + $0x4c0] sm:$0xff]
        %v594 = vld [vmem:[#allocation6 + $0x4c8] sm:$0xff]
        %v595 = vld [vmem:[#allocation6 + $0x4d0] sm:$0xff]
        %v596 = vld [vmem:[#allocation6 + $0x4d8] sm:$0xff]
        %v597 = vld [vmem:[#allocation6 + $0x4e0] sm:$0xff]
        %v598 = vld [vmem:[#allocation6 + $0x4e8] sm:$0xff]
        %v599 = vld [vmem:[#allocation6 + $0x4f0] sm:$0xff]
        %v600 = vld [vmem:[#allocation6 + $0x4f8] sm:$0xff]
        %v601 = vld [vmem:[#allocation6 + $0x500] sm:$0xff]
        %v602 = vld [vmem:[#allocation6 + $0x508] sm:$0xff]
        %v603 = vld [vmem:[#allocation6 + $0x510] sm:$0xff]
        %v604 = vld [vmem:[#allocation6 + $0x518] sm:$0xff]
        %v605 = vld [vmem:[#allocation6 + $0x520] sm:$0xff]
        %v606 = vld [vmem:[#allocation6 + $0x528] sm:$0xff]
        %v607 = vld [vmem:[#allocation6 + $0x530] sm:$0xff]
        %v608 = vld [vmem:[#allocation6 + $0x538] sm:$0xff]
        %v609 = vld [vmem:[#allocation6 + $0x540] sm:$0xff]
        %v610 = vld [vmem:[#allocation6 + $0x548] sm:$0xff]
        %v611 = vld [vmem:[#allocation6 + $0x550] sm:$0xff]
        %v612 = vld [vmem:[#allocation6 + $0x558] sm:$0xff]
        %v613 = vld [vmem:[#allocation6 + $0x560] sm:$0xff]
        %v614 = vld [vmem:[#allocation6 + $0x568] sm:$0xff]
        %v615 = vld [vmem:[#allocation6 + $0x570] sm:$0xff]
        %v616 = vld [vmem:[#allocation6 + $0x578] sm:$0xff]
        %v617 = vld [vmem:[#allocation6 + $0x580] sm:$0xff]
        %v618 = vld [vmem:[#allocation6 + $0x588] sm:$0xff]
        %v619 = vld [vmem:[#allocation6 + $0x590] sm:$0xff]
        %v620 = vld [vmem:[#allocation6 + $0x598] sm:$0xff]
        %v621 = vld [vmem:[#allocation6 + $0x5a0] sm:$0xff]
        %v622 = vld [vmem:[#allocation6 + $0x5a8] sm:$0xff]
        %v623 = vld [vmem:[#allocation6 + $0x5b0] sm:$0xff]
        %v624 = vld [vmem:[#allocation6 + $0x5b8] sm:$0xff]
        %v625 = vld [vmem:[#allocation6 + $0x5c0] sm:$0xff]
        %v626 = vld [vmem:[#allocation6 + $0x5c8] sm:$0xff]
        %v627 = vld [vmem:[#allocation6 + $0x5d0] sm:$0xff]
        %v628 = vld [vmem:[#allocation6 + $0x5d8] sm:$0xff]
        %v629 = vld [vmem:[#allocation6 + $0x5e0] sm:$0xff]
        %v630 = vld [vmem:[#allocation6 + $0x5e8] sm:$0xff]
        %v631 = vld [vmem:[#allocation6 + $0x5f0] sm:$0xff]
        %v632 = vld [vmem:[#allocation6 + $0x5f8] sm:$0xff]
        %v633 = vld [vmem:[#allocation8] sm:$0x3]
        %v635 = vlaneseq
        %v636 = vshrl.u32 %v635, 7
        %v637 = vsub.s32 0, %v636
        %v638 = vrot.slane %v633, %v637
        %v639 = vlaneseq
        %v640 = vshrl.u32 %v639, 7
        %v641 = vsub.s32 1, %v640
        %v642 = vrot.slane %v633, %v641
        %vm649 = vcmask 1040384
        %v650 = vrot.slane %v399, 7
        %v651 = vrot.slane %v401, 7
        %v652 = vsel %vm649, %v650, %v651
        %v653 = vrot.slane %v400, 7
        %v654 = vrot.slane %v402, 7
        %v655 = vsel %vm649, %v653, %v654
        %v656 = vrot.slane %v418, 7
        %v657 = vrot.slane %v421, 7
        %v658 = vsel %vm649, %v656, %v657
        %v659 = vrot.slane %v419, 7
        %v660 = vrot.slane %v423, 7
        %v661 = vsel %vm649, %v659, %v660
        %v662 = vrot.slane %v431, 7
        %v663 = vrot.slane %v434, 7
        %v664 = vsel %vm649, %v662, %v663
        %v665 = vrot.slane %v432, 7
        %v666 = vrot.slane %v436, 7
        %v667 = vsel %vm649, %v665, %v666
        %v668 = vrot.slane %v403, 7
        %v669 = vsel %vm649, %v651, %v668
        %v670 = vrot.slane %v404, 7
        %v671 = vsel %vm649, %v654, %v670
        %v672 = vrot.slane %v420, 7
        %v673 = vsel %vm649, %v657, %v672
        %v674 = vrot.slane %v422, 7
        %v675 = vsel %vm649, %v660, %v674
        %v676 = vrot.slane %v438, 7
        %v677 = vsel %vm649, %v663, %v676
        %v678 = vrot.slane %v440, 7
        %v679 = vsel %vm649, %v666, %v678
        %692 = vmatprep.subr.mxu0 %v442
        %693 = vmatpush1.msra.mxu0 %v441
        %694 = vmatprep.subr.mxu0 %v444
        %695 = vmatpush1.msra.mxu0 %v443
        %696 = vmatprep.subr.mxu0 %v446
        %697 = vmatpush1.msra.mxu0 %v445
        %698 = vmatprep.subr.mxu0 %v448
        %699 = vmatpush1.msra.mxu0 %v447
        %700 = vmatprep.subr.mxu0 %v450
        %701 = vmatpush1.msra.mxu0 %v449
        %702 = vmatprep.subr.mxu0 %v452
        %703 = vmatpush1.msra.mxu0 %v451
        %704 = vmatprep.subr.mxu0 %v454
        %705 = vmatpush1.msra.mxu0 %v453
        %706 = vmatprep.subr.mxu0 %v456
        %707 = vmatpush1.msra.mxu0 %v455
        %708 = vmatprep.subr.mxu0 %v458
        %709 = vmatpush1.msra.mxu0 %v457
        %710 = vmatprep.subr.mxu0 %v460
        %711 = vmatpush1.msra.mxu0 %v459
        %712 = vmatprep.subr.mxu0 %v462
        %713 = vmatpush1.msra.mxu0 %v461
        %714 = vmatprep.subr.mxu0 %v464
        %715 = vmatpush1.msra.mxu0 %v463
        %716 = vmatprep.subr.mxu0 %v466
        %717 = vmatpush1.msra.mxu0 %v465
        %718 = vmatprep.subr.mxu0 %v468
        %719 = vmatpush1.msra.mxu0 %v467
        %720 = vmatprep.subr.mxu0 %v470
        %721 = vmatpush1.msra.mxu0 %v469
        %722 = vmatprep.subr.mxu0 %v472
        %723 = vmatpush1.msra.mxu0 %v471
        %724 = vmatprep.subr.mxu0 %v474
        %725 = vmatpush1.msra.mxu0 %v473
        %726 = vmatprep.subr.mxu0 %v476
        %727 = vmatpush1.msra.mxu0 %v475
        %728 = vmatprep.subr.mxu0 %v478
        %729 = vmatpush1.msra.mxu0 %v477
        %730 = vmatprep.subr.mxu0 %v480
        %731 = vmatpush1.msra.mxu0 %v479
        %732 = vmatprep.subr.mxu0 %v482
        %733 = vmatpush1.msra.mxu0 %v481
        %734 = vmatprep.subr.mxu0 %v484
        %735 = vmatpush1.msra.mxu0 %v483
        %736 = vmatprep.subr.mxu0 %v486
        %737 = vmatpush1.msra.mxu0 %v485
        %738 = vmatprep.subr.mxu0 %v488
        %739 = vmatpush1.msra.mxu0 %v487
        %740 = vmatprep.subr.mxu0 %v490
        %741 = vmatpush1.msra.mxu0 %v489
        %742 = vmatprep.subr.mxu0 %v492
        %743 = vmatpush1.msra.mxu0 %v491
        %744 = vmatprep.subr.mxu0 %v494
        %745 = vmatpush1.msra.mxu0 %v493
        %746 = vmatprep.subr.mxu0 %v496
        %747 = vmatpush1.msra.mxu0 %v495
        %748 = vmatprep.subr.mxu0 %v498
        %749 = vmatpush1.msra.mxu0 %v497
        %750 = vmatprep.subr.mxu0 %v500
        %751 = vmatpush1.msra.mxu0 %v499
        %752 = vmatprep.subr.mxu0 %v502
        %753 = vmatpush1.msra.mxu0 %v501
        %754 = vmatprep.subr.mxu0 %v504
        %755 = vmatpush1.msra.mxu0 %v503
        %756 = vmatprep.mubr.f32.mxu0 %v655
        %757 = vmatmul.mubr.f32.gmra.mrb[0].mxu0 %v652
        %v758 = vpop.f32.mrb[0].mxu0
        %v759 = vadd.f32 %v638, %v758
        %v760 = vpop.f32.mrb[0].mxu0
        %v761 = vadd.f32 %v642, %v760
        %762 = vmatprep.mubr.f32.mxu0 %v671
        %763 = vmatmul.mubr.f32.gmra.mrb[0].mxu0 %v669
        %v764 = vpop.f32.mrb[0].mxu0
        %v765 = vadd.f32 %v638, %v764
        %v766 = vpop.f32.mrb[0].mxu0
        %v767 = vadd.f32 %v642, %v766
        %768 = vdwg.mxu0
        %769 = vmatprep.subr.mxu0 %v506
        %770 = vmatpush1.msra.mxu0 %v505
        %771 = vmatprep.subr.mxu0 %v508
        %772 = vmatpush1.msra.mxu0 %v507
        %773 = vmatprep.subr.mxu0 %v510
        %774 = vmatpush1.msra.mxu0 %v509
        %775 = vmatprep.subr.mxu0 %v512
        %776 = vmatpush1.msra.mxu0 %v511
        %777 = vmatprep.subr.mxu0 %v514
        %778 = vmatpush1.msra.mxu0 %v513
        %779 = vmatprep.subr.mxu0 %v516
        %780 = vmatpush1.msra.mxu0 %v515
        %781 = vmatprep.subr.mxu0 %v518
        %782 = vmatpush1.msra.mxu0 %v517
        %783 = vmatprep.subr.mxu0 %v520
        %784 = vmatpush1.msra.mxu0 %v519
        %785 = vmatprep.subr.mxu0 %v522
        %786 = vmatpush1.msra.mxu0 %v521
        %787 = vmatprep.subr.mxu0 %v524
        %788 = vmatpush1.msra.mxu0 %v523
        %789 = vmatprep.subr.mxu0 %v526
        %790 = vmatpush1.msra.mxu0 %v525
        %791 = vmatprep.subr.mxu0 %v528
        %792 = vmatpush1.msra.mxu0 %v527
        %793 = vmatprep.subr.mxu0 %v530
        %794 = vmatpush1.msra.mxu0 %v529
        %795 = vmatprep.subr.mxu0 %v532
        %796 = vmatpush1.msra.mxu0 %v531
        %797 = vmatprep.subr.mxu0 %v534
        %798 = vmatpush1.msra.mxu0 %v533
        %799 = vmatprep.subr.mxu0 %v536
        %800 = vmatpush1.msra.mxu0 %v535
        %801 = vmatprep.subr.mxu0 %v538
        %802 = vmatpush1.msra.mxu0 %v537
        %803 = vmatprep.subr.mxu0 %v540
        %804 = vmatpush1.msra.mxu0 %v539
        %805 = vmatprep.subr.mxu0 %v542
        %806 = vmatpush1.msra.mxu0 %v541
        %807 = vmatprep.subr.mxu0 %v544
        %808 = vmatpush1.msra.mxu0 %v543
        %809 = vmatprep.subr.mxu0 %v546
        %810 = vmatpush1.msra.mxu0 %v545
        %811 = vmatprep.subr.mxu0 %v548
        %812 = vmatpush1.msra.mxu0 %v547
        %813 = vmatprep.subr.mxu0 %v550
        %814 = vmatpush1.msra.mxu0 %v549
        %815 = vmatprep.subr.mxu0 %v552
        %816 = vmatpush1.msra.mxu0 %v551
        %817 = vmatprep.subr.mxu0 %v554
        %818 = vmatpush1.msra.mxu0 %v553
        %819 = vmatprep.subr.mxu0 %v556
        %820 = vmatpush1.msra.mxu0 %v555
        %821 = vmatprep.subr.mxu0 %v558
        %822 = vmatpush1.msra.mxu0 %v557
        %823 = vmatprep.subr.mxu0 %v560
        %824 = vmatpush1.msra.mxu0 %v559
        %825 = vmatprep.subr.mxu0 %v562
        %826 = vmatpush1.msra.mxu0 %v561
        %827 = vmatprep.subr.mxu0 %v564
        %828 = vmatpush1.msra.mxu0 %v563
        %829 = vmatprep.subr.mxu0 %v566
        %830 = vmatpush1.msra.mxu0 %v565
        %831 = vmatprep.subr.mxu0 %v568
        %832 = vmatpush1.msra.mxu0 %v567
        %833 = vmatprep.mubr.f32.mxu0 %v661
        %834 = vmatmul.mubr.f32.gmra.mrb[0].mxu0 %v658
        %v835 = vpop.f32.mrb[0].mxu0
        %v836 = vadd.f32 %v759, %v835
        %v837 = vpop.f32.mrb[0].mxu0
        %v838 = vadd.f32 %v761, %v837
        %839 = vmatprep.mubr.f32.mxu0 %v675
        %840 = vmatmul.mubr.f32.gmra.mrb[0].mxu0 %v673
        %v841 = vpop.f32.mrb[0].mxu0
        %v842 = vadd.f32 %v765, %v841
        %v843 = vpop.f32.mrb[0].mxu0
        %v844 = vadd.f32 %v767, %v843
        %845 = vdwg.mxu0
        %846 = vmatprep.subr.mxu0 %v570
        %847 = vmatpush1.msra.mxu0 %v569
        %848 = vmatprep.subr.mxu0 %v572
        %849 = vmatpush1.msra.mxu0 %v571
        %850 = vmatprep.subr.mxu0 %v574
        %851 = vmatpush1.msra.mxu0 %v573
        %852 = vmatprep.subr.mxu0 %v576
        %853 = vmatpush1.msra.mxu0 %v575
        %854 = vmatprep.subr.mxu0 %v578
        %855 = vmatpush1.msra.mxu0 %v577
        %856 = vmatprep.subr.mxu0 %v580
        %857 = vmatpush1.msra.mxu0 %v579
        %858 = vmatprep.subr.mxu0 %v582
        %859 = vmatpush1.msra.mxu0 %v581
        %860 = vmatprep.subr.mxu0 %v584
        %861 = vmatpush1.msra.mxu0 %v583
        %862 = vmatprep.subr.mxu0 %v586
        %863 = vmatpush1.msra.mxu0 %v585
        %864 = vmatprep.subr.mxu0 %v588
        %865 = vmatpush1.msra.mxu0 %v587
        %866 = vmatprep.subr.mxu0 %v590
        %867 = vmatpush1.msra.mxu0 %v589
        %868 = vmatprep.subr.mxu0 %v592
        %869 = vmatpush1.msra.mxu0 %v591
        %870 = vmatprep.subr.mxu0 %v594
        %871 = vmatpush1.msra.mxu0 %v593
        %872 = vmatprep.subr.mxu0 %v596
        %873 = vmatpush1.msra.mxu0 %v595
        %874 = vmatprep.subr.mxu0 %v598
        %875 = vmatpush1.msra.mxu0 %v597
        %876 = vmatprep.subr.mxu0 %v600
        %877 = vmatpush1.msra.mxu0 %v599
        %878 = vmatprep.subr.mxu0 %v602
        %879 = vmatpush1.msra.mxu0 %v601
        %880 = vmatprep.subr.mxu0 %v604
        %881 = vmatpush1.msra.mxu0 %v603
        %882 = vmatprep.subr.mxu0 %v606
        %883 = vmatpush1.msra.mxu0 %v605
        %884 = vmatprep.subr.mxu0 %v608
        %885 = vmatpush1.msra.mxu0 %v607
        %886 = vmatprep.subr.mxu0 %v610
        %887 = vmatpush1.msra.mxu0 %v609
        %888 = vmatprep.subr.mxu0 %v612
        %889 = vmatpush1.msra.mxu0 %v611
        %890 = vmatprep.subr.mxu0 %v614
        %891 = vmatpush1.msra.mxu0 %v613
        %892 = vmatprep.subr.mxu0 %v616
        %893 = vmatpush1.msra.mxu0 %v615
        %894 = vmatprep.subr.mxu0 %v618
        %895 = vmatpush1.msra.mxu0 %v617
        %896 = vmatprep.subr.mxu0 %v620
        %897 = vmatpush1.msra.mxu0 %v619
        %898 = vmatprep.subr.mxu0 %v622
        %899 = vmatpush1.msra.mxu0 %v621
        %900 = vmatprep.subr.mxu0 %v624
        %901 = vmatpush1.msra.mxu0 %v623
        %902 = vmatprep.subr.mxu0 %v626
        %903 = vmatpush1.msra.mxu0 %v625
        %904 = vmatprep.subr.mxu0 %v628
        %905 = vmatpush1.msra.mxu0 %v627
        %906 = vmatprep.subr.mxu0 %v630
        %907 = vmatpush1.msra.mxu0 %v629
        %908 = vmatprep.subr.mxu0 %v632
        %909 = vmatpush1.msra.mxu0 %v631
        %910 = vmatprep.mubr.f32.mxu0 %v667
        %911 = vmatmul.mubr.f32.gmra.mrb[0].mxu0 %v664
        %v912 = vpop.f32.mrb[0].mxu0
        %v913 = vadd.f32 %v836, %v912
        %v914 = vpop.f32.mrb[0].mxu0
        %v915 = vadd.f32 %v838, %v914
        %916 = vmatprep.mubr.f32.mxu0 %v679
        %917 = vmatmul.mubr.f32.gmra.mrb[0].mxu0 %v677
        %v918 = vpop.f32.mrb[0].mxu0
        %v919 = vadd.f32 %v842, %v918
        %v920 = vpop.f32.mrb[0].mxu0
        %v921 = vadd.f32 %v844, %v920
        %922 = vdwg.mxu0
        %v923 = vmax.f32 %v913, 0.0
        %v924 = vmax.f32 %v915, 0.0
        %v925 = vmax.f32 %v919, 0.0
        %v926 = vmax.f32 %v921, 0.0
        %927 = vst [vmem:[#allocation2 + $0x10] sm:$0xff] %v923
        %928 = vst [vmem:[#allocation2 + $0x18] sm:$0xff] %v924
        %929 = vst [vmem:[#allocation2 + $0x20] sm:$0xff] %v925
        %930 = vst [vmem:[#allocation2 + $0x28] sm:$0xff] %v926
        %v931 = vld [vmem:[#allocation2] sm:$0x80]
        %v932 = vld [vmem:[#allocation2 + $0x8] sm:$0x80]
        %v933 = vld [vmem:[#allocation2 + $0x10] sm:$0xff]
        %v934 = vld [vmem:[#allocation2 + $0x18] sm:$0xff]
        %v935 = vld [vmem:[#allocation2 + $0x20] sm:$0x7f]
        %v936 = vld [vmem:[#allocation2 + $0x28] sm:$0x7f]
        %v937 = vld [vmem:[#allocation2 + $0x20] sm:$0xff]
        %v938 = vld [vmem:[#allocation2 + $0x28] sm:$0xff]
        %v939 = vld [vmem:[#allocation2 + $0x10] sm:$0xfe]
        %v940 = vld [vmem:[#allocation2 + $0x18] sm:$0xfe]
        %v941 = vld [vmem:[#allocation2 + $0x20] sm:$0xff]
        %v942 = vld [vmem:[#allocation2 + $0x28] sm:$0xff]
        %v943 = vld [vmem:[#allocation2 + $0x30] sm:$0x1]
        %v944 = vld [vmem:[#allocation2 + $0x38] sm:$0x1]
        %v949 = vrot.slane %v933, 1
        %v950 = vrot.slane %v934, 1
        %v951 = vrot.slane %v937, 1
        %v952 = vsel %vm417, %v949, %v951
        %v953 = vrot.slane %v938, 1
        %v954 = vsel %vm417, %v950, %v953
        %v961 = vrot.slane %v939, 2
        %v962 = vrot.slane %v940, 2
        %v963 = vrot.slane %v941, 2
        %v964 = vsel %vm430, %v961, %v963
        %v965 = vrot.slane %v942, 2
        %v966 = vsel %vm430, %v962, %v965
        %v967 = vrot.slane %v943, 2
        %v968 = vsel %vm430, %v963, %v967
        %v969 = vrot.slane %v944, 2
        %v970 = vsel %vm430, %v965, %v969
        %s971 = scalar_lea.vmem [#allocation6], 1536
        %v972 = vld [vmem:[%s971] sm:$0xff]
        %v973 = vld [vmem:[%s971 + $0x8] sm:$0xff]
        %v974 = vld [vmem:[%s971 + $0x10] sm:$0xff]
        %v975 = vld [vmem:[%s971 + $0x18] sm:$0xff]
        %v976 = vld [vmem:[%s971 + $0x20] sm:$0xff]
        %v977 = vld [vmem:[%s971 + $0x28] sm:$0xff]
        %v978 = vld [vmem:[%s971 + $0x30] sm:$0xff]
        %v979 = vld [vmem:[%s971 + $0x38] sm:$0xff]
        %v980 = vld [vmem:[%s971 + $0x40] sm:$0xff]
        %v981 = vld [vmem:[%s971 + $0x48] sm:$0xff]
        %v982 = vld [vmem:[%s971 + $0x50] sm:$0xff]
        %v983 = vld [vmem:[%s971 + $0x58] sm:$0xff]
        %v984 = vld [vmem:[%s971 + $0x60] sm:$0xff]
        %v985 = vld [vmem:[%s971 + $0x68] sm:$0xff]
        %v986 = vld [vmem:[%s971 + $0x70] sm:$0xff]
        %v987 = vld [vmem:[%s971 + $0x78] sm:$0xff]
        %v988 = vld [vmem:[%s971 + $0x80] sm:$0xff]
        %v989 = vld [vmem:[%s971 + $0x88] sm:$0xff]
        %v990 = vld [vmem:[%s971 + $0x90] sm:$0xff]
        %v991 = vld [vmem:[%s971 + $0x98] sm:$0xff]
        %v992 = vld [vmem:[%s971 + $0xa0] sm:$0xff]
        %v993 = vld [vmem:[%s971 + $0xa8] sm:$0xff]
        %v994 = vld [vmem:[%s971 + $0xb0] sm:$0xff]
        %v995 = vld [vmem:[%s971 + $0xb8] sm:$0xff]
        %v996 = vld [vmem:[%s971 + $0xc0] sm:$0xff]
        %v997 = vld [vmem:[%s971 + $0xc8] sm:$0xff]
        %v998 = vld [vmem:[%s971 + $0xd0] sm:$0xff]
        %v999 = vld [vmem:[%s971 + $0xd8] sm:$0xff]
        %v1000 = vld [vmem:[%s971 + $0xe0] sm:$0xff]
        %v1001 = vld [vmem:[%s971 + $0xe8] sm:$0xff]
        %v1002 = vld [vmem:[%s971 + $0xf0] sm:$0xff]
        %v1003 = vld [vmem:[%s971 + $0xf8] sm:$0xff]
        %v1004 = vld [vmem:[%s971 + $0x100] sm:$0xff]
        %v1005 = vld [vmem:[%s971 + $0x108] sm:$0xff]
        %v1006 = vld [vmem:[%s971 + $0x110] sm:$0xff]
        %v1007 = vld [vmem:[%s971 + $0x118] sm:$0xff]
        %v1008 = vld [vmem:[%s971 + $0x120] sm:$0xff]
        %v1009 = vld [vmem:[%s971 + $0x128] sm:$0xff]
        %v1010 = vld [vmem:[%s971 + $0x130] sm:$0xff]
        %v1011 = vld [vmem:[%s971 + $0x138] sm:$0xff]
        %v1012 = vld [vmem:[%s971 + $0x140] sm:$0xff]
        %v1013 = vld [vmem:[%s971 + $0x148] sm:$0xff]
        %v1014 = vld [vmem:[%s971 + $0x150] sm:$0xff]
        %v1015 = vld [vmem:[%s971 + $0x158] sm:$0xff]
        %v1016 = vld [vmem:[%s971 + $0x160] sm:$0xff]
        %v1017 = vld [vmem:[%s971 + $0x168] sm:$0xff]
        %v1018 = vld [vmem:[%s971 + $0x170] sm:$0xff]
        %v1019 = vld [vmem:[%s971 + $0x178] sm:$0xff]
        %v1020 = vld [vmem:[%s971 + $0x180] sm:$0xff]
        %v1021 = vld [vmem:[%s971 + $0x188] sm:$0xff]
        %v1022 = vld [vmem:[%s971 + $0x190] sm:$0xff]
        %v1023 = vld [vmem:[%s971 + $0x198] sm:$0xff]
        %v1024 = vld [vmem:[%s971 + $0x1a0] sm:$0xff]
        %v1025 = vld [vmem:[%s971 + $0x1a8] sm:$0xff]
        %v1026 = vld [vmem:[%s971 + $0x1b0] sm:$0xff]
        %v1027 = vld [vmem:[%s971 + $0x1b8] sm:$0xff]
        %v1028 = vld [vmem:[%s971 + $0x1c0] sm:$0xff]
        %v1029 = vld [vmem:[%s971 + $0x1c8] sm:$0xff]
        %v1030 = vld [vmem:[%s971 + $0x1d0] sm:$0xff]
        %v1031 = vld [vmem:[%s971 + $0x1d8] sm:$0xff]
        %v1032 = vld [vmem:[%s971 + $0x1e0] sm:$0xff]
        %v1033 = vld [vmem:[%s971 + $0x1e8] sm:$0xff]
        %v1034 = vld [vmem:[%s971 + $0x1f0] sm:$0xff]
        %v1035 = vld [vmem:[%s971 + $0x1f8] sm:$0xff]
        %v1036 = vld [vmem:[%s971 + $0x200] sm:$0xff]
        %v1037 = vld [vmem:[%s971 + $0x208] sm:$0xff]
        %v1038 = vld [vmem:[%s971 + $0x210] sm:$0xff]
        %v1039 = vld [vmem:[%s971 + $0x218] sm:$0xff]
        %v1040 = vld [vmem:[%s971 + $0x220] sm:$0xff]
        %v1041 = vld [vmem:[%s971 + $0x228] sm:$0xff]
        %v1042 = vld [vmem:[%s971 + $0x230] sm:$0xff]
        %v1043 = vld [vmem:[%s971 + $0x238] sm:$0xff]
        %v1044 = vld [vmem:[%s971 + $0x240] sm:$0xff]
        %v1045 = vld [vmem:[%s971 + $0x248] sm:$0xff]
        %v1046 = vld [vmem:[%s971 + $0x250] sm:$0xff]
        %v1047 = vld [vmem:[%s971 + $0x258] sm:$0xff]
        %v1048 = vld [vmem:[%s971 + $0x260] sm:$0xff]
        %v1049 = vld [vmem:[%s971 + $0x268] sm:$0xff]
        %v1050 = vld [vmem:[%s971 + $0x270] sm:$0xff]
        %v1051 = vld [vmem:[%s971 + $0x278] sm:$0xff]
        %v1052 = vld [vmem:[%s971 + $0x280] sm:$0xff]
        %v1053 = vld [vmem:[%s971 + $0x288] sm:$0xff]
        %v1054 = vld [vmem:[%s971 + $0x290] sm:$0xff]
        %v1055 = vld [vmem:[%s971 + $0x298] sm:$0xff]
        %v1056 = vld [vmem:[%s971 + $0x2a0] sm:$0xff]
        %v1057 = vld [vmem:[%s971 + $0x2a8] sm:$0xff]
        %v1058 = vld [vmem:[%s971 + $0x2b0] sm:$0xff]
        %v1059 = vld [vmem:[%s971 + $0x2b8] sm:$0xff]
        %v1060 = vld [vmem:[%s971 + $0x2c0] sm:$0xff]
        %v1061 = vld [vmem:[%s971 + $0x2c8] sm:$0xff]
        %v1062 = vld [vmem:[%s971 + $0x2d0] sm:$0xff]
        %v1063 = vld [vmem:[%s971 + $0x2d8] sm:$0xff]
        %v1064 = vld [vmem:[%s971 + $0x2e0] sm:$0xff]
        %v1065 = vld [vmem:[%s971 + $0x2e8] sm:$0xff]
        %v1066 = vld [vmem:[%s971 + $0x2f0] sm:$0xff]
        %v1067 = vld [vmem:[%s971 + $0x2f8] sm:$0xff]
        %v1068 = vld [vmem:[%s971 + $0x300] sm:$0xff]
        %v1069 = vld [vmem:[%s971 + $0x308] sm:$0xff]
        %v1070 = vld [vmem:[%s971 + $0x310] sm:$0xff]
        %v1071 = vld [vmem:[%s971 + $0x318] sm:$0xff]
        %v1072 = vld [vmem:[%s971 + $0x320] sm:$0xff]
        %v1073 = vld [vmem:[%s971 + $0x328] sm:$0xff]
        %v1074 = vld [vmem:[%s971 + $0x330] sm:$0xff]
        %v1075 = vld [vmem:[%s971 + $0x338] sm:$0xff]
        %v1076 = vld [vmem:[%s971 + $0x340] sm:$0xff]
        %v1077 = vld [vmem:[%s971 + $0x348] sm:$0xff]
        %v1078 = vld [vmem:[%s971 + $0x350] sm:$0xff]
        %v1079 = vld [vmem:[%s971 + $0x358] sm:$0xff]
        %v1080 = vld [vmem:[%s971 + $0x360] sm:$0xff]
        %v1081 = vld [vmem:[%s971 + $0x368] sm:$0xff]
        %v1082 = vld [vmem:[%s971 + $0x370] sm:$0xff]
        %v1083 = vld [vmem:[%s971 + $0x378] sm:$0xff]
        %v1084 = vld [vmem:[%s971 + $0x380] sm:$0xff]
        %v1085 = vld [vmem:[%s971 + $0x388] sm:$0xff]
        %v1086 = vld [vmem:[%s971 + $0x390] sm:$0xff]
        %v1087 = vld [vmem:[%s971 + $0x398] sm:$0xff]
        %v1088 = vld [vmem:[%s971 + $0x3a0] sm:$0xff]
        %v1089 = vld [vmem:[%s971 + $0x3a8] sm:$0xff]
        %v1090 = vld [vmem:[%s971 + $0x3b0] sm:$0xff]
        %v1091 = vld [vmem:[%s971 + $0x3b8] sm:$0xff]
        %v1092 = vld [vmem:[%s971 + $0x3c0] sm:$0xff]
        %v1093 = vld [vmem:[%s971 + $0x3c8] sm:$0xff]
        %v1094 = vld [vmem:[%s971 + $0x3d0] sm:$0xff]
        %v1095 = vld [vmem:[%s971 + $0x3d8] sm:$0xff]
        %v1096 = vld [vmem:[%s971 + $0x3e0] sm:$0xff]
        %v1097 = vld [vmem:[%s971 + $0x3e8] sm:$0xff]
        %v1098 = vld [vmem:[%s971 + $0x3f0] sm:$0xff]
        %v1099 = vld [vmem:[%s971 + $0x3f8] sm:$0xff]
        %v1100 = vld [vmem:[%s971 + $0x400] sm:$0xff]
        %v1101 = vld [vmem:[%s971 + $0x408] sm:$0xff]
        %v1102 = vld [vmem:[%s971 + $0x410] sm:$0xff]
        %v1103 = vld [vmem:[%s971 + $0x418] sm:$0xff]
        %v1104 = vld [vmem:[%s971 + $0x420] sm:$0xff]
        %v1105 = vld [vmem:[%s971 + $0x428] sm:$0xff]
        %v1106 = vld [vmem:[%s971 + $0x430] sm:$0xff]
        %v1107 = vld [vmem:[%s971 + $0x438] sm:$0xff]
        %v1108 = vld [vmem:[%s971 + $0x440] sm:$0xff]
        %v1109 = vld [vmem:[%s971 + $0x448] sm:$0xff]
        %v1110 = vld [vmem:[%s971 + $0x450] sm:$0xff]
        %v1111 = vld [vmem:[%s971 + $0x458] sm:$0xff]
        %v1112 = vld [vmem:[%s971 + $0x460] sm:$0xff]
        %v1113 = vld [vmem:[%s971 + $0x468] sm:$0xff]
        %v1114 = vld [vmem:[%s971 + $0x470] sm:$0xff]
        %v1115 = vld [vmem:[%s971 + $0x478] sm:$0xff]
        %v1116 = vld [vmem:[%s971 + $0x480] sm:$0xff]
        %v1117 = vld [vmem:[%s971 + $0x488] sm:$0xff]
        %v1118 = vld [vmem:[%s971 + $0x490] sm:$0xff]
        %v1119 = vld [vmem:[%s971 + $0x498] sm:$0xff]
        %v1120 = vld [vmem:[%s971 + $0x4a0] sm:$0xff]
        %v1121 = vld [vmem:[%s971 + $0x4a8] sm:$0xff]
        %v1122 = vld [vmem:[%s971 + $0x4b0] sm:$0xff]
        %v1123 = vld [vmem:[%s971 + $0x4b8] sm:$0xff]
        %v1124 = vld [vmem:[%s971 + $0x4c0] sm:$0xff]
        %v1125 = vld [vmem:[%s971 + $0x4c8] sm:$0xff]
        %v1126 = vld [vmem:[%s971 + $0x4d0] sm:$0xff]
        %v1127 = vld [vmem:[%s971 + $0x4d8] sm:$0xff]
        %v1128 = vld [vmem:[%s971 + $0x4e0] sm:$0xff]
        %v1129 = vld [vmem:[%s971 + $0x4e8] sm:$0xff]
        %v1130 = vld [vmem:[%s971 + $0x4f0] sm:$0xff]
        %v1131 = vld [vmem:[%s971 + $0x4f8] sm:$0xff]
        %v1132 = vld [vmem:[%s971 + $0x500] sm:$0xff]
        %v1133 = vld [vmem:[%s971 + $0x508] sm:$0xff]
        %v1134 = vld [vmem:[%s971 + $0x510] sm:$0xff]
        %v1135 = vld [vmem:[%s971 + $0x518] sm:$0xff]
        %v1136 = vld [vmem:[%s971 + $0x520] sm:$0xff]
        %v1137 = vld [vmem:[%s971 + $0x528] sm:$0xff]
        %v1138 = vld [vmem:[%s971 + $0x530] sm:$0xff]
        %v1139 = vld [vmem:[%s971 + $0x538] sm:$0xff]
        %v1140 = vld [vmem:[%s971 + $0x540] sm:$0xff]
        %v1141 = vld [vmem:[%s971 + $0x548] sm:$0xff]
        %v1142 = vld [vmem:[%s971 + $0x550] sm:$0xff]
        %v1143 = vld [vmem:[%s971 + $0x558] sm:$0xff]
        %v1144 = vld [vmem:[%s971 + $0x560] sm:$0xff]
        %v1145 = vld [vmem:[%s971 + $0x568] sm:$0xff]
        %v1146 = vld [vmem:[%s971 + $0x570] sm:$0xff]
        %v1147 = vld [vmem:[%s971 + $0x578] sm:$0xff]
        %v1148 = vld [vmem:[%s971 + $0x580] sm:$0xff]
        %v1149 = vld [vmem:[%s971 + $0x588] sm:$0xff]
        %v1150 = vld [vmem:[%s971 + $0x590] sm:$0xff]
        %v1151 = vld [vmem:[%s971 + $0x598] sm:$0xff]
        %v1152 = vld [vmem:[%s971 + $0x5a0] sm:$0xff]
        %v1153 = vld [vmem:[%s971 + $0x5a8] sm:$0xff]
        %v1154 = vld [vmem:[%s971 + $0x5b0] sm:$0xff]
        %v1155 = vld [vmem:[%s971 + $0x5b8] sm:$0xff]
        %v1156 = vld [vmem:[%s971 + $0x5c0] sm:$0xff]
        %v1157 = vld [vmem:[%s971 + $0x5c8] sm:$0xff]
        %v1158 = vld [vmem:[%s971 + $0x5d0] sm:$0xff]
        %v1159 = vld [vmem:[%s971 + $0x5d8] sm:$0xff]
        %v1160 = vld [vmem:[%s971 + $0x5e0] sm:$0xff]
        %v1161 = vld [vmem:[%s971 + $0x5e8] sm:$0xff]
        %v1162 = vld [vmem:[%s971 + $0x5f0] sm:$0xff]
        %v1163 = vld [vmem:[%s971 + $0x5f8] sm:$0xff]
        %s1164 = scalar_lea.vmem [#allocation8], 2
        %v1165 = vld [vmem:[%s1164] sm:$0x3]
        %v1167 = vlaneseq
        %v1168 = vshrl.u32 %v1167, 7
        %v1169 = vsub.s32 0, %v1168
        %v1170 = vrot.slane %v1165, %v1169
        %v1171 = vlaneseq
        %v1172 = vshrl.u32 %v1171, 7
        %v1173 = vsub.s32 1, %v1172
        %v1174 = vrot.slane %v1165, %v1173
        %v1181 = vrot.slane %v931, 7
        %v1182 = vrot.slane %v933, 7
        %v1183 = vsel %vm649, %v1181, %v1182
        %v1184 = vrot.slane %v932, 7
        %v1185 = vrot.slane %v934, 7
        %v1186 = vsel %vm649, %v1184, %v1185
        %v1187 = vrot.slane %v949, 7
        %v1188 = vrot.slane %v952, 7
        %v1189 = vsel %vm649, %v1187, %v1188
        %v1190 = vrot.slane %v950, 7
        %v1191 = vrot.slane %v954, 7
        %v1192 = vsel %vm649, %v1190, %v1191
        %v1193 = vrot.slane %v961, 7
        %v1194 = vrot.slane %v964, 7
        %v1195 = vsel %vm649, %v1193, %v1194
        %v1196 = vrot.slane %v962, 7
        %v1197 = vrot.slane %v966, 7
        %v1198 = vsel %vm649, %v1196, %v1197
        %v1199 = vrot.slane %v935, 7
        %v1200 = vsel %vm649, %v1182, %v1199
        %v1201 = vrot.slane %v936, 7
        %v1202 = vsel %vm649, %v1185, %v1201
        %v1203 = vrot.slane %v951, 7
        %v1204 = vsel %vm649, %v1188, %v1203
        %v1205 = vrot.slane %v953, 7
        %v1206 = vsel %vm649, %v1191, %v1205
        %v1207 = vrot.slane %v968, 7
        %v1208 = vsel %vm649, %v1194, %v1207
        %v1209 = vrot.slane %v970, 7
        %v1210 = vsel %vm649, %v1197, %v1209
        %1223 = vmatprep.subr.mxu0 %v973
        %1224 = vmatpush1.msra.mxu0 %v972
        %1225 = vmatprep.subr.mxu0 %v975
        %1226 = vmatpush1.msra.mxu0 %v974
        %1227 = vmatprep.subr.mxu0 %v977
        %1228 = vmatpush1.msra.mxu0 %v976
        %1229 = vmatprep.subr.mxu0 %v979
        %1230 = vmatpush1.msra.mxu0 %v978
        %1231 = vmatprep.subr.mxu0 %v981
        %1232 = vmatpush1.msra.mxu0 %v980
        %1233 = vmatprep.subr.mxu0 %v983
        %1234 = vmatpush1.msra.mxu0 %v982
        %1235 = vmatprep.subr.mxu0 %v985
        %1236 = vmatpush1.msra.mxu0 %v984
        %1237 = vmatprep.subr.mxu0 %v987
        %1238 = vmatpush1.msra.mxu0 %v986
        %1239 = vmatprep.subr.mxu0 %v989
        %1240 = vmatpush1.msra.mxu0 %v988
        %1241 = vmatprep.subr.mxu0 %v991
        %1242 = vmatpush1.msra.mxu0 %v990
        %1243 = vmatprep.subr.mxu0 %v993
        %1244 = vmatpush1.msra.mxu0 %v992
        %1245 = vmatprep.subr.mxu0 %v995
        %1246 = vmatpush1.msra.mxu0 %v994
        %1247 = vmatprep.subr.mxu0 %v997
        %1248 = vmatpush1.msra.mxu0 %v996
        %1249 = vmatprep.subr.mxu0 %v999
        %1250 = vmatpush1.msra.mxu0 %v998
        %1251 = vmatprep.subr.mxu0 %v1001
        %1252 = vmatpush1.msra.mxu0 %v1000
        %1253 = vmatprep.subr.mxu0 %v1003
        %1254 = vmatpush1.msra.mxu0 %v1002
        %1255 = vmatprep.subr.mxu0 %v1005
        %1256 = vmatpush1.msra.mxu0 %v1004
        %1257 = vmatprep.subr.mxu0 %v1007
        %1258 = vmatpush1.msra.mxu0 %v1006
        %1259 = vmatprep.subr.mxu0 %v1009
        %1260 = vmatpush1.msra.mxu0 %v1008
        %1261 = vmatprep.subr.mxu0 %v1011
        %1262 = vmatpush1.msra.mxu0 %v1010
        %1263 = vmatprep.subr.mxu0 %v1013
        %1264 = vmatpush1.msra.mxu0 %v1012
        %1265 = vmatprep.subr.mxu0 %v1015
        %1266 = vmatpush1.msra.mxu0 %v1014
        %1267 = vmatprep.subr.mxu0 %v1017
        %1268 = vmatpush1.msra.mxu0 %v1016
        %1269 = vmatprep.subr.mxu0 %v1019
        %1270 = vmatpush1.msra.mxu0 %v1018
        %1271 = vmatprep.subr.mxu0 %v1021
        %1272 = vmatpush1.msra.mxu0 %v1020
        %1273 = vmatprep.subr.mxu0 %v1023
        %1274 = vmatpush1.msra.mxu0 %v1022
        %1275 = vmatprep.subr.mxu0 %v1025
        %1276 = vmatpush1.msra.mxu0 %v1024
        %1277 = vmatprep.subr.mxu0 %v1027
        %1278 = vmatpush1.msra.mxu0 %v1026
        %1279 = vmatprep.subr.mxu0 %v1029
        %1280 = vmatpush1.msra.mxu0 %v1028
        %1281 = vmatprep.subr.mxu0 %v1031
        %1282 = vmatpush1.msra.mxu0 %v1030
        %1283 = vmatprep.subr.mxu0 %v1033
        %1284 = vmatpush1.msra.mxu0 %v1032
        %1285 = vmatprep.subr.mxu0 %v1035
        %1286 = vmatpush1.msra.mxu0 %v1034
        %1287 = vmatprep.mubr.f32.mxu0 %v1186
        %1288 = vmatmul.mubr.f32.gmra.mrb[0].mxu0 %v1183
        %v1289 = vpop.f32.mrb[0].mxu0
        %v1290 = vadd.f32 %v1170, %v1289
        %v1291 = vpop.f32.mrb[0].mxu0
        %v1292 = vadd.f32 %v1174, %v1291
        %1293 = vmatprep.mubr.f32.mxu0 %v1202
        %1294 = vmatmul.mubr.f32.gmra.mrb[0].mxu0 %v1200
        %v1295 = vpop.f32.mrb[0].mxu0
        %v1296 = vadd.f32 %v1170, %v1295
        %v1297 = vpop.f32.mrb[0].mxu0
        %v1298 = vadd.f32 %v1174, %v1297
        %1299 = vdwg.mxu0
        %1300 = vmatprep.subr.mxu0 %v1037
        %1301 = vmatpush1.msra.mxu0 %v1036
        %1302 = vmatprep.subr.mxu0 %v1039
        %1303 = vmatpush1.msra.mxu0 %v1038
        %1304 = vmatprep.subr.mxu0 %v1041
        %1305 = vmatpush1.msra.mxu0 %v1040
        %1306 = vmatprep.subr.mxu0 %v1043
        %1307 = vmatpush1.msra.mxu0 %v1042
        %1308 = vmatprep.subr.mxu0 %v1045
        %1309 = vmatpush1.msra.mxu0 %v1044
        %1310 = vmatprep.subr.mxu0 %v1047
        %1311 = vmatpush1.msra.mxu0 %v1046
        %1312 = vmatprep.subr.mxu0 %v1049
        %1313 = vmatpush1.msra.mxu0 %v1048
        %1314 = vmatprep.subr.mxu0 %v1051
        %1315 = vmatpush1.msra.mxu0 %v1050
        %1316 = vmatprep.subr.mxu0 %v1053
        %1317 = vmatpush1.msra.mxu0 %v1052
        %1318 = vmatprep.subr.mxu0 %v1055
        %1319 = vmatpush1.msra.mxu0 %v1054
        %1320 = vmatprep.subr.mxu0 %v1057
        %1321 = vmatpush1.msra.mxu0 %v1056
        %1322 = vmatprep.subr.mxu0 %v1059
        %1323 = vmatpush1.msra.mxu0 %v1058
        %1324 = vmatprep.subr.mxu0 %v1061
        %1325 = vmatpush1.msra.mxu0 %v1060
        %1326 = vmatprep.subr.mxu0 %v1063
        %1327 = vmatpush1.msra.mxu0 %v1062
        %1328 = vmatprep.subr.mxu0 %v1065
        %1329 = vmatpush1.msra.mxu0 %v1064
        %1330 = vmatprep.subr.mxu0 %v1067
        %1331 = vmatpush1.msra.mxu0 %v1066
        %1332 = vmatprep.subr.mxu0 %v1069
        %1333 = vmatpush1.msra.mxu0 %v1068
        %1334 = vmatprep.subr.mxu0 %v1071
        %1335 = vmatpush1.msra.mxu0 %v1070
        %1336 = vmatprep.subr.mxu0 %v1073
        %1337 = vmatpush1.msra.mxu0 %v1072
        %1338 = vmatprep.subr.mxu0 %v1075
        %1339 = vmatpush1.msra.mxu0 %v1074
        %1340 = vmatprep.subr.mxu0 %v1077
        %1341 = vmatpush1.msra.mxu0 %v1076
        %1342 = vmatprep.subr.mxu0 %v1079
        %1343 = vmatpush1.msra.mxu0 %v1078
        %1344 = vmatprep.subr.mxu0 %v1081
        %1345 = vmatpush1.msra.mxu0 %v1080
        %1346 = vmatprep.subr.mxu0 %v1083
        %1347 = vmatpush1.msra.mxu0 %v1082
        %1348 = vmatprep.subr.mxu0 %v1085
        %1349 = vmatpush1.msra.mxu0 %v1084
        %1350 = vmatprep.subr.mxu0 %v1087
        %1351 = vmatpush1.msra.mxu0 %v1086
        %1352 = vmatprep.subr.mxu0 %v1089
        %1353 = vmatpush1.msra.mxu0 %v1088
        %1354 = vmatprep.subr.mxu0 %v1091
        %1355 = vmatpush1.msra.mxu0 %v1090
        %1356 = vmatprep.subr.mxu0 %v1093
        %1357 = vmatpush1.msra.mxu0 %v1092
        %1358 = vmatprep.subr.mxu0 %v1095
        %1359 = vmatpush1.msra.mxu0 %v1094
        %1360 = vmatprep.subr.mxu0 %v1097
        %1361 = vmatpush1.msra.mxu0 %v1096
        %1362 = vmatprep.subr.mxu0 %v1099
        %1363 = vmatpush1.msra.mxu0 %v1098
        %1364 = vmatprep.mubr.f32.mxu0 %v1192
        %1365 = vmatmul.mubr.f32.gmra.mrb[0].mxu0 %v1189
        %v1366 = vpop.f32.mrb[0].mxu0
        %v1367 = vadd.f32 %v1290, %v1366
        %v1368 = vpop.f32.mrb[0].mxu0
        %v1369 = vadd.f32 %v1292, %v1368
        %1370 = vmatprep.mubr.f32.mxu0 %v1206
        %1371 = vmatmul.mubr.f32.gmra.mrb[0].mxu0 %v1204
        %v1372 = vpop.f32.mrb[0].mxu0
        %v1373 = vadd.f32 %v1296, %v1372
        %v1374 = vpop.f32.mrb[0].mxu0
        %v1375 = vadd.f32 %v1298, %v1374
        %1376 = vdwg.mxu0
        %1377 = vmatprep.subr.mxu0 %v1101
        %1378 = vmatpush1.msra.mxu0 %v1100
        %1379 = vmatprep.subr.mxu0 %v1103
        %1380 = vmatpush1.msra.mxu0 %v1102
        %1381 = vmatprep.subr.mxu0 %v1105
        %1382 = vmatpush1.msra.mxu0 %v1104
        %1383 = vmatprep.subr.mxu0 %v1107
        %1384 = vmatpush1.msra.mxu0 %v1106
        %1385 = vmatprep.subr.mxu0 %v1109
        %1386 = vmatpush1.msra.mxu0 %v1108
        %1387 = vmatprep.subr.mxu0 %v1111
        %1388 = vmatpush1.msra.mxu0 %v1110
        %1389 = vmatprep.subr.mxu0 %v1113
        %1390 = vmatpush1.msra.mxu0 %v1112
        %1391 = vmatprep.subr.mxu0 %v1115
        %1392 = vmatpush1.msra.mxu0 %v1114
        %1393 = vmatprep.subr.mxu0 %v1117
        %1394 = vmatpush1.msra.mxu0 %v1116
        %1395 = vmatprep.subr.mxu0 %v1119
        %1396 = vmatpush1.msra.mxu0 %v1118
        %1397 = vmatprep.subr.mxu0 %v1121
        %1398 = vmatpush1.msra.mxu0 %v1120
        %1399 = vmatprep.subr.mxu0 %v1123
        %1400 = vmatpush1.msra.mxu0 %v1122
        %1401 = vmatprep.subr.mxu0 %v1125
        %1402 = vmatpush1.msra.mxu0 %v1124
        %1403 = vmatprep.subr.mxu0 %v1127
        %1404 = vmatpush1.msra.mxu0 %v1126
        %1405 = vmatprep.subr.mxu0 %v1129
        %1406 = vmatpush1.msra.mxu0 %v1128
        %1407 = vmatprep.subr.mxu0 %v1131
        %1408 = vmatpush1.msra.mxu0 %v1130
        %1409 = vmatprep.subr.mxu0 %v1133
        %1410 = vmatpush1.msra.mxu0 %v1132
        %1411 = vmatprep.subr.mxu0 %v1135
        %1412 = vmatpush1.msra.mxu0 %v1134
        %1413 = vmatprep.subr.mxu0 %v1137
        %1414 = vmatpush1.msra.mxu0 %v1136
        %1415 = vmatprep.subr.mxu0 %v1139
        %1416 = vmatpush1.msra.mxu0 %v1138
        %1417 = vmatprep.subr.mxu0 %v1141
        %1418 = vmatpush1.msra.mxu0 %v1140
        %1419 = vmatprep.subr.mxu0 %v1143
        %1420 = vmatpush1.msra.mxu0 %v1142
        %1421 = vmatprep.subr.mxu0 %v1145
        %1422 = vmatpush1.msra.mxu0 %v1144
        %1423 = vmatprep.subr.mxu0 %v1147
        %1424 = vmatpush1.msra.mxu0 %v1146
        %1425 = vmatprep.subr.mxu0 %v1149
        %1426 = vmatpush1.msra.mxu0 %v1148
        %1427 = vmatprep.subr.mxu0 %v1151
        %1428 = vmatpush1.msra.mxu0 %v1150
        %1429 = vmatprep.subr.mxu0 %v1153
        %1430 = vmatpush1.msra.mxu0 %v1152
        %1431 = vmatprep.subr.mxu0 %v1155
        %1432 = vmatpush1.msra.mxu0 %v1154
        %1433 = vmatprep.subr.mxu0 %v1157
        %1434 = vmatpush1.msra.mxu0 %v1156
        %1435 = vmatprep.subr.mxu0 %v1159
        %1436 = vmatpush1.msra.mxu0 %v1158
        %1437 = vmatprep.subr.mxu0 %v1161
        %1438 = vmatpush1.msra.mxu0 %v1160
        %1439 = vmatprep.subr.mxu0 %v1163
        %1440 = vmatpush1.msra.mxu0 %v1162
        %1441 = vmatprep.mubr.f32.mxu0 %v1198
        %1442 = vmatmul.mubr.f32.gmra.mrb[0].mxu0 %v1195
        %v1443 = vpop.f32.mrb[0].mxu0
        %v1444 = vadd.f32 %v1367, %v1443
        %v1445 = vpop.f32.mrb[0].mxu0
        %v1446 = vadd.f32 %v1369, %v1445
        %1447 = vmatprep.mubr.f32.mxu0 %v1210
        %1448 = vmatmul.mubr.f32.gmra.mrb[0].mxu0 %v1208
        %v1449 = vpop.f32.mrb[0].mxu0
        %v1450 = vadd.f32 %v1373, %v1449
        %v1451 = vpop.f32.mrb[0].mxu0
        %v1452 = vadd.f32 %v1375, %v1451
        %1453 = vdwg.mxu0
        %v1454 = vadd.f32 %v1444, %v1450
        %v1455 = vrot.slane %v1454, 4
        %v1456 = vadd.f32 %v1454, %v1455
        %v1457 = vrot.slane %v1456, 2
        %v1458 = vadd.f32 %v1456, %v1457
        %v1459 = vrot.slane %v1458, 1
        %v1460 = vadd.f32 %v1458, %v1459
        %v1461 = vadd.f32 %v1446, %v1452
        %v1462 = vrot.slane %v1461, 4
        %v1463 = vadd.f32 %v1461, %v1462
        %v1464 = vrot.slane %v1463, 2
        %v1465 = vadd.f32 %v1463, %v1464
        %v1466 = vrot.slane %v1465, 1
        %v1467 = vadd.f32 %v1465, %v1466
        %v1468 = vld [vmem:[#allocation9] sm:$0xff]
        %v1469 = vld [vmem:[#allocation9 + $0x8] sm:$0xff]
        %v1470 = vld [vmem:[#allocation9 + $0x10] sm:$0xff]
        %v1471 = vld [vmem:[#allocation9 + $0x18] sm:$0xff]
        %v1472 = vld [vmem:[#allocation9 + $0x20] sm:$0xff]
        %v1473 = vld [vmem:[#allocation9 + $0x28] sm:$0xff]
        %v1474 = vld [vmem:[#allocation9 + $0x30] sm:$0xff]
        %v1475 = vld [vmem:[#allocation9 + $0x38] sm:$0xff]
        %v1476 = vld [vmem:[#allocation9 + $0x40] sm:$0xff]
        %v1477 = vld [vmem:[#allocation9 + $0x48] sm:$0xff]
        %v1478 = vld [vmem:[#allocation9 + $0x50] sm:$0xff]
        %v1479 = vld [vmem:[#allocation9 + $0x58] sm:$0xff]
        %v1480 = vld [vmem:[#allocation9 + $0x60] sm:$0xff]
        %v1481 = vld [vmem:[#allocation9 + $0x68] sm:$0xff]
        %v1482 = vld [vmem:[#allocation9 + $0x70] sm:$0xff]
        %v1483 = vld [vmem:[#allocation9 + $0x78] sm:$0xff]
        %v1484 = vld [vmem:[#allocation9 + $0x80] sm:$0xff]
        %v1485 = vld [vmem:[#allocation9 + $0x88] sm:$0xff]
        %v1486 = vld [vmem:[#allocation9 + $0x90] sm:$0xff]
        %v1487 = vld [vmem:[#allocation9 + $0x98] sm:$0xff]
        %v1488 = vld [vmem:[#allocation9 + $0xa0] sm:$0xff]
        %v1489 = vld [vmem:[#allocation9 + $0xa8] sm:$0xff]
        %v1490 = vld [vmem:[#allocation9 + $0xb0] sm:$0xff]
        %v1491 = vld [vmem:[#allocation9 + $0xb8] sm:$0xff]
        %v1492 = vld [vmem:[#allocation9 + $0xc0] sm:$0xff]
        %v1493 = vld [vmem:[#allocation9 + $0xc8] sm:$0xff]
        %v1494 = vld [vmem:[#allocation9 + $0xd0] sm:$0xff]
        %v1495 = vld [vmem:[#allocation9 + $0xd8] sm:$0xff]
        %v1496 = vld [vmem:[#allocation9 + $0xe0] sm:$0xff]
        %v1497 = vld [vmem:[#allocation9 + $0xe8] sm:$0xff]
        %v1498 = vld [vmem:[#allocation9 + $0xf0] sm:$0xff]
        %v1499 = vld [vmem:[#allocation9 + $0xf8] sm:$0xff]
        %v1500 = vld [vmem:[#allocation11] sm:$0x1]
        %1501 = vmatprep.subr.mxu0 0.0
        %1502 = vmatpush1.msra.mxu0 %v1468
        %1503 = vmatprep.subr.mxu0 0.0
        %1504 = vmatpush1.msra.mxu0 %v1469
        %1505 = vmatprep.subr.mxu0 0.0
        %1506 = vmatpush1.msra.mxu0 %v1470
        %1507 = vmatprep.subr.mxu0 0.0
        %1508 = vmatpush1.msra.mxu0 %v1471
        %1509 = vmatprep.subr.mxu0 0.0
        %1510 = vmatpush1.msra.mxu0 %v1472
        %1511 = vmatprep.subr.mxu0 0.0
        %1512 = vmatpush1.msra.mxu0 %v1473
        %1513 = vmatprep.subr.mxu0 0.0
        %1514 = vmatpush1.msra.mxu0 %v1474
        %1515 = vmatprep.subr.mxu0 0.0
        %1516 = vmatpush1.msra.mxu0 %v1475
        %1517 = vmatprep.subr.mxu0 0.0
        %1518 = vmatpush1.msra.mxu0 %v1476
        %1519 = vmatprep.subr.mxu0 0.0
        %1520 = vmatpush1.msra.mxu0 %v1477
        %1521 = vmatprep.subr.mxu0 0.0
        %1522 = vmatpush1.msra.mxu0 %v1478
        %1523 = vmatprep.subr.mxu0 0.0
        %1524 = vmatpush1.msra.mxu0 %v1479
        %1525 = vmatprep.subr.mxu0 0.0
        %1526 = vmatpush1.msra.mxu0 %v1480
        %1527 = vmatprep.subr.mxu0 0.0
        %1528 = vmatpush1.msra.mxu0 %v1481
        %1529 = vmatprep.subr.mxu0 0.0
        %1530 = vmatpush1.msra.mxu0 %v1482
        %1531 = vmatprep.subr.mxu0 0.0
        %1532 = vmatpush1.msra.mxu0 %v1483
        %1533 = vmatprep.subr.mxu0 0.0
        %1534 = vmatpush1.msra.mxu0 %v1484
        %1535 = vmatprep.subr.mxu0 0.0
        %1536 = vmatpush1.msra.mxu0 %v1485
        %1537 = vmatprep.subr.mxu0 0.0
        %1538 = vmatpush1.msra.mxu0 %v1486
        %1539 = vmatprep.subr.mxu0 0.0
        %1540 = vmatpush1.msra.mxu0 %v1487
        %1541 = vmatprep.subr.mxu0 0.0
        %1542 = vmatpush1.msra.mxu0 %v1488
        %1543 = vmatprep.subr.mxu0 0.0
        %1544 = vmatpush1.msra.mxu0 %v1489
        %1545 = vmatprep.subr.mxu0 0.0
        %1546 = vmatpush1.msra.mxu0 %v1490
        %1547 = vmatprep.subr.mxu0 0.0
        %1548 = vmatpush1.msra.mxu0 %v1491
        %1549 = vmatprep.subr.mxu0 0.0
        %1550 = vmatpush1.msra.mxu0 %v1492
        %1551 = vmatprep.subr.mxu0 0.0
        %1552 = vmatpush1.msra.mxu0 %v1493
        %1553 = vmatprep.subr.mxu0 0.0
        %1554 = vmatpush1.msra.mxu0 %v1494
        %1555 = vmatprep.subr.mxu0 0.0
        %1556 = vmatpush1.msra.mxu0 %v1495
        %1557 = vmatprep.subr.mxu0 0.0
        %1558 = vmatpush1.msra.mxu0 %v1496
        %1559 = vmatprep.subr.mxu0 0.0
        %1560 = vmatpush1.msra.mxu0 %v1497
        %1561 = vmatprep.subr.mxu0 0.0
        %1562 = vmatpush1.msra.mxu0 %v1498
        %1563 = vmatprep.subr.mxu0 0.0
        %1564 = vmatpush1.msra.mxu0 %v1499
        %1565 = vmatprep.mubr.f32.mxu0 %v1467
        %1566 = vmatmul.mubr.f32.gmra.mrb[0].mxu0 %v1460
        %v1567 = vpop.f32.mrb[0].mxu0
        %v1568 = vadd.f32 %v1500, %v1567
        %v1569 = vpop.f32.mrb[0].mxu0
        %1570 = vdwg.mxu0
        %v1571 = vmax.f32 %v1568, 0.0
        %v1572 = vld [vmem:[#allocation12] sm:$0xff]
        %v1573 = vld [vmem:[#allocation12 + $0x8] sm:$0xff]
        %v1574 = vld [vmem:[#allocation12 + $0x10] sm:$0xff]
        %v1575 = vld [vmem:[#allocation12 + $0x18] sm:$0xff]
        %v1576 = vld [vmem:[#allocation12 + $0x20] sm:$0xff]
        %v1577 = vld [vmem:[#allocation12 + $0x28] sm:$0xff]
        %v1578 = vld [vmem:[#allocation12 + $0x30] sm:$0xff]
        %v1579 = vld [vmem:[#allocation12 + $0x38] sm:$0xff]
        %v1580 = vld [vmem:[#allocation12 + $0x40] sm:$0xff]
        %v1581 = vld [vmem:[#allocation12 + $0x48] sm:$0xff]
        %v1582 = vld [vmem:[#allocation12 + $0x50] sm:$0xff]
        %v1583 = vld [vmem:[#allocation12 + $0x58] sm:$0xff]
        %v1584 = vld [vmem:[#allocation12 + $0x60] sm:$0xff]
        %v1585 = vld [vmem:[#allocation12 + $0x68] sm:$0xff]
        %v1586 = vld [vmem:[#allocation12 + $0x70] sm:$0xff]
        %v1587 = vld [vmem:[#allocation12 + $0x78] sm:$0xff]
        %v1588 = vld [vmem:[#allocation12 + $0x80] sm:$0xff]
        %v1589 = vld [vmem:[#allocation12 + $0x88] sm:$0xff]
        %v1590 = vld [vmem:[#allocation12 + $0x90] sm:$0xff]
        %v1591 = vld [vmem:[#allocation12 + $0x98] sm:$0xff]
        %v1592 = vld [vmem:[#allocation12 + $0xa0] sm:$0xff]
        %v1593 = vld [vmem:[#allocation12 + $0xa8] sm:$0xff]
        %v1594 = vld [vmem:[#allocation12 + $0xb0] sm:$0xff]
        %v1595 = vld [vmem:[#allocation12 + $0xb8] sm:$0xff]
        %v1596 = vld [vmem:[#allocation12 + $0xc0] sm:$0xff]
        %v1597 = vld [vmem:[#allocation12 + $0xc8] sm:$0xff]
        %v1598 = vld [vmem:[#allocation12 + $0xd0] sm:$0xff]
        %v1599 = vld [vmem:[#allocation12 + $0xd8] sm:$0xff]
        %v1600 = vld [vmem:[#allocation12 + $0xe0] sm:$0xff]
        %v1601 = vld [vmem:[#allocation12 + $0xe8] sm:$0xff]
        %v1602 = vld [vmem:[#allocation12 + $0xf0] sm:$0xff]
        %v1603 = vld [vmem:[#allocation12 + $0xf8] sm:$0xff]
        %v1604 = vld [vmem:[#allocation14] sm:$0x3]
        %v1606 = vlaneseq
        %v1607 = vshrl.u32 %v1606, 7
        %v1608 = vsub.s32 0, %v1607
        %v1609 = vrot.slane %v1604, %v1608
        %v1610 = vlaneseq
        %v1611 = vshrl.u32 %v1610, 7
        %v1612 = vsub.s32 1, %v1611
        %v1613 = vrot.slane %v1604, %v1612
        %1616 = vmatprep.subr.mxu0 %v1573
        %1617 = vmatpush1.msra.mxu0 %v1572
        %1618 = vmatprep.subr.mxu0 %v1575
        %1619 = vmatpush1.msra.mxu0 %v1574
        %1620 = vmatprep.subr.mxu0 %v1577
        %1621 = vmatpush1.msra.mxu0 %v1576
        %1622 = vmatprep.subr.mxu0 %v1579
        %1623 = vmatpush1.msra.mxu0 %v1578
        %1624 = vmatprep.subr.mxu0 %v1581
        %1625 = vmatpush1.msra.mxu0 %v1580
        %1626 = vmatprep.subr.mxu0 %v1583
        %1627 = vmatpush1.msra.mxu0 %v1582
        %1628 = vmatprep.subr.mxu0 %v1585
        %1629 = vmatpush1.msra.mxu0 %v1584
        %1630 = vmatprep.subr.mxu0 %v1587
        %1631 = vmatpush1.msra.mxu0 %v1586
        %1632 = vmatprep.subr.mxu0 %v1589
        %1633 = vmatpush1.msra.mxu0 %v1588
        %1634 = vmatprep.subr.mxu0 %v1591
        %1635 = vmatpush1.msra.mxu0 %v1590
        %1636 = vmatprep.subr.mxu0 %v1593
        %1637 = vmatpush1.msra.mxu0 %v1592
        %1638 = vmatprep.subr.mxu0 %v1595
        %1639 = vmatpush1.msra.mxu0 %v1594
        %1640 = vmatprep.subr.mxu0 %v1597
        %1641 = vmatpush1.msra.mxu0 %v1596
        %1642 = vmatprep.subr.mxu0 %v1599
        %1643 = vmatpush1.msra.mxu0 %v1598
        %1644 = vmatprep.subr.mxu0 %v1601
        %1645 = vmatpush1.msra.mxu0 %v1600
        %1646 = vmatprep.subr.mxu0 %v1603
        %1647 = vmatpush1.msra.mxu0 %v1602
        %1648 = vmatprep.subr.mxu0 0.0
        %1649 = vmatpush1.msra.mxu0 0.0
        %1650 = vmatprep.subr.mxu0 0.0
        %1651 = vmatpush1.msra.mxu0 0.0
        %1652 = vmatprep.subr.mxu0 0.0
        %1653 = vmatpush1.msra.mxu0 0.0
        %1654 = vmatprep.subr.mxu0 0.0
        %1655 = vmatpush1.msra.mxu0 0.0
        %1656 = vmatprep.subr.mxu0 0.0
        %1657 = vmatpush1.msra.mxu0 0.0
        %1658 = vmatprep.subr.mxu0 0.0
        %1659 = vmatpush1.msra.mxu0 0.0
        %1660 = vmatprep.subr.mxu0 0.0
        %1661 = vmatpush1.msra.mxu0 0.0
        %1662 = vmatprep.subr.mxu0 0.0
        %1663 = vmatpush1.msra.mxu0 0.0
        %1664 = vmatprep.subr.mxu0 0.0
        %1665 = vmatpush1.msra.mxu0 0.0
        %1666 = vmatprep.subr.mxu0 0.0
        %1667 = vmatpush1.msra.mxu0 0.0
        %1668 = vmatprep.subr.mxu0 0.0
        %1669 = vmatpush1.msra.mxu0 0.0
        %1670 = vmatprep.subr.mxu0 0.0
        %1671 = vmatpush1.msra.mxu0 0.0
        %1672 = vmatprep.subr.mxu0 0.0
        %1673 = vmatpush1.msra.mxu0 0.0
        %1674 = vmatprep.subr.mxu0 0.0
        %1675 = vmatpush1.msra.mxu0 0.0
        %1676 = vmatprep.subr.mxu0 0.0
        %1677 = vmatpush1.msra.mxu0 0.0
        %1678 = vmatprep.subr.mxu0 0.0
        %1679 = vmatpush1.msra.mxu0 0.0
        %1680 = vmatprep.mubr.f32.mxu0 0.0
        %1681 = vmatmul.mubr.f32.gmra.mrb[0].mxu0 %v1571
        %v1682 = vpop.f32.mrb[0].mxu0
        %v1683 = vadd.f32 %v1609, %v1682
        %v1684 = vpop.f32.mrb[0].mxu0
        %v1685 = vadd.f32 %v1613, %v1684
        %1686 = vdwg.mxu0
        %v1687 = vxor.u32 %v1683, 2147483648
        %v1688 = vxor.u32 %v1685, 2147483648
        %v1689 = vmul.f32 %v1687, 1.442695
        %v1690 = vpow.pop %v1689
        %v1691 = vmul.f32 %v1688, 1.442695
        %v1692 = vpow.pop %v1691
        %v1693 = vadd.f32 %v1690, 1.0
        %v1694 = vadd.f32 %v1692, 1.0
        %v1695 = vrcp.pop %v1693
        %v1696 = vmul.f32 1.0, %v1695
        %v1697 = vrcp.pop %v1694
        %v1698 = vmul.f32 1.0, %v1697
        %v1699 = vlaneseq
        %v1700 = vshrl.u32 %v1699, 7
        %v1701 = vsub.s32 0, %v1700
        %v1702 = vrot.slane %v1696, %v1701
        %v1703 = vlaneseq
        %v1704 = vshrl.u32 %v1703, 7
        %v1705 = vsub.s32 0, %v1704
        %v1706 = vrot.slane %v1698, %v1705
        %v1707 = vmul.f32 %v1444, %v1702
        %v1708 = vmul.f32 %v1446, %v1706
        %v1709 = vmul.f32 %v1450, %v1702
        %v1710 = vmul.f32 %v1452, %v1706
        %v1711 = vadd.f32 %v391, %v1707
        %v1712 = vadd.f32 %v392, %v1708
        %v1713 = vadd.f32 %v393, %v1709
        %v1714 = vadd.f32 %v394, %v1710
        %1715 = vst [vmem:[#allocation2 + $0x10] sm:$0xff] %v1711
        %1716 = vst [vmem:[#allocation2 + $0x18] sm:$0xff] %v1712
        %1717 = vst [vmem:[#allocation2 + $0x20] sm:$0xff] %v1713
        %1718 = vst [vmem:[#allocation2 + $0x28] sm:$0xff] %v1714
        %v1719 = vld [vmem:[#allocation2] sm:$0x80]
        %v1720 = vld [vmem:[#allocation2 + $0x8] sm:$0x80]
        %v1721 = vld [vmem:[#allocation2 + $0x10] sm:$0xff]
        %v1722 = vld [vmem:[#allocation2 + $0x18] sm:$0xff]
        %v1723 = vld [vmem:[#allocation2 + $0x20] sm:$0x7f]
        %v1724 = vld [vmem:[#allocation2 + $0x28] sm:$0x7f]
        %v1725 = vld [vmem:[#allocation2 + $0x20] sm:$0xff]
        %v1726 = vld [vmem:[#allocation2 + $0x28] sm:$0xff]
        %v1727 = vld [vmem:[#allocation2 + $0x10] sm:$0xfe]
        %v1728 = vld [vmem:[#allocation2 + $0x18] sm:$0xfe]
        %v1729 = vld [vmem:[#allocation2 + $0x20] sm:$0xff]
        %v1730 = vld [vmem:[#allocation2 + $0x28] sm:$0xff]
        %v1731 = vld [vmem:[#allocation2 + $0x30] sm:$0x1]
        %v1732 = vld [vmem:[#allocation2 + $0x38] sm:$0x1]
        %v1737 = vrot.slane %v1721, 1
        %v1738 = vrot.slane %v1722, 1
        %v1739 = vrot.slane %v1725, 1
        %v1740 = vsel %vm417, %v1737, %v1739
        %v1741 = vrot.slane %v1726, 1
        %v1742 = vsel %vm417, %v1738, %v1741
        %v1749 = vrot.slane %v1727, 2
        %v1750 = vrot.slane %v1728, 2
        %v1751 = vrot.slane %v1729, 2
        %v1752 = vsel %vm430, %v1749, %v1751
        %v1753 = vrot.slane %v1730, 2
        %v1754 = vsel %vm430, %v1750, %v1753
        %v1755 = vrot.slane %v1731, 2
        %v1756 = vsel %vm430, %v1751, %v1755
        %v1757 = vrot.slane %v1732, 2
        %v1758 = vsel %vm430, %v1753, %v1757
        %s1759 = scalar_lea.vmem [#allocation6], 3072
        %v1760 = vld [vmem:[%s1759] sm:$0xff]
        %v1761 = vld [vmem:[%s1759 + $0x8] sm:$0xff]
        %v1762 = vld [vmem:[%s1759 + $0x10] sm:$0xff]
        %v1763 = vld [vmem:[%s1759 + $0x18] sm:$0xff]
        %v1764 = vld [vmem:[%s1759 + $0x20] sm:$0xff]
        %v1765 = vld [vmem:[%s1759 + $0x28] sm:$0xff]
        %v1766 = vld [vmem:[%s1759 + $0x30] sm:$0xff]
        %v1767 = vld [vmem:[%s1759 + $0x38] sm:$0xff]
        %v1768 = vld [vmem:[%s1759 + $0x40] sm:$0xff]
        %v1769 = vld [vmem:[%s1759 + $0x48] sm:$0xff]
        %v1770 = vld [vmem:[%s1759 + $0x50] sm:$0xff]
        %v1771 = vld [vmem:[%s1759 + $0x58] sm:$0xff]
        %v1772 = vld [vmem:[%s1759 + $0x60] sm:$0xff]
        %v1773 = vld [vmem:[%s1759 + $0x68] sm:$0xff]
        %v1774 = vld [vmem:[%s1759 + $0x70] sm:$0xff]
        %v1775 = vld [vmem:[%s1759 + $0x78] sm:$0xff]
        %v1776 = vld [vmem:[%s1759 + $0x80] sm:$0xff]
        %v1777 = vld [vmem:[%s1759 + $0x88] sm:$0xff]
        %v1778 = vld [vmem:[%s1759 + $0x90] sm:$0xff]
        %v1779 = vld [vmem:[%s1759 + $0x98] sm:$0xff]
        %v1780 = vld [vmem:[%s1759 + $0xa0] sm:$0xff]
        %v1781 = vld [vmem:[%s1759 + $0xa8] sm:$0xff]
        %v1782 = vld [vmem:[%s1759 + $0xb0] sm:$0xff]
        %v1783 = vld [vmem:[%s1759 + $0xb8] sm:$0xff]
        %v1784 = vld [vmem:[%s1759 + $0xc0] sm:$0xff]
        %v1785 = vld [vmem:[%s1759 + $0xc8] sm:$0xff]
        %v1786 = vld [vmem:[%s1759 + $0xd0] sm:$0xff]
        %v1787 = vld [vmem:[%s1759 + $0xd8] sm:$0xff]
        %v1788 = vld [vmem:[%s1759 + $0xe0] sm:$0xff]
        %v1789 = vld [vmem:[%s1759 + $0xe8] sm:$0xff]
        %v1790 = vld [vmem:[%s1759 + $0xf0] sm:$0xff]
        %v1791 = vld [vmem:[%s1759 + $0xf8] sm:$0xff]
        %v1792 = vld [vmem:[%s1759 + $0x100] sm:$0xff]
        %v1793 = vld [vmem:[%s1759 + $0x108] sm:$0xff]
        %v1794 = vld [vmem:[%s1759 + $0x110] sm:$0xff]
        %v1795 = vld [vmem:[%s1759 + $0x118] sm:$0xff]
        %v1796 = vld [vmem:[%s1759 + $0x120] sm:$0xff]
        %v1797 = vld [vmem:[%s1759 + $0x128] sm:$0xff]
        %v1798 = vld [vmem:[%s1759 + $0x130] sm:$0xff]
        %v1799 = vld [vmem:[%s1759 + $0x138] sm:$0xff]
        %v1800 = vld [vmem:[%s1759 + $0x140] sm:$0xff]
        %v1801 = vld [vmem:[%s1759 + $0x148] sm:$0xff]
        %v1802 = vld [vmem:[%s1759 + $0x150] sm:$0xff]
        %v1803 = vld [vmem:[%s1759 + $0x158] sm:$0xff]
        %v1804 = vld [vmem:[%s1759 + $0x160] sm:$0xff]
        %v1805 = vld [vmem:[%s1759 + $0x168] sm:$0xff]
        %v1806 = vld [vmem:[%s1759 + $0x170] sm:$0xff]
        %v1807 = vld [vmem:[%s1759 + $0x178] sm:$0xff]
        %v1808 = vld [vmem:[%s1759 + $0x180] sm:$0xff]
        %v1809 = vld [vmem:[%s1759 + $0x188] sm:$0xff]
        %v1810 = vld [vmem:[%s1759 + $0x190] sm:$0xff]
        %v1811 = vld [vmem:[%s1759 + $0x198] sm:$0xff]
        %v1812 = vld [vmem:[%s1759 + $0x1a0] sm:$0xff]
        %v1813 = vld [vmem:[%s1759 + $0x1a8] sm:$0xff]
        %v1814 = vld [vmem:[%s1759 + $0x1b0] sm:$0xff]
        %v1815 = vld [vmem:[%s1759 + $0x1b8] sm:$0xff]
        %v1816 = vld [vmem:[%s1759 + $0x1c0] sm:$0xff]
        %v1817 = vld [vmem:[%s1759 + $0x1c8] sm:$0xff]
        %v1818 = vld [vmem:[%s1759 + $0x1d0] sm:$0xff]
        %v1819 = vld [vmem:[%s1759 + $0x1d8] sm:$0xff]
        %v1820 = vld [vmem:[%s1759 + $0x1e0] sm:$0xff]
        %v1821 = vld [vmem:[%s1759 + $0x1e8] sm:$0xff]
        %v1822 = vld [vmem:[%s1759 + $0x1f0] sm:$0xff]
        %v1823 = vld [vmem:[%s1759 + $0x1f8] sm:$0xff]
        %v1824 = vld [vmem:[%s1759 + $0x200] sm:$0xff]
        %v1825 = vld [vmem:[%s1759 + $0x208] sm:$0xff]
        %v1826 = vld [vmem:[%s1759 + $0x210] sm:$0xff]
        %v1827 = vld [vmem:[%s1759 + $0x218] sm:$0xff]
        %v1828 = vld [vmem:[%s1759 + $0x220] sm:$0xff]
        %v1829 = vld [vmem:[%s1759 + $0x228] sm:$0xff]
        %v1830 = vld [vmem:[%s1759 + $0x230] sm:$0xff]
        %v1831 = vld [vmem:[%s1759 + $0x238] sm:$0xff]
        %v1832 = vld [vmem:[%s1759 + $0x240] sm:$0xff]
        %v1833 = vld [vmem:[%s1759 + $0x248] sm:$0xff]
        %v1834 = vld [vmem:[%s1759 + $0x250] sm:$0xff]
        %v1835 = vld [vmem:[%s1759 + $0x258] sm:$0xff]
        %v1836 = vld [vmem:[%s1759 + $0x260] sm:$0xff]
        %v1837 = vld [vmem:[%s1759 + $0x268] sm:$0xff]
        %v1838 = vld [vmem:[%s1759 + $0x270] sm:$0xff]
        %v1839 = vld [vmem:[%s1759 + $0x278] sm:$0xff]
        %v1840 = vld [vmem:[%s1759 + $0x280] sm:$0xff]
        %v1841 = vld [vmem:[%s1759 + $0x288] sm:$0xff]
        %v1842 = vld [vmem:[%s1759 + $0x290] sm:$0xff]
        %v1843 = vld [vmem:[%s1759 + $0x298] sm:$0xff]
        %v1844 = vld [vmem:[%s1759 + $0x2a0] sm:$0xff]
        %v1845 = vld [vmem:[%s1759 + $0x2a8] sm:$0xff]
        %v1846 = vld [vmem:[%s1759 + $0x2b0] sm:$0xff]
        %v1847 = vld [vmem:[%s1759 + $0x2b8] sm:$0xff]
        %v1848 = vld [vmem:[%s1759 + $0x2c0] sm:$0xff]
        %v1849 = vld [vmem:[%s1759 + $0x2c8] sm:$0xff]
        %v1850 = vld [vmem:[%s1759 + $0x2d0] sm:$0xff]
        %v1851 = vld [vmem:[%s1759 + $0x2d8] sm:$0xff]
        %v1852 = vld [vmem:[%s1759 + $0x2e0] sm:$0xff]
        %v1853 = vld [vmem:[%s1759 + $0x2e8] sm:$0xff]
        %v1854 = vld [vmem:[%s1759 + $0x2f0] sm:$0xff]
        %v1855 = vld [vmem:[%s1759 + $0x2f8] sm:$0xff]
        %v1856 = vld [vmem:[%s1759 + $0x300] sm:$0xff]
        %v1857 = vld [vmem:[%s1759 + $0x308] sm:$0xff]
        %v1858 = vld [vmem:[%s1759 + $0x310] sm:$0xff]
        %v1859 = vld [vmem:[%s1759 + $0x318] sm:$0xff]
        %v1860 = vld [vmem:[%s1759 + $0x320] sm:$0xff]
        %v1861 = vld [vmem:[%s1759 + $0x328] sm:$0xff]
        %v1862 = vld [vmem:[%s1759 + $0x330] sm:$0xff]
        %v1863 = vld [vmem:[%s1759 + $0x338] sm:$0xff]
        %v1864 = vld [vmem:[%s1759 + $0x340] sm:$0xff]
        %v1865 = vld [vmem:[%s1759 + $0x348] sm:$0xff]
        %v1866 = vld [vmem:[%s1759 + $0x350] sm:$0xff]
        %v1867 = vld [vmem:[%s1759 + $0x358] sm:$0xff]
        %v1868 = vld [vmem:[%s1759 + $0x360] sm:$0xff]
        %v1869 = vld [vmem:[%s1759 + $0x368] sm:$0xff]
        %v1870 = vld [vmem:[%s1759 + $0x370] sm:$0xff]
        %v1871 = vld [vmem:[%s1759 + $0x378] sm:$0xff]
        %v1872 = vld [vmem:[%s1759 + $0x380] sm:$0xff]
        %v1873 = vld [vmem:[%s1759 + $0x388] sm:$0xff]
        %v1874 = vld [vmem:[%s1759 + $0x390] sm:$0xff]
        %v1875 = vld [vmem:[%s1759 + $0x398] sm:$0xff]
        %v1876 = vld [vmem:[%s1759 + $0x3a0] sm:$0xff]
        %v1877 = vld [vmem:[%s1759 + $0x3a8] sm:$0xff]
        %v1878 = vld [vmem:[%s1759 + $0x3b0] sm:$0xff]
        %v1879 = vld [vmem:[%s1759 + $0x3b8] sm:$0xff]
        %v1880 = vld [vmem:[%s1759 + $0x3c0] sm:$0xff]
        %v1881 = vld [vmem:[%s1759 + $0x3c8] sm:$0xff]
        %v1882 = vld [vmem:[%s1759 + $0x3d0] sm:$0xff]
        %v1883 = vld [vmem:[%s1759 + $0x3d8] sm:$0xff]
        %v1884 = vld [vmem:[%s1759 + $0x3e0] sm:$0xff]
        %v1885 = vld [vmem:[%s1759 + $0x3e8] sm:$0xff]
        %v1886 = vld [vmem:[%s1759 + $0x3f0] sm:$0xff]
        %v1887 = vld [vmem:[%s1759 + $0x3f8] sm:$0xff]
        %v1888 = vld [vmem:[%s1759 + $0x400] sm:$0xff]
        %v1889 = vld [vmem:[%s1759 + $0x408] sm:$0xff]
        %v1890 = vld [vmem:[%s1759 + $0x410] sm:$0xff]
        %v1891 = vld [vmem:[%s1759 + $0x418] sm:$0xff]
        %v1892 = vld [vmem:[%s1759 + $0x420] sm:$0xff]
        %v1893 = vld [vmem:[%s1759 + $0x428] sm:$0xff]
        %v1894 = vld [vmem:[%s1759 + $0x430] sm:$0xff]
        %v1895 = vld [vmem:[%s1759 + $0x438] sm:$0xff]
        %v1896 = vld [vmem:[%s1759 + $0x440] sm:$0xff]
        %v1897 = vld [vmem:[%s1759 + $0x448] sm:$0xff]
        %v1898 = vld [vmem:[%s1759 + $0x450] sm:$0xff]
        %v1899 = vld [vmem:[%s1759 + $0x458] sm:$0xff]
        %v1900 = vld [vmem:[%s1759 + $0x460] sm:$0xff]
        %v1901 = vld [vmem:[%s1759 + $0x468] sm:$0xff]
        %v1902 = vld [vmem:[%s1759 + $0x470] sm:$0xff]
        %v1903 = vld [vmem:[%s1759 + $0x478] sm:$0xff]
        %v1904 = vld [vmem:[%s1759 + $0x480] sm:$0xff]
        %v1905 = vld [vmem:[%s1759 + $0x488] sm:$0xff]
        %v1906 = vld [vmem:[%s1759 + $0x490] sm:$0xff]
        %v1907 = vld [vmem:[%s1759 + $0x498] sm:$0xff]
        %v1908 = vld [vmem:[%s1759 + $0x4a0] sm:$0xff]
        %v1909 = vld [vmem:[%s1759 + $0x4a8] sm:$0xff]
        %v1910 = vld [vmem:[%s1759 + $0x4b0] sm:$0xff]
        %v1911 = vld [vmem:[%s1759 + $0x4b8] sm:$0xff]
        %v1912 = vld [vmem:[%s1759 + $0x4c0] sm:$0xff]
        %v1913 = vld [vmem:[%s1759 + $0x4c8] sm:$0xff]
        %v1914 = vld [vmem:[%s1759 + $0x4d0] sm:$0xff]
        %v1915 = vld [vmem:[%s1759 + $0x4d8] sm:$0xff]
        %v1916 = vld [vmem:[%s1759 + $0x4e0] sm:$0xff]
        %v1917 = vld [vmem:[%s1759 + $0x4e8] sm:$0xff]
        %v1918 = vld [vmem:[%s1759 + $0x4f0] sm:$0xff]
        %v1919 = vld [vmem:[%s1759 + $0x4f8] sm:$0xff]
        %v1920 = vld [vmem:[%s1759 + $0x500] sm:$0xff]
        %v1921 = vld [vmem:[%s1759 + $0x508] sm:$0xff]
        %v1922 = vld [vmem:[%s1759 + $0x510] sm:$0xff]
        %v1923 = vld [vmem:[%s1759 + $0x518] sm:$0xff]
        %v1924 = vld [vmem:[%s1759 + $0x520] sm:$0xff]
        %v1925 = vld [vmem:[%s1759 + $0x528] sm:$0xff]
        %v1926 = vld [vmem:[%s1759 + $0x530] sm:$0xff]
        %v1927 = vld [vmem:[%s1759 + $0x538] sm:$0xff]
        %v1928 = vld [vmem:[%s1759 + $0x540] sm:$0xff]
        %v1929 = vld [vmem:[%s1759 + $0x548] sm:$0xff]
        %v1930 = vld [vmem:[%s1759 + $0x550] sm:$0xff]
        %v1931 = vld [vmem:[%s1759 + $0x558] sm:$0xff]
        %v1932 = vld [vmem:[%s1759 + $0x560] sm:$0xff]
        %v1933 = vld [vmem:[%s1759 + $0x568] sm:$0xff]
        %v1934 = vld [vmem:[%s1759 + $0x570] sm:$0xff]
        %v1935 = vld [vmem:[%s1759 + $0x578] sm:$0xff]
        %v1936 = vld [vmem:[%s1759 + $0x580] sm:$0xff]
        %v1937 = vld [vmem:[%s1759 + $0x588] sm:$0xff]
        %v1938 = vld [vmem:[%s1759 + $0x590] sm:$0xff]
        %v1939 = vld [vmem:[%s1759 + $0x598] sm:$0xff]
        %v1940 = vld [vmem:[%s1759 + $0x5a0] sm:$0xff]
        %v1941 = vld [vmem:[%s1759 + $0x5a8] sm:$0xff]
        %v1942 = vld [vmem:[%s1759 + $0x5b0] sm:$0xff]
        %v1943 = vld [vmem:[%s1759 + $0x5b8] sm:$0xff]
        %v1944 = vld [vmem:[%s1759 + $0x5c0] sm:$0xff]
        %v1945 = vld [vmem:[%s1759 + $0x5c8] sm:$0xff]
        %v1946 = vld [vmem:[%s1759 + $0x5d0] sm:$0xff]
        %v1947 = vld [vmem:[%s1759 + $0x5d8] sm:$0xff]
        %v1948 = vld [vmem:[%s1759 + $0x5e0] sm:$0xff]
        %v1949 = vld [vmem:[%s1759 + $0x5e8] sm:$0xff]
        %v1950 = vld [vmem:[%s1759 + $0x5f0] sm:$0xff]
        %v1951 = vld [vmem:[%s1759 + $0x5f8] sm:$0xff]
        %s1952 = scalar_lea.vmem [#allocation8], 4
        %v1953 = vld [vmem:[%s1952] sm:$0x3]
        %v1955 = vlaneseq
        %v1956 = vshrl.u32 %v1955, 7
        %v1957 = vsub.s32 0, %v1956
        %v1958 = vrot.slane %v1953, %v1957
        %v1959 = vlaneseq
        %v1960 = vshrl.u32 %v1959, 7
        %v1961 = vsub.s32 1, %v1960
        %v1962 = vrot.slane %v1953, %v1961
        %v1969 = vrot.slane %v1719, 7
        %v1970 = vrot.slane %v1721, 7
        %v1971 = vsel %vm649, %v1969, %v1970
        %v1972 = vrot.slane %v1720, 7
        %v1973 = vrot.slane %v1722, 7
        %v1974 = vsel %vm649, %v1972, %v1973
        %v1975 = vrot.slane %v1737, 7
        %v1976 = vrot.slane %v1740, 7
        %v1977 = vsel %vm649, %v1975, %v1976
        %v1978 = vrot.slane %v1738, 7
        %v1979 = vrot.slane %v1742, 7
        %v1980 = vsel %vm649, %v1978, %v1979
        %v1981 = vrot.slane %v1749, 7
        %v1982 = vrot.slane %v1752, 7
        %v1983 = vsel %vm649, %v1981, %v1982
        %v1984 = vrot.slane %v1750, 7
        %v1985 = vrot.slane %v1754, 7
        %v1986 = vsel %vm649, %v1984, %v1985
        %v1987 = vrot.slane %v1723, 7
        %v1988 = vsel %vm649, %v1970, %v1987
        %v1989 = vrot.slane %v1724, 7
        %v1990 = vsel %vm649, %v1973, %v1989
        %v1991 = vrot.slane %v1739, 7
        %v1992 = vsel %vm649, %v1976, %v1991
        %v1993 = vrot.slane %v1741, 7
        %v1994 = vsel %vm649, %v1979, %v1993
        %v1995 = vrot.slane %v1756, 7
        %v1996 = vsel %vm649, %v1982, %v1995
        %v1997 = vrot.slane %v1758, 7
        %v1998 = vsel %vm649, %v1985, %v1997
        %2011 = vmatprep.subr.mxu0 %v1761
        %2012 = vmatpush1.msra.mxu0 %v1760
        %2013 = vmatprep.subr.mxu0 %v1763
        %2014 = vmatpush1.msra.mxu0 %v1762
        %2015 = vmatprep.subr.mxu0 %v1765
        %2016 = vmatpush1.msra.mxu0 %v1764
        %2017 = vmatprep.subr.mxu0 %v1767
        %2018 = vmatpush1.msra.mxu0 %v1766
        %2019 = vmatprep.subr.mxu0 %v1769
        %2020 = vmatpush1.msra.mxu0 %v1768
        %2021 = vmatprep.subr.mxu0 %v1771
        %2022 = vmatpush1.msra.mxu0 %v1770
        %2023 = vmatprep.subr.mxu0 %v1773
        %2024 = vmatpush1.msra.mxu0 %v1772
        %2025 = vmatprep.subr.mxu0 %v1775
        %2026 = vmatpush1.msra.mxu0 %v1774
        %2027 = vmatprep.subr.mxu0 %v1777
        %2028 = vmatpush1.msra.mxu0 %v1776
        %2029 = vmatprep.subr.mxu0 %v1779
        %2030 = vmatpush1.msra.mxu0 %v1778
        %2031 = vmatprep.subr.mxu0 %v1781
        %2032 = vmatpush1.msra.mxu0 %v1780
        %2033 = vmatprep.subr.mxu0 %v1783
        %2034 = vmatpush1.msra.mxu0 %v1782
        %2035 = vmatprep.subr.mxu0 %v1785
        %2036 = vmatpush1.msra.mxu0 %v1784
        %2037 = vmatprep.subr.mxu0 %v1787
        %2038 = vmatpush1.msra.mxu0 %v1786
        %2039 = vmatprep.subr.mxu0 %v1789
        %2040 = vmatpush1.msra.mxu0 %v1788
        %2041 = vmatprep.subr.mxu0 %v1791
        %2042 = vmatpush1.msra.mxu0 %v1790
        %2043 = vmatprep.subr.mxu0 %v1793
        %2044 = vmatpush1.msra.mxu0 %v1792
        %2045 = vmatprep.subr.mxu0 %v1795
        %2046 = vmatpush1.msra.mxu0 %v1794
        %2047 = vmatprep.subr.mxu0 %v1797
        %2048 = vmatpush1.msra.mxu0 %v1796
        %2049 = vmatprep.subr.mxu0 %v1799
        %2050 = vmatpush1.msra.mxu0 %v1798
        %2051 = vmatprep.subr.mxu0 %v1801
        %2052 = vmatpush1.msra.mxu0 %v1800
        %2053 = vmatprep.subr.mxu0 %v1803
        %2054 = vmatpush1.msra.mxu0 %v1802
        %2055 = vmatprep.subr.mxu0 %v1805
        %2056 = vmatpush1.msra.mxu0 %v1804
        %2057 = vmatprep.subr.mxu0 %v1807
        %2058 = vmatpush1.msra.mxu0 %v1806
        %2059 = vmatprep.subr.mxu0 %v1809
        %2060 = vmatpush1.msra.mxu0 %v1808
        %2061 = vmatprep.subr.mxu0 %v1811
        %2062 = vmatpush1.msra.mxu0 %v1810
        %2063 = vmatprep.subr.mxu0 %v1813
        %2064 = vmatpush1.msra.mxu0 %v1812
        %2065 = vmatprep.subr.mxu0 %v1815
        %2066 = vmatpush1.msra.mxu0 %v1814
        %2067 = vmatprep.subr.mxu0 %v1817
        %2068 = vmatpush1.msra.mxu0 %v1816
        %2069 = vmatprep.subr.mxu0 %v1819
        %2070 = vmatpush1.msra.mxu0 %v1818
        %2071 = vmatprep.subr.mxu0 %v1821
        %2072 = vmatpush1.msra.mxu0 %v1820
        %2073 = vmatprep.subr.mxu0 %v1823
        %2074 = vmatpush1.msra.mxu0 %v1822
        %2075 = vmatprep.mubr.f32.mxu0 %v1974
        %2076 = vmatmul.mubr.f32.gmra.mrb[0].mxu0 %v1971
        %v2077 = vpop.f32.mrb[0].mxu0
        %v2078 = vadd.f32 %v1958, %v2077
        %v2079 = vpop.f32.mrb[0].mxu0
        %v2080 = vadd.f32 %v1962, %v2079
        %2081 = vmatprep.mubr.f32.mxu0 %v1990
        %2082 = vmatmul.mubr.f32.gmra.mrb[0].mxu0 %v1988
        %v2083 = vpop.f32.mrb[0].mxu0
        %v2084 = vadd.f32 %v1958, %v2083
        %v2085 = vpop.f32.mrb[0].mxu0
        %v2086 = vadd.f32 %v1962, %v2085
        %2087 = vdwg.mxu0
        %2088 = vmatprep.subr.mxu0 %v1825
        %2089 = vmatpush1.msra.mxu0 %v1824
        %2090 = vmatprep.subr.mxu0 %v1827
        %2091 = vmatpush1.msra.mxu0 %v1826
        %2092 = vmatprep.subr.mxu0 %v1829
        %2093 = vmatpush1.msra.mxu0 %v1828
        %2094 = vmatprep.subr.mxu0 %v1831
        %2095 = vmatpush1.msra.mxu0 %v1830
        %2096 = vmatprep.subr.mxu0 %v1833
        %2097 = vmatpush1.msra.mxu0 %v1832
        %2098 = vmatprep.subr.mxu0 %v1835
        %2099 = vmatpush1.msra.mxu0 %v1834
        %2100 = vmatprep.subr.mxu0 %v1837
        %2101 = vmatpush1.msra.mxu0 %v1836
        %2102 = vmatprep.subr.mxu0 %v1839
        %2103 = vmatpush1.msra.mxu0 %v1838
        %2104 = vmatprep.subr.mxu0 %v1841
        %2105 = vmatpush1.msra.mxu0 %v1840
        %2106 = vmatprep.subr.mxu0 %v1843
        %2107 = vmatpush1.msra.mxu0 %v1842
        %2108 = vmatprep.subr.mxu0 %v1845
        %2109 = vmatpush1.msra.mxu0 %v1844
        %2110 = vmatprep.subr.mxu0 %v1847
        %2111 = vmatpush1.msra.mxu0 %v1846
        %2112 = vmatprep.subr.mxu0 %v1849
        %2113 = vmatpush1.msra.mxu0 %v1848
        %2114 = vmatprep.subr.mxu0 %v1851
        %2115 = vmatpush1.msra.mxu0 %v1850
        %2116 = vmatprep.subr.mxu0 %v1853
        %2117 = vmatpush1.msra.mxu0 %v1852
        %2118 = vmatprep.subr.mxu0 %v1855
        %2119 = vmatpush1.msra.mxu0 %v1854
        %2120 = vmatprep.subr.mxu0 %v1857
        %2121 = vmatpush1.msra.mxu0 %v1856
        %2122 = vmatprep.subr.mxu0 %v1859
        %2123 = vmatpush1.msra.mxu0 %v1858
        %2124 = vmatprep.subr.mxu0 %v1861
        %2125 = vmatpush1.msra.mxu0 %v1860
        %2126 = vmatprep.subr.mxu0 %v1863
        %2127 = vmatpush1.msra.mxu0 %v1862
        %2128 = vmatprep.subr.mxu0 %v1865
        %2129 = vmatpush1.msra.mxu0 %v1864
        %2130 = vmatprep.subr.mxu0 %v1867
        %2131 = vmatpush1.msra.mxu0 %v1866
        %2132 = vmatprep.subr.mxu0 %v1869
        %2133 = vmatpush1.msra.mxu0 %v1868
        %2134 = vmatprep.subr.mxu0 %v1871
        %2135 = vmatpush1.msra.mxu0 %v1870
        %2136 = vmatprep.subr.mxu0 %v1873
        %2137 = vmatpush1.msra.mxu0 %v1872
        %2138 = vmatprep.subr.mxu0 %v1875
        %2139 = vmatpush1.msra.mxu0 %v1874
        %2140 = vmatprep.subr.mxu0 %v1877
        %2141 = vmatpush1.msra.mxu0 %v1876
        %2142 = vmatprep.subr.mxu0 %v1879
        %2143 = vmatpush1.msra.mxu0 %v1878
        %2144 = vmatprep.subr.mxu0 %v1881
        %2145 = vmatpush1.msra.mxu0 %v1880
        %2146 = vmatprep.subr.mxu0 %v1883
        %2147 = vmatpush1.msra.mxu0 %v1882
        %2148 = vmatprep.subr.mxu0 %v1885
        %2149 = vmatpush1.msra.mxu0 %v1884
        %2150 = vmatprep.subr.mxu0 %v1887
        %2151 = vmatpush1.msra.mxu0 %v1886
        %2152 = vmatprep.mubr.f32.mxu0 %v1980
        %2153 = vmatmul.mubr.f32.gmra.mrb[0].mxu0 %v1977
        %v2154 = vpop.f32.mrb[0].mxu0
        %v2155 = vadd.f32 %v2078, %v2154
        %v2156 = vpop.f32.mrb[0].mxu0
        %v2157 = vadd.f32 %v2080, %v2156
        %2158 = vmatprep.mubr.f32.mxu0 %v1994
        %2159 = vmatmul.mubr.f32.gmra.mrb[0].mxu0 %v1992
        %v2160 = vpop.f32.mrb[0].mxu0
        %v2161 = vadd.f32 %v2084, %v2160
        %v2162 = vpop.f32.mrb[0].mxu0
        %v2163 = vadd.f32 %v2086, %v2162
        %2164 = vdwg.mxu0
        %2165 = vmatprep.subr.mxu0 %v1889
        %2166 = vmatpush1.msra.mxu0 %v1888
        %2167 = vmatprep.subr.mxu0 %v1891
        %2168 = vmatpush1.msra.mxu0 %v1890
        %2169 = vmatprep.subr.mxu0 %v1893
        %2170 = vmatpush1.msra.mxu0 %v1892
        %2171 = vmatprep.subr.mxu0 %v1895
        %2172 = vmatpush1.msra.mxu0 %v1894
        %2173 = vmatprep.subr.mxu0 %v1897
        %2174 = vmatpush1.msra.mxu0 %v1896
        %2175 = vmatprep.subr.mxu0 %v1899
        %2176 = vmatpush1.msra.mxu0 %v1898
        %2177 = vmatprep.subr.mxu0 %v1901
        %2178 = vmatpush1.msra.mxu0 %v1900
        %2179 = vmatprep.subr.mxu0 %v1903
        %2180 = vmatpush1.msra.mxu0 %v1902
        %2181 = vmatprep.subr.mxu0 %v1905
        %2182 = vmatpush1.msra.mxu0 %v1904
        %2183 = vmatprep.subr.mxu0 %v1907
        %2184 = vmatpush1.msra.mxu0 %v1906
        %2185 = vmatprep.subr.mxu0 %v1909
        %2186 = vmatpush1.msra.mxu0 %v1908
        %2187 = vmatprep.subr.mxu0 %v1911
        %2188 = vmatpush1.msra.mxu0 %v1910
        %2189 = vmatprep.subr.mxu0 %v1913
        %2190 = vmatpush1.msra.mxu0 %v1912
        %2191 = vmatprep.subr.mxu0 %v1915
        %2192 = vmatpush1.msra.mxu0 %v1914
        %2193 = vmatprep.subr.mxu0 %v1917
        %2194 = vmatpush1.msra.mxu0 %v1916
        %2195 = vmatprep.subr.mxu0 %v1919
        %2196 = vmatpush1.msra.mxu0 %v1918
        %2197 = vmatprep.subr.mxu0 %v1921
        %2198 = vmatpush1.msra.mxu0 %v1920
        %2199 = vmatprep.subr.mxu0 %v1923
        %2200 = vmatpush1.msra.mxu0 %v1922
        %2201 = vmatprep.subr.mxu0 %v1925
        %2202 = vmatpush1.msra.mxu0 %v1924
        %2203 = vmatprep.subr.mxu0 %v1927
        %2204 = vmatpush1.msra.mxu0 %v1926
        %2205 = vmatprep.subr.mxu0 %v1929
        %2206 = vmatpush1.msra.mxu0 %v1928
        %2207 = vmatprep.subr.mxu0 %v1931
        %2208 = vmatpush1.msra.mxu0 %v1930
        %2209 = vmatprep.subr.mxu0 %v1933
        %2210 = vmatpush1.msra.mxu0 %v1932
        %2211 = vmatprep.subr.mxu0 %v1935
        %2212 = vmatpush1.msra.mxu0 %v1934
        %2213 = vmatprep.subr.mxu0 %v1937
        %2214 = vmatpush1.msra.mxu0 %v1936
        %2215 = vmatprep.subr.mxu0 %v1939
        %2216 = vmatpush1.msra.mxu0 %v1938
        %2217 = vmatprep.subr.mxu0 %v1941
        %2218 = vmatpush1.msra.mxu0 %v1940
        %2219 = vmatprep.subr.mxu0 %v1943
        %2220 = vmatpush1.msra.mxu0 %v1942
        %2221 = vmatprep.subr.mxu0 %v1945
        %2222 = vmatpush1.msra.mxu0 %v1944
        %2223 = vmatprep.subr.mxu0 %v1947
        %2224 = vmatpush1.msra.mxu0 %v1946
        %2225 = vmatprep.subr.mxu0 %v1949
        %2226 = vmatpush1.msra.mxu0 %v1948
        %2227 = vmatprep.subr.mxu0 %v1951
        %2228 = vmatpush1.msra.mxu0 %v1950
        %2229 = vmatprep.mubr.f32.mxu0 %v1986
        %2230 = vmatmul.mubr.f32.gmra.mrb[0].mxu0 %v1983
        %v2231 = vpop.f32.mrb[0].mxu0
        %v2232 = vadd.f32 %v2155, %v2231
        %v2233 = vpop.f32.mrb[0].mxu0
        %v2234 = vadd.f32 %v2157, %v2233
        %2235 = vmatprep.mubr.f32.mxu0 %v1998
        %2236 = vmatmul.mubr.f32.gmra.mrb[0].mxu0 %v1996
        %v2237 = vpop.f32.mrb[0].mxu0
        %v2238 = vadd.f32 %v2161, %v2237
        %v2239 = vpop.f32.mrb[0].mxu0
        %v2240 = vadd.f32 %v2163, %v2239
        %2241 = vdwg.mxu0
        %v2242 = vmax.f32 %v2232, 0.0
        %v2243 = vmax.f32 %v2234, 0.0
        %v2244 = vmax.f32 %v2238, 0.0
        %v2245 = vmax.f32 %v2240, 0.0
        %2246 = vst [vmem:[#allocation2 + $0x10] sm:$0xff] %v2242
        %2247 = vst [vmem:[#allocation2 + $0x18] sm:$0xff] %v2243
        %2248 = vst [vmem:[#allocation2 + $0x20] sm:$0xff] %v2244
        %2249 = vst [vmem:[#allocation2 + $0x28] sm:$0xff] %v2245
        %v2250 = vld [vmem:[#allocation2] sm:$0x80]
        %v2251 = vld [vmem:[#allocation2 + $0x8] sm:$0x80]
        %v2252 = vld [vmem:[#allocation2 + $0x10] sm:$0xff]
        %v2253 = vld [vmem:[#allocation2 + $0x18] sm:$0xff]
        %v2254 = vld [vmem:[#allocation2 + $0x20] sm:$0x7f]
        %v2255 = vld [vmem:[#allocation2 + $0x28] sm:$0x7f]
        %v2256 = vld [vmem:[#allocation2 + $0x20] sm:$0xff]
        %v2257 = vld [vmem:[#allocation2 + $0x28] sm:$0xff]
        %v2258 = vld [vmem:[#allocation2 + $0x10] sm:$0xfe]
        %v2259 = vld [vmem:[#allocation2 + $0x18] sm:$0xfe]
        %v2260 = vld [vmem:[#allocation2 + $0x20] sm:$0xff]
        %v2261 = vld [vmem:[#allocation2 + $0x28] sm:$0xff]
        %v2262 = vld [vmem:[#allocation2 + $0x30] sm:$0x1]
        %v2263 = vld [vmem:[#allocation2 + $0x38] sm:$0x1]
        %v2268 = vrot.slane %v2252, 1
        %v2269 = vrot.slane %v2253, 1
        %v2270 = vrot.slane %v2256, 1
        %v2271 = vsel %vm417, %v2268, %v2270
        %v2272 = vrot.slane %v2257, 1
        %v2273 = vsel %vm417, %v2269, %v2272
        %v2280 = vrot.slane %v2258, 2
        %v2281 = vrot.slane %v2259, 2
        %v2282 = vrot.slane %v2260, 2
        %v2283 = vsel %vm430, %v2280, %v2282
        %v2284 = vrot.slane %v2261, 2
        %v2285 = vsel %vm430, %v2281, %v2284
        %v2286 = vrot.slane %v2262, 2
        %v2287 = vsel %vm430, %v2282, %v2286
        %v2288 = vrot.slane %v2263, 2
        %v2289 = vsel %vm430, %v2284, %v2288
        %s2290 = scalar_lea.vmem [#allocation6], 4608
        %v2291 = vld [vmem:[%s2290] sm:$0xff]
        %v2292 = vld [vmem:[%s2290 + $0x8] sm:$0xff]
        %v2293 = vld [vmem:[%s2290 + $0x10] sm:$0xff]
        %v2294 = vld [vmem:[%s2290 + $0x18] sm:$0xff]
        %v2295 = vld [vmem:[%s2290 + $0x20] sm:$0xff]
        %v2296 = vld [vmem:[%s2290 + $0x28] sm:$0xff]
        %v2297 = vld [vmem:[%s2290 + $0x30] sm:$0xff]
        %v2298 = vld [vmem:[%s2290 + $0x38] sm:$0xff]
        %v2299 = vld [vmem:[%s2290 + $0x40] sm:$0xff]
        %v2300 = vld [vmem:[%s2290 + $0x48] sm:$0xff]
        %v2301 = vld [vmem:[%s2290 + $0x50] sm:$0xff]
        %v2302 = vld [vmem:[%s2290 + $0x58] sm:$0xff]
        %v2303 = vld [vmem:[%s2290 + $0x60] sm:$0xff]
        %v2304 = vld [vmem:[%s2290 + $0x68] sm:$0xff]
        %v2305 = vld [vmem:[%s2290 + $0x70] sm:$0xff]
        %v2306 = vld [vmem:[%s2290 + $0x78] sm:$0xff]
        %v2307 = vld [vmem:[%s2290 + $0x80] sm:$0xff]
        %v2308 = vld [vmem:[%s2290 + $0x88] sm:$0xff]
        %v2309 = vld [vmem:[%s2290 + $0x90] sm:$0xff]
        %v2310 = vld [vmem:[%s2290 + $0x98] sm:$0xff]
        %v2311 = vld [vmem:[%s2290 + $0xa0] sm:$0xff]
        %v2312 = vld [vmem:[%s2290 + $0xa8] sm:$0xff]
        %v2313 = vld [vmem:[%s2290 + $0xb0] sm:$0xff]
        %v2314 = vld [vmem:[%s2290 + $0xb8] sm:$0xff]
        %v2315 = vld [vmem:[%s2290 + $0xc0] sm:$0xff]
        %v2316 = vld [vmem:[%s2290 + $0xc8] sm:$0xff]
        %v2317 = vld [vmem:[%s2290 + $0xd0] sm:$0xff]
        %v2318 = vld [vmem:[%s2290 + $0xd8] sm:$0xff]
        %v2319 = vld [vmem:[%s2290 + $0xe0] sm:$0xff]
        %v2320 = vld [vmem:[%s2290 + $0xe8] sm:$0xff]
        %v2321 = vld [vmem:[%s2290 + $0xf0] sm:$0xff]
        %v2322 = vld [vmem:[%s2290 + $0xf8] sm:$0xff]
        %v2323 = vld [vmem:[%s2290 + $0x100] sm:$0xff]
        %v2324 = vld [vmem:[%s2290 + $0x108] sm:$0xff]
        %v2325 = vld [vmem:[%s2290 + $0x110] sm:$0xff]
        %v2326 = vld [vmem:[%s2290 + $0x118] sm:$0xff]
        %v2327 = vld [vmem:[%s2290 + $0x120] sm:$0xff]
        %v2328 = vld [vmem:[%s2290 + $0x128] sm:$0xff]
        %v2329 = vld [vmem:[%s2290 + $0x130] sm:$0xff]
        %v2330 = vld [vmem:[%s2290 + $0x138] sm:$0xff]
        %v2331 = vld [vmem:[%s2290 + $0x140] sm:$0xff]
        %v2332 = vld [vmem:[%s2290 + $0x148] sm:$0xff]
        %v2333 = vld [vmem:[%s2290 + $0x150] sm:$0xff]
        %v2334 = vld [vmem:[%s2290 + $0x158] sm:$0xff]
        %v2335 = vld [vmem:[%s2290 + $0x160] sm:$0xff]
        %v2336 = vld [vmem:[%s2290 + $0x168] sm:$0xff]
        %v2337 = vld [vmem:[%s2290 + $0x170] sm:$0xff]
        %v2338 = vld [vmem:[%s2290 + $0x178] sm:$0xff]
        %v2339 = vld [vmem:[%s2290 + $0x180] sm:$0xff]
        %v2340 = vld [vmem:[%s2290 + $0x188] sm:$0xff]
        %v2341 = vld [vmem:[%s2290 + $0x190] sm:$0xff]
        %v2342 = vld [vmem:[%s2290 + $0x198] sm:$0xff]
        %v2343 = vld [vmem:[%s2290 + $0x1a0] sm:$0xff]
        %v2344 = vld [vmem:[%s2290 + $0x1a8] sm:$0xff]
        %v2345 = vld [vmem:[%s2290 + $0x1b0] sm:$0xff]
        %v2346 = vld [vmem:[%s2290 + $0x1b8] sm:$0xff]
        %v2347 = vld [vmem:[%s2290 + $0x1c0] sm:$0xff]
        %v2348 = vld [vmem:[%s2290 + $0x1c8] sm:$0xff]
        %v2349 = vld [vmem:[%s2290 + $0x1d0] sm:$0xff]
        %v2350 = vld [vmem:[%s2290 + $0x1d8] sm:$0xff]
        %v2351 = vld [vmem:[%s2290 + $0x1e0] sm:$0xff]
        %v2352 = vld [vmem:[%s2290 + $0x1e8] sm:$0xff]
        %v2353 = vld [vmem:[%s2290 + $0x1f0] sm:$0xff]
        %v2354 = vld [vmem:[%s2290 + $0x1f8] sm:$0xff]
        %v2355 = vld [vmem:[%s2290 + $0x200] sm:$0xff]
        %v2356 = vld [vmem:[%s2290 + $0x208] sm:$0xff]
        %v2357 = vld [vmem:[%s2290 + $0x210] sm:$0xff]
        %v2358 = vld [vmem:[%s2290 + $0x218] sm:$0xff]
        %v2359 = vld [vmem:[%s2290 + $0x220] sm:$0xff]
        %v2360 = vld [vmem:[%s2290 + $0x228] sm:$0xff]
        %v2361 = vld [vmem:[%s2290 + $0x230] sm:$0xff]
        %v2362 = vld [vmem:[%s2290 + $0x238] sm:$0xff]
        %v2363 = vld [vmem:[%s2290 + $0x240] sm:$0xff]
        %v2364 = vld [vmem:[%s2290 + $0x248] sm:$0xff]
        %v2365 = vld [vmem:[%s2290 + $0x250] sm:$0xff]
        %v2366 = vld [vmem:[%s2290 + $0x258] sm:$0xff]
        %v2367 = vld [vmem:[%s2290 + $0x260] sm:$0xff]
        %v2368 = vld [vmem:[%s2290 + $0x268] sm:$0xff]
        %v2369 = vld [vmem:[%s2290 + $0x270] sm:$0xff]
        %v2370 = vld [vmem:[%s2290 + $0x278] sm:$0xff]
        %v2371 = vld [vmem:[%s2290 + $0x280] sm:$0xff]
        %v2372 = vld [vmem:[%s2290 + $0x288] sm:$0xff]
        %v2373 = vld [vmem:[%s2290 + $0x290] sm:$0xff]
        %v2374 = vld [vmem:[%s2290 + $0x298] sm:$0xff]
        %v2375 = vld [vmem:[%s2290 + $0x2a0] sm:$0xff]
        %v2376 = vld [vmem:[%s2290 + $0x2a8] sm:$0xff]
        %v2377 = vld [vmem:[%s2290 + $0x2b0] sm:$0xff]
        %v2378 = vld [vmem:[%s2290 + $0x2b8] sm:$0xff]
        %v2379 = vld [vmem:[%s2290 + $0x2c0] sm:$0xff]
        %v2380 = vld [vmem:[%s2290 + $0x2c8] sm:$0xff]
        %v2381 = vld [vmem:[%s2290 + $0x2d0] sm:$0xff]
        %v2382 = vld [vmem:[%s2290 + $0x2d8] sm:$0xff]
        %v2383 = vld [vmem:[%s2290 + $0x2e0] sm:$0xff]
        %v2384 = vld [vmem:[%s2290 + $0x2e8] sm:$0xff]
        %v2385 = vld [vmem:[%s2290 + $0x2f0] sm:$0xff]
        %v2386 = vld [vmem:[%s2290 + $0x2f8] sm:$0xff]
        %v2387 = vld [vmem:[%s2290 + $0x300] sm:$0xff]
        %v2388 = vld [vmem:[%s2290 + $0x308] sm:$0xff]
        %v2389 = vld [vmem:[%s2290 + $0x310] sm:$0xff]
        %v2390 = vld [vmem:[%s2290 + $0x318] sm:$0xff]
        %v2391 = vld [vmem:[%s2290 + $0x320] sm:$0xff]
        %v2392 = vld [vmem:[%s2290 + $0x328] sm:$0xff]
        %v2393 = vld [vmem:[%s2290 + $0x330] sm:$0xff]
        %v2394 = vld [vmem:[%s2290 + $0x338] sm:$0xff]
        %v2395 = vld [vmem:[%s2290 + $0x340] sm:$0xff]
        %v2396 = vld [vmem:[%s2290 + $0x348] sm:$0xff]
        %v2397 = vld [vmem:[%s2290 + $0x350] sm:$0xff]
        %v2398 = vld [vmem:[%s2290 + $0x358] sm:$0xff]
        %v2399 = vld [vmem:[%s2290 + $0x360] sm:$0xff]
        %v2400 = vld [vmem:[%s2290 + $0x368] sm:$0xff]
        %v2401 = vld [vmem:[%s2290 + $0x370] sm:$0xff]
        %v2402 = vld [vmem:[%s2290 + $0x378] sm:$0xff]
        %v2403 = vld [vmem:[%s2290 + $0x380] sm:$0xff]
        %v2404 = vld [vmem:[%s2290 + $0x388] sm:$0xff]
        %v2405 = vld [vmem:[%s2290 + $0x390] sm:$0xff]
        %v2406 = vld [vmem:[%s2290 + $0x398] sm:$0xff]
        %v2407 = vld [vmem:[%s2290 + $0x3a0] sm:$0xff]
        %v2408 = vld [vmem:[%s2290 + $0x3a8] sm:$0xff]
        %v2409 = vld [vmem:[%s2290 + $0x3b0] sm:$0xff]
        %v2410 = vld [vmem:[%s2290 + $0x3b8] sm:$0xff]
        %v2411 = vld [vmem:[%s2290 + $0x3c0] sm:$0xff]
        %v2412 = vld [vmem:[%s2290 + $0x3c8] sm:$0xff]
        %v2413 = vld [vmem:[%s2290 + $0x3d0] sm:$0xff]
        %v2414 = vld [vmem:[%s2290 + $0x3d8] sm:$0xff]
        %v2415 = vld [vmem:[%s2290 + $0x3e0] sm:$0xff]
        %v2416 = vld [vmem:[%s2290 + $0x3e8] sm:$0xff]
        %v2417 = vld [vmem:[%s2290 + $0x3f0] sm:$0xff]
        %v2418 = vld [vmem:[%s2290 + $0x3f8] sm:$0xff]
        %v2419 = vld [vmem:[%s2290 + $0x400] sm:$0xff]
        %v2420 = vld [vmem:[%s2290 + $0x408] sm:$0xff]
        %v2421 = vld [vmem:[%s2290 + $0x410] sm:$0xff]
        %v2422 = vld [vmem:[%s2290 + $0x418] sm:$0xff]
        %v2423 = vld [vmem:[%s2290 + $0x420] sm:$0xff]
        %v2424 = vld [vmem:[%s2290 + $0x428] sm:$0xff]
        %v2425 = vld [vmem:[%s2290 + $0x430] sm:$0xff]
        %v2426 = vld [vmem:[%s2290 + $0x438] sm:$0xff]
        %v2427 = vld [vmem:[%s2290 + $0x440] sm:$0xff]
        %v2428 = vld [vmem:[%s2290 + $0x448] sm:$0xff]
        %v2429 = vld [vmem:[%s2290 + $0x450] sm:$0xff]
        %v2430 = vld [vmem:[%s2290 + $0x458] sm:$0xff]
        %v2431 = vld [vmem:[%s2290 + $0x460] sm:$0xff]
        %v2432 = vld [vmem:[%s2290 + $0x468] sm:$0xff]
        %v2433 = vld [vmem:[%s2290 + $0x470] sm:$0xff]
        %v2434 = vld [vmem:[%s2290 + $0x478] sm:$0xff]
        %v2435 = vld [vmem:[%s2290 + $0x480] sm:$0xff]
        %v2436 = vld [vmem:[%s2290 + $0x488] sm:$0xff]
        %v2437 = vld [vmem:[%s2290 + $0x490] sm:$0xff]
        %v2438 = vld [vmem:[%s2290 + $0x498] sm:$0xff]
        %v2439 = vld [vmem:[%s2290 + $0x4a0] sm:$0xff]
        %v2440 = vld [vmem:[%s2290 + $0x4a8] sm:$0xff]
        %v2441 = vld [vmem:[%s2290 + $0x4b0] sm:$0xff]
        %v2442 = vld [vmem:[%s2290 + $0x4b8] sm:$0xff]
        %v2443 = vld [vmem:[%s2290 + $0x4c0] sm:$0xff]
        %v2444 = vld [vmem:[%s2290 + $0x4c8] sm:$0xff]
        %v2445 = vld [vmem:[%s2290 + $0x4d0] sm:$0xff]
        %v2446 = vld [vmem:[%s2290 + $0x4d8] sm:$0xff]
        %v2447 = vld [vmem:[%s2290 + $0x4e0] sm:$0xff]
        %v2448 = vld [vmem:[%s2290 + $0x4e8] sm:$0xff]
        %v2449 = vld [vmem:[%s2290 + $0x4f0] sm:$0xff]
        %v2450 = vld [vmem:[%s2290 + $0x4f8] sm:$0xff]
        %v2451 = vld [vmem:[%s2290 + $0x500] sm:$0xff]
        %v2452 = vld [vmem:[%s2290 + $0x508] sm:$0xff]
        %v2453 = vld [vmem:[%s2290 + $0x510] sm:$0xff]
        %v2454 = vld [vmem:[%s2290 + $0x518] sm:$0xff]
        %v2455 = vld [vmem:[%s2290 + $0x520] sm:$0xff]
        %v2456 = vld [vmem:[%s2290 + $0x528] sm:$0xff]
        %v2457 = vld [vmem:[%s2290 + $0x530] sm:$0xff]
        %v2458 = vld [vmem:[%s2290 + $0x538] sm:$0xff]
        %v2459 = vld [vmem:[%s2290 + $0x540] sm:$0xff]
        %v2460 = vld [vmem:[%s2290 + $0x548] sm:$0xff]
        %v2461 = vld [vmem:[%s2290 + $0x550] sm:$0xff]
        %v2462 = vld [vmem:[%s2290 + $0x558] sm:$0xff]
        %v2463 = vld [vmem:[%s2290 + $0x560] sm:$0xff]
        %v2464 = vld [vmem:[%s2290 + $0x568] sm:$0xff]
        %v2465 = vld [vmem:[%s2290 + $0x570] sm:$0xff]
        %v2466 = vld [vmem:[%s2290 + $0x578] sm:$0xff]
        %v2467 = vld [vmem:[%s2290 + $0x580] sm:$0xff]
        %v2468 = vld [vmem:[%s2290 + $0x588] sm:$0xff]
        %v2469 = vld [vmem:[%s2290 + $0x590] sm:$0xff]
        %v2470 = vld [vmem:[%s2290 + $0x598] sm:$0xff]
        %v2471 = vld [vmem:[%s2290 + $0x5a0] sm:$0xff]
        %v2472 = vld [vmem:[%s2290 + $0x5a8] sm:$0xff]
        %v2473 = vld [vmem:[%s2290 + $0x5b0] sm:$0xff]
        %v2474 = vld [vmem:[%s2290 + $0x5b8] sm:$0xff]
        %v2475 = vld [vmem:[%s2290 + $0x5c0] sm:$0xff]
        %v2476 = vld [vmem:[%s2290 + $0x5c8] sm:$0xff]
        %v2477 = vld [vmem:[%s2290 + $0x5d0] sm:$0xff]
        %v2478 = vld [vmem:[%s2290 + $0x5d8] sm:$0xff]
        %v2479 = vld [vmem:[%s2290 + $0x5e0] sm:$0xff]
        %v2480 = vld [vmem:[%s2290 + $0x5e8] sm:$0xff]
        %v2481 = vld [vmem:[%s2290 + $0x5f0] sm:$0xff]
        %v2482 = vld [vmem:[%s2290 + $0x5f8] sm:$0xff]
        %s2483 = scalar_lea.vmem [#allocation8], 6
        %v2484 = vld [vmem:[%s2483] sm:$0x3]
        %v2486 = vlaneseq
        %v2487 = vshrl.u32 %v2486, 7
        %v2488 = vsub.s32 0, %v2487
        %v2489 = vrot.slane %v2484, %v2488
        %v2490 = vlaneseq
        %v2491 = vshrl.u32 %v2490, 7
        %v2492 = vsub.s32 1, %v2491
        %v2493 = vrot.slane %v2484, %v2492
        %v2500 = vrot.slane %v2250, 7
        %v2501 = vrot.slane %v2252, 7
        %v2502 = vsel %vm649, %v2500, %v2501
        %v2503 = vrot.slane %v2251, 7
        %v2504 = vrot.slane %v2253, 7
        %v2505 = vsel %vm649, %v2503, %v2504
        %v2506 = vrot.slane %v2268, 7
        %v2507 = vrot.slane %v2271, 7
        %v2508 = vsel %vm649, %v2506, %v2507
        %v2509 = vrot.slane %v2269, 7
        %v2510 = vrot.slane %v2273, 7
        %v2511 = vsel %vm649, %v2509, %v2510
        %v2512 = vrot.slane %v2280, 7
        %v2513 = vrot.slane %v2283, 7
        %v2514 = vsel %vm649, %v2512, %v2513
        %v2515 = vrot.slane %v2281, 7
        %v2516 = vrot.slane %v2285, 7
        %v2517 = vsel %vm649, %v2515, %v2516
        %v2518 = vrot.slane %v2254, 7
        %v2519 = vsel %vm649, %v2501, %v2518
        %v2520 = vrot.slane %v2255, 7
        %v2521 = vsel %vm649, %v2504, %v2520
        %v2522 = vrot.slane %v2270, 7
        %v2523 = vsel %vm649, %v2507, %v2522
        %v2524 = vrot.slane %v2272, 7
        %v2525 = vsel %vm649, %v2510, %v2524
        %v2526 = vrot.slane %v2287, 7
        %v2527 = vsel %vm649, %v2513, %v2526
        %v2528 = vrot.slane %v2289, 7
        %v2529 = vsel %vm649, %v2516, %v2528
        %2542 = vmatprep.subr.mxu0 %v2292
        %2543 = vmatpush1.msra.mxu0 %v2291
        %2544 = vmatprep.subr.mxu0 %v2294
        %2545 = vmatpush1.msra.mxu0 %v2293
        %2546 = vmatprep.subr.mxu0 %v2296
        %2547 = vmatpush1.msra.mxu0 %v2295
        %2548 = vmatprep.subr.mxu0 %v2298
        %2549 = vmatpush1.msra.mxu0 %v2297
        %2550 = vmatprep.subr.mxu0 %v2300
        %2551 = vmatpush1.msra.mxu0 %v2299
        %2552 = vmatprep.subr.mxu0 %v2302
        %2553 = vmatpush1.msra.mxu0 %v2301
        %2554 = vmatprep.subr.mxu0 %v2304
        %2555 = vmatpush1.msra.mxu0 %v2303
        %2556 = vmatprep.subr.mxu0 %v2306
        %2557 = vmatpush1.msra.mxu0 %v2305
        %2558 = vmatprep.subr.mxu0 %v2308
        %2559 = vmatpush1.msra.mxu0 %v2307
        %2560 = vmatprep.subr.mxu0 %v2310
        %2561 = vmatpush1.msra.mxu0 %v2309
        %2562 = vmatprep.subr.mxu0 %v2312
        %2563 = vmatpush1.msra.mxu0 %v2311
        %2564 = vmatprep.subr.mxu0 %v2314
        %2565 = vmatpush1.msra.mxu0 %v2313
        %2566 = vmatprep.subr.mxu0 %v2316
        %2567 = vmatpush1.msra.mxu0 %v2315
        %2568 = vmatprep.subr.mxu0 %v2318
        %2569 = vmatpush1.msra.mxu0 %v2317
        %2570 = vmatprep.subr.mxu0 %v2320
        %2571 = vmatpush1.msra.mxu0 %v2319
        %2572 = vmatprep.subr.mxu0 %v2322
        %2573 = vmatpush1.msra.mxu0 %v2321
        %2574 = vmatprep.subr.mxu0 %v2324
        %2575 = vmatpush1.msra.mxu0 %v2323
        %2576 = vmatprep.subr.mxu0 %v2326
        %2577 = vmatpush1.msra.mxu0 %v2325
        %2578 = vmatprep.subr.mxu0 %v2328
        %2579 = vmatpush1.msra.mxu0 %v2327
        %2580 = vmatprep.subr.mxu0 %v2330
        %2581 = vmatpush1.msra.mxu0 %v2329
        %2582 = vmatprep.subr.mxu0 %v2332
        %2583 = vmatpush1.msra.mxu0 %v2331
        %2584 = vmatprep.subr.mxu0 %v2334
        %2585 = vmatpush1.msra.mxu0 %v2333
        %2586 = vmatprep.subr.mxu0 %v2336
        %2587 = vmatpush1.msra.mxu0 %v2335
        %2588 = vmatprep.subr.mxu0 %v2338
        %2589 = vmatpush1.msra.mxu0 %v2337
        %2590 = vmatprep.subr.mxu0 %v2340
        %2591 = vmatpush1.msra.mxu0 %v2339
        %2592 = vmatprep.subr.mxu0 %v2342
        %2593 = vmatpush1.msra.mxu0 %v2341
        %2594 = vmatprep.subr.mxu0 %v2344
        %2595 = vmatpush1.msra.mxu0 %v2343
        %2596 = vmatprep.subr.mxu0 %v2346
        %2597 = vmatpush1.msra.mxu0 %v2345
        %2598 = vmatprep.subr.mxu0 %v2348
        %2599 = vmatpush1.msra.mxu0 %v2347
        %2600 = vmatprep.subr.mxu0 %v2350
        %2601 = vmatpush1.msra.mxu0 %v2349
        %2602 = vmatprep.subr.mxu0 %v2352
        %2603 = vmatpush1.msra.mxu0 %v2351
        %2604 = vmatprep.subr.mxu0 %v2354
        %2605 = vmatpush1.msra.mxu0 %v2353
        %2606 = vmatprep.mubr.f32.mxu0 %v2505
        %2607 = vmatmul.mubr.f32.gmra.mrb[0].mxu0 %v2502
        %v2608 = vpop.f32.mrb[0].mxu0
        %v2609 = vadd.f32 %v2489, %v2608
        %v2610 = vpop.f32.mrb[0].mxu0
        %v2611 = vadd.f32 %v2493, %v2610
        %2612 = vmatprep.mubr.f32.mxu0 %v2521
        %2613 = vmatmul.mubr.f32.gmra.mrb[0].mxu0 %v2519
        %v2614 = vpop.f32.mrb[0].mxu0
        %v2615 = vadd.f32 %v2489, %v2614
        %v2616 = vpop.f32.mrb[0].mxu0
        %v2617 = vadd.f32 %v2493, %v2616
        %2618 = vdwg.mxu0
        %2619 = vmatprep.subr.mxu0 %v2356
        %2620 = vmatpush1.msra.mxu0 %v2355
        %2621 = vmatprep.subr.mxu0 %v2358
        %2622 = vmatpush1.msra.mxu0 %v2357
        %2623 = vmatprep.subr.mxu0 %v2360
        %2624 = vmatpush1.msra.mxu0 %v2359
        %2625 = vmatprep.subr.mxu0 %v2362
        %2626 = vmatpush1.msra.mxu0 %v2361
        %2627 = vmatprep.subr.mxu0 %v2364
        %2628 = vmatpush1.msra.mxu0 %v2363
        %2629 = vmatprep.subr.mxu0 %v2366
        %2630 = vmatpush1.msra.mxu0 %v2365
        %2631 = vmatprep.subr.mxu0 %v2368
        %2632 = vmatpush1.msra.mxu0 %v2367
        %2633 = vmatprep.subr.mxu0 %v2370
        %2634 = vmatpush1.msra.mxu0 %v2369
        %2635 = vmatprep.subr.mxu0 %v2372
        %2636 = vmatpush1.msra.mxu0 %v2371
        %2637 = vmatprep.subr.mxu0 %v2374
        %2638 = vmatpush1.msra.mxu0 %v2373
        %2639 = vmatprep.subr.mxu0 %v2376
        %2640 = vmatpush1.msra.mxu0 %v2375
        %2641 = vmatprep.subr.mxu0 %v2378
        %2642 = vmatpush1.msra.mxu0 %v2377
        %2643 = vmatprep.subr.mxu0 %v2380
        %2644 = vmatpush1.msra.mxu0 %v2379
        %2645 = vmatprep.subr.mxu0 %v2382
        %2646 = vmatpush1.msra.mxu0 %v2381
        %2647 = vmatprep.subr.mxu0 %v2384
        %2648 = vmatpush1.msra.mxu0 %v2383
        %2649 = vmatprep.subr.mxu0 %v2386
        %2650 = vmatpush1.msra.mxu0 %v2385
        %2651 = vmatprep.subr.mxu0 %v2388
        %2652 = vmatpush1.msra.mxu0 %v2387
        %2653 = vmatprep.subr.mxu0 %v2390
        %2654 = vmatpush1.msra.mxu0 %v2389
        %2655 = vmatprep.subr.mxu0 %v2392
        %2656 = vmatpush1.msra.mxu0 %v2391
        %2657 = vmatprep.subr.mxu0 %v2394
        %2658 = vmatpush1.msra.mxu0 %v2393
        %2659 = vmatprep.subr.mxu0 %v2396
        %2660 = vmatpush1.msra.mxu0 %v2395
        %2661 = vmatprep.subr.mxu0 %v2398
        %2662 = vmatpush1.msra.mxu0 %v2397
        %2663 = vmatprep.subr.mxu0 %v2400
        %2664 = vmatpush1.msra.mxu0 %v2399
        %2665 = vmatprep.subr.mxu0 %v2402
        %2666 = vmatpush1.msra.mxu0 %v2401
        %2667 = vmatprep.subr.mxu0 %v2404
        %2668 = vmatpush1.msra.mxu0 %v2403
        %2669 = vmatprep.subr.mxu0 %v2406
        %2670 = vmatpush1.msra.mxu0 %v2405
        %2671 = vmatprep.subr.mxu0 %v2408
        %2672 = vmatpush1.msra.mxu0 %v2407
        %2673 = vmatprep.subr.mxu0 %v2410
        %2674 = vmatpush1.msra.mxu0 %v2409
        %2675 = vmatprep.subr.mxu0 %v2412
        %2676 = vmatpush1.msra.mxu0 %v2411
        %2677 = vmatprep.subr.mxu0 %v2414
        %2678 = vmatpush1.msra.mxu0 %v2413
        %2679 = vmatprep.subr.mxu0 %v2416
        %2680 = vmatpush1.msra.mxu0 %v2415
        %2681 = vmatprep.subr.mxu0 %v2418
        %2682 = vmatpush1.msra.mxu0 %v2417
        %2683 = vmatprep.mubr.f32.mxu0 %v2511
        %2684 = vmatmul.mubr.f32.gmra.mrb[0].mxu0 %v2508
        %v2685 = vpop.f32.mrb[0].mxu0
        %v2686 = vadd.f32 %v2609, %v2685
        %v2687 = vpop.f32.mrb[0].mxu0
        %v2688 = vadd.f32 %v2611, %v2687
        %2689 = vmatprep.mubr.f32.mxu0 %v2525
        %2690 = vmatmul.mubr.f32.gmra.mrb[0].mxu0 %v2523
        %v2691 = vpop.f32.mrb[0].mxu0
        %v2692 = vadd.f32 %v2615, %v2691
        %v2693 = vpop.f32.mrb[0].mxu0
        %v2694 = vadd.f32 %v2617, %v2693
        %2695 = vdwg.mxu0
        %2696 = vmatprep.subr.mxu0 %v2420
        %2697 = vmatpush1.msra.mxu0 %v2419
        %2698 = vmatprep.subr.mxu0 %v2422
        %2699 = vmatpush1.msra.mxu0 %v2421
        %2700 = vmatprep.subr.mxu0 %v2424
        %2701 = vmatpush1.msra.mxu0 %v2423
        %2702 = vmatprep.subr.mxu0 %v2426
        %2703 = vmatpush1.msra.mxu0 %v2425
        %2704 = vmatprep.subr.mxu0 %v2428
        %2705 = vmatpush1.msra.mxu0 %v2427
        %2706 = vmatprep.subr.mxu0 %v2430
        %2707 = vmatpush1.msra.mxu0 %v2429
        %2708 = vmatprep.subr.mxu0 %v2432
        %2709 = vmatpush1.msra.mxu0 %v2431
        %2710 = vmatprep.subr.mxu0 %v2434
        %2711 = vmatpush1.msra.mxu0 %v2433
        %2712 = vmatprep.subr.mxu0 %v2436
        %2713 = vmatpush1.msra.mxu0 %v2435
        %2714 = vmatprep.subr.mxu0 %v2438
        %2715 = vmatpush1.msra.mxu0 %v2437
        %2716 = vmatprep.subr.mxu0 %v2440
        %2717 = vmatpush1.msra.mxu0 %v2439
        %2718 = vmatprep.subr.mxu0 %v2442
        %2719 = vmatpush1.msra.mxu0 %v2441
        %2720 = vmatprep.subr.mxu0 %v2444
        %2721 = vmatpush1.msra.mxu0 %v2443
        %2722 = vmatprep.subr.mxu0 %v2446
        %2723 = vmatpush1.msra.mxu0 %v2445
        %2724 = vmatprep.subr.mxu0 %v2448
        %2725 = vmatpush1.msra.mxu0 %v2447
        %2726 = vmatprep.subr.mxu0 %v2450
        %2727 = vmatpush1.msra.mxu0 %v2449
        %2728 = vmatprep.subr.mxu0 %v2452
        %2729 = vmatpush1.msra.mxu0 %v2451
        %2730 = vmatprep.subr.mxu0 %v2454
        %2731 = vmatpush1.msra.mxu0 %v2453
        %2732 = vmatprep.subr.mxu0 %v2456
        %2733 = vmatpush1.msra.mxu0 %v2455
        %2734 = vmatprep.subr.mxu0 %v2458
        %2735 = vmatpush1.msra.mxu0 %v2457
        %2736 = vmatprep.subr.mxu0 %v2460
        %2737 = vmatpush1.msra.mxu0 %v2459
        %2738 = vmatprep.subr.mxu0 %v2462
        %2739 = vmatpush1.msra.mxu0 %v2461
        %2740 = vmatprep.subr.mxu0 %v2464
        %2741 = vmatpush1.msra.mxu0 %v2463
        %2742 = vmatprep.subr.mxu0 %v2466
        %2743 = vmatpush1.msra.mxu0 %v2465
        %2744 = vmatprep.subr.mxu0 %v2468
        %2745 = vmatpush1.msra.mxu0 %v2467
        %2746 = vmatprep.subr.mxu0 %v2470
        %2747 = vmatpush1.msra.mxu0 %v2469
        %2748 = vmatprep.subr.mxu0 %v2472
        %2749 = vmatpush1.msra.mxu0 %v2471
        %2750 = vmatprep.subr.mxu0 %v2474
        %2751 = vmatpush1.msra.mxu0 %v2473
        %2752 = vmatprep.subr.mxu0 %v2476
        %2753 = vmatpush1.msra.mxu0 %v2475
        %2754 = vmatprep.subr.mxu0 %v2478
        %2755 = vmatpush1.msra.mxu0 %v2477
        %2756 = vmatprep.subr.mxu0 %v2480
        %2757 = vmatpush1.msra.mxu0 %v2479
        %2758 = vmatprep.subr.mxu0 %v2482
        %2759 = vmatpush1.msra.mxu0 %v2481
        %2760 = vmatprep.mubr.f32.mxu0 %v2517
        %2761 = vmatmul.mubr.f32.gmra.mrb[0].mxu0 %v2514
        %v2762 = vpop.f32.mrb[0].mxu0
        %v2763 = vadd.f32 %v2686, %v2762
        %v2764 = vpop.f32.mrb[0].mxu0
        %v2765 = vadd.f32 %v2688, %v2764
        %2766 = vmatprep.mubr.f32.mxu0 %v2529
        %2767 = vmatmul.mubr.f32.gmra.mrb[0].mxu0 %v2527
        %v2768 = vpop.f32.mrb[0].mxu0
        %v2769 = vadd.f32 %v2692, %v2768
        %v2770 = vpop.f32.mrb[0].mxu0
        %v2771 = vadd.f32 %v2694, %v2770
        %2772 = vdwg.mxu0
        %v2773 = vadd.f32 %v2763, %v2769
        %v2774 = vrot.slane %v2773, 4
        %v2775 = vadd.f32 %v2773, %v2774
        %v2776 = vrot.slane %v2775, 2
        %v2777 = vadd.f32 %v2775, %v2776
        %v2778 = vrot.slane %v2777, 1
        %v2779 = vadd.f32 %v2777, %v2778
        %v2780 = vadd.f32 %v2765, %v2771
        %v2781 = vrot.slane %v2780, 4
        %v2782 = vadd.f32 %v2780, %v2781
        %v2783 = vrot.slane %v2782, 2
        %v2784 = vadd.f32 %v2782, %v2783
        %v2785 = vrot.slane %v2784, 1
        %v2786 = vadd.f32 %v2784, %v2785
        %s2787 = scalar_lea.vmem [#allocation9], 256
        %v2788 = vld [vmem:[%s2787] sm:$0xff]
        %v2789 = vld [vmem:[%s2787 + $0x8] sm:$0xff]
        %v2790 = vld [vmem:[%s2787 + $0x10] sm:$0xff]
        %v2791 = vld [vmem:[%s2787 + $0x18] sm:$0xff]
        %v2792 = vld [vmem:[%s2787 + $0x20] sm:$0xff]
        %v2793 = vld [vmem:[%s2787 + $0x28] sm:$0xff]
        %v2794 = vld [vmem:[%s2787 + $0x30] sm:$0xff]
        %v2795 = vld [vmem:[%s2787 + $0x38] sm:$0xff]
        %v2796 = vld [vmem:[%s2787 + $0x40] sm:$0xff]
        %v2797 = vld [vmem:[%s2787 + $0x48] sm:$0xff]
        %v2798 = vld [vmem:[%s2787 + $0x50] sm:$0xff]
        %v2799 = vld [vmem:[%s2787 + $0x58] sm:$0xff]
        %v2800 = vld [vmem:[%s2787 + $0x60] sm:$0xff]
        %v2801 = vld [vmem:[%s2787 + $0x68] sm:$0xff]
        %v2802 = vld [vmem:[%s2787 + $0x70] sm:$0xff]
        %v2803 = vld [vmem:[%s2787 + $0x78] sm:$0xff]
        %v2804 = vld [vmem:[%s2787 + $0x80] sm:$0xff]
        %v2805 = vld [vmem:[%s2787 + $0x88] sm:$0xff]
        %v2806 = vld [vmem:[%s2787 + $0x90] sm:$0xff]
        %v2807 = vld [vmem:[%s2787 + $0x98] sm:$0xff]
        %v2808 = vld [vmem:[%s2787 + $0xa0] sm:$0xff]
        %v2809 = vld [vmem:[%s2787 + $0xa8] sm:$0xff]
        %v2810 = vld [vmem:[%s2787 + $0xb0] sm:$0xff]
        %v2811 = vld [vmem:[%s2787 + $0xb8] sm:$0xff]
        %v2812 = vld [vmem:[%s2787 + $0xc0] sm:$0xff]
        %v2813 = vld [vmem:[%s2787 + $0xc8] sm:$0xff]
        %v2814 = vld [vmem:[%s2787 + $0xd0] sm:$0xff]
        %v2815 = vld [vmem:[%s2787 + $0xd8] sm:$0xff]
        %v2816 = vld [vmem:[%s2787 + $0xe0] sm:$0xff]
        %v2817 = vld [vmem:[%s2787 + $0xe8] sm:$0xff]
        %v2818 = vld [vmem:[%s2787 + $0xf0] sm:$0xff]
        %v2819 = vld [vmem:[%s2787 + $0xf8] sm:$0xff]
        %s2820 = scalar_lea.vmem [#allocation11], 1
        %v2821 = vld [vmem:[%s2820] sm:$0x1]
        %2822 = vmatprep.subr.mxu0 0.0
        %2823 = vmatpush1.msra.mxu0 %v2788
        %2824 = vmatprep.subr.mxu0 0.0
        %2825 = vmatpush1.msra.mxu0 %v2789
        %2826 = vmatprep.subr.mxu0 0.0
        %2827 = vmatpush1.msra.mxu0 %v2790
        %2828 = vmatprep.subr.mxu0 0.0
        %2829 = vmatpush1.msra.mxu0 %v2791
        %2830 = vmatprep.subr.mxu0 0.0
        %2831 = vmatpush1.msra.mxu0 %v2792
        %2832 = vmatprep.subr.mxu0 0.0
        %2833 = vmatpush1.msra.mxu0 %v2793
        %2834 = vmatprep.subr.mxu0 0.0
        %2835 = vmatpush1.msra.mxu0 %v2794
        %2836 = vmatprep.subr.mxu0 0.0
        %2837 = vmatpush1.msra.mxu0 %v2795
        %2838 = vmatprep.subr.mxu0 0.0
        %2839 = vmatpush1.msra.mxu0 %v2796
        %2840 = vmatprep.subr.mxu0 0.0
        %2841 = vmatpush1.msra.mxu0 %v2797
        %2842 = vmatprep.subr.mxu0 0.0
        %2843 = vmatpush1.msra.mxu0 %v2798
        %2844 = vmatprep.subr.mxu0 0.0
        %2845 = vmatpush1.msra.mxu0 %v2799
        %2846 = vmatprep.subr.mxu0 0.0
        %2847 = vmatpush1.msra.mxu0 %v2800
        %2848 = vmatprep.subr.mxu0 0.0
        %2849 = vmatpush1.msra.mxu0 %v2801
        %2850 = vmatprep.subr.mxu0 0.0
        %2851 = vmatpush1.msra.mxu0 %v2802
        %2852 = vmatprep.subr.mxu0 0.0
        %2853 = vmatpush1.msra.mxu0 %v2803
        %2854 = vmatprep.subr.mxu0 0.0
        %2855 = vmatpush1.msra.mxu0 %v2804
        %2856 = vmatprep.subr.mxu0 0.0
        %2857 = vmatpush1.msra.mxu0 %v2805
        %2858 = vmatprep.subr.mxu0 0.0
        %2859 = vmatpush1.msra.mxu0 %v2806
        %2860 = vmatprep.subr.mxu0 0.0
        %2861 = vmatpush1.msra.mxu0 %v2807
        %2862 = vmatprep.subr.mxu0 0.0
        %2863 = vmatpush1.msra.mxu0 %v2808
        %2864 = vmatprep.subr.mxu0 0.0
        %2865 = vmatpush1.msra.mxu0 %v2809
        %2866 = vmatprep.subr.mxu0 0.0
        %2867 = vmatpush1.msra.mxu0 %v2810
        %2868 = vmatprep.subr.mxu0 0.0
        %2869 = vmatpush1.msra.mxu0 %v2811
        %2870 = vmatprep.subr.mxu0 0.0
        %2871 = vmatpush1.msra.mxu0 %v2812
        %2872 = vmatprep.subr.mxu0 0.0
        %2873 = vmatpush1.msra.mxu0 %v2813
        %2874 = vmatprep.subr.mxu0 0.0
        %2875 = vmatpush1.msra.mxu0 %v2814
        %2876 = vmatprep.subr.mxu0 0.0
        %2877 = vmatpush1.msra.mxu0 %v2815
        %2878 = vmatprep.subr.mxu0 0.0
        %2879 = vmatpush1.msra.mxu0 %v2816
        %2880 = vmatprep.subr.mxu0 0.0
        %2881 = vmatpush1.msra.mxu0 %v2817
        %2882 = vmatprep.subr.mxu0 0.0
        %2883 = vmatpush1.msra.mxu0 %v2818
        %2884 = vmatprep.subr.mxu0 0.0
        %2885 = vmatpush1.msra.mxu0 %v2819
        %2886 = vmatprep.mubr.f32.mxu0 %v2786
        %2887 = vmatmul.mubr.f32.gmra.mrb[0].mxu0 %v2779
        %v2888 = vpop.f32.mrb[0].mxu0
        %v2889 = vadd.f32 %v2821, %v2888
        %v2890 = vpop.f32.mrb[0].mxu0
        %2891 = vdwg.mxu0
        %v2892 = vmax.f32 %v2889, 0.0
        %s2893 = scalar_lea.vmem [#allocation12], 256
        %v2894 = vld [vmem:[%s2893] sm:$0xff]
        %v2895 = vld [vmem:[%s2893 + $0x8] sm:$0xff]
        %v2896 = vld [vmem:[%s2893 + $0x10] sm:$0xff]
        %v2897 = vld [vmem:[%s2893 + $0x18] sm:$0xff]
        %v2898 = vld [vmem:[%s2893 + $0x20] sm:$0xff]
        %v2899 = vld [vmem:[%s2893 + $0x28] sm:$0xff]
        %v2900 = vld [vmem:[%s2893 + $0x30] sm:$0xff]
        %v2901 = vld [vmem:[%s2893 + $0x38] sm:$0xff]
        %v2902 = vld [vmem:[%s2893 + $0x40] sm:$0xff]
        %v2903 = vld [vmem:[%s2893 + $0x48] sm:$0xff]
        %v2904 = vld [vmem:[%s2893 + $0x50] sm:$0xff]
        %v2905 = vld [vmem:[%s2893 + $0x58] sm:$0xff]
        %v2906 = vld [vmem:[%s2893 + $0x60] sm:$0xff]
        %v2907 = vld [vmem:[%s2893 + $0x68] sm:$0xff]
        %v2908 = vld [vmem:[%s2893 + $0x70] sm:$0xff]
        %v2909 = vld [vmem:[%s2893 + $0x78] sm:$0xff]
        %v2910 = vld [vmem:[%s2893 + $0x80] sm:$0xff]
        %v2911 = vld [vmem:[%s2893 + $0x88] sm:$0xff]
        %v2912 = vld [vmem:[%s2893 + $0x90] sm:$0xff]
        %v2913 = vld [vmem:[%s2893 + $0x98] sm:$0xff]
        %v2914 = vld [vmem:[%s2893 + $0xa0] sm:$0xff]
        %v2915 = vld [vmem:[%s2893 + $0xa8] sm:$0xff]
        %v2916 = vld [vmem:[%s2893 + $0xb0] sm:$0xff]
        %v2917 = vld [vmem:[%s2893 + $0xb8] sm:$0xff]
        %v2918 = vld [vmem:[%s2893 + $0xc0] sm:$0xff]
        %v2919 = vld [vmem:[%s2893 + $0xc8] sm:$0xff]
        %v2920 = vld [vmem:[%s2893 + $0xd0] sm:$0xff]
        %v2921 = vld [vmem:[%s2893 + $0xd8] sm:$0xff]
        %v2922 = vld [vmem:[%s2893 + $0xe0] sm:$0xff]
        %v2923 = vld [vmem:[%s2893 + $0xe8] sm:$0xff]
        %v2924 = vld [vmem:[%s2893 + $0xf0] sm:$0xff]
        %v2925 = vld [vmem:[%s2893 + $0xf8] sm:$0xff]
        %s2926 = scalar_lea.vmem [#allocation14], 2
        %v2927 = vld [vmem:[%s2926] sm:$0x3]
        %v2929 = vlaneseq
        %v2930 = vshrl.u32 %v2929, 7
        %v2931 = vsub.s32 0, %v2930
        %v2932 = vrot.slane %v2927, %v2931
        %v2933 = vlaneseq
        %v2934 = vshrl.u32 %v2933, 7
        %v2935 = vsub.s32 1, %v2934
        %v2936 = vrot.slane %v2927, %v2935
        %2939 = vmatprep.subr.mxu0 %v2895
        %2940 = vmatpush1.msra.mxu0 %v2894
        %2941 = vmatprep.subr.mxu0 %v2897
        %2942 = vmatpush1.msra.mxu0 %v2896
        %2943 = vmatprep.subr.mxu0 %v2899
        %2944 = vmatpush1.msra.mxu0 %v2898
        %2945 = vmatprep.subr.mxu0 %v2901
        %2946 = vmatpush1.msra.mxu0 %v2900
        %2947 = vmatprep.subr.mxu0 %v2903
        %2948 = vmatpush1.msra.mxu0 %v2902
        %2949 = vmatprep.subr.mxu0 %v2905
        %2950 = vmatpush1.msra.mxu0 %v2904
        %2951 = vmatprep.subr.mxu0 %v2907
        %2952 = vmatpush1.msra.mxu0 %v2906
        %2953 = vmatprep.subr.mxu0 %v2909
        %2954 = vmatpush1.msra.mxu0 %v2908
        %2955 = vmatprep.subr.mxu0 %v2911
        %2956 = vmatpush1.msra.mxu0 %v2910
        %2957 = vmatprep.subr.mxu0 %v2913
        %2958 = vmatpush1.msra.mxu0 %v2912
        %2959 = vmatprep.subr.mxu0 %v2915
        %2960 = vmatpush1.msra.mxu0 %v2914
        %2961 = vmatprep.subr.mxu0 %v2917
        %2962 = vmatpush1.msra.mxu0 %v2916
        %2963 = vmatprep.subr.mxu0 %v2919
        %2964 = vmatpush1.msra.mxu0 %v2918
        %2965 = vmatprep.subr.mxu0 %v2921
        %2966 = vmatpush1.msra.mxu0 %v2920
        %2967 = vmatprep.subr.mxu0 %v2923
        %2968 = vmatpush1.msra.mxu0 %v2922
        %2969 = vmatprep.subr.mxu0 %v2925
        %2970 = vmatpush1.msra.mxu0 %v2924
        %2971 = vmatprep.subr.mxu0 0.0
        %2972 = vmatpush1.msra.mxu0 0.0
        %2973 = vmatprep.subr.mxu0 0.0
        %2974 = vmatpush1.msra.mxu0 0.0
        %2975 = vmatprep.subr.mxu0 0.0
        %2976 = vmatpush1.msra.mxu0 0.0
        %2977 = vmatprep.subr.mxu0 0.0
        %2978 = vmatpush1.msra.mxu0 0.0
        %2979 = vmatprep.subr.mxu0 0.0
        %2980 = vmatpush1.msra.mxu0 0.0
        %2981 = vmatprep.subr.mxu0 0.0
        %2982 = vmatpush1.msra.mxu0 0.0
        %2983 = vmatprep.subr.mxu0 0.0
        %2984 = vmatpush1.msra.mxu0 0.0
        %2985 = vmatprep.subr.mxu0 0.0
        %2986 = vmatpush1.msra.mxu0 0.0
        %2987 = vmatprep.subr.mxu0 0.0
        %2988 = vmatpush1.msra.mxu0 0.0
        %2989 = vmatprep.subr.mxu0 0.0
        %2990 = vmatpush1.msra.mxu0 0.0
        %2991 = vmatprep.subr.mxu0 0.0
        %2992 = vmatpush1.msra.mxu0 0.0
        %2993 = vmatprep.subr.mxu0 0.0
        %2994 = vmatpush1.msra.mxu0 0.0
        %2995 = vmatprep.subr.mxu0 0.0
        %2996 = vmatpush1.msra.mxu0 0.0
        %2997 = vmatprep.subr.mxu0 0.0
        %2998 = vmatpush1.msra.mxu0 0.0
        %2999 = vmatprep.subr.mxu0 0.0
        %3000 = vmatpush1.msra.mxu0 0.0
        %3001 = vmatprep.subr.mxu0 0.0
        %3002 = vmatpush1.msra.mxu0 0.0
        %3003 = vmatprep.mubr.f32.mxu0 0.0
        %3004 = vmatmul.mubr.f32.gmra.mrb[0].mxu0 %v2892
        %v3005 = vpop.f32.mrb[0].mxu0
        %v3006 = vadd.f32 %v2932, %v3005
        %v3007 = vpop.f32.mrb[0].mxu0
        %v3008 = vadd.f32 %v2936, %v3007
        %3009 = vdwg.mxu0
        %v3010 = vxor.u32 %v3006, 2147483648
        %v3011 = vxor.u32 %v3008, 2147483648
        %v3012 = vmul.f32 %v3010, 1.442695
        %v3013 = vpow.pop %v3012
        %v3014 = vmul.f32 %v3011, 1.442695
        %v3015 = vpow.pop %v3014
        %v3016 = vadd.f32 %v3013, 1.0
        %v3017 = vadd.f32 %v3015, 1.0
        %v3018 = vrcp.pop %v3016
        %v3019 = vmul.f32 1.0, %v3018
        %v3020 = vrcp.pop %v3017
        %v3021 = vmul.f32 1.0, %v3020
        %v3022 = vlaneseq
        %v3023 = vshrl.u32 %v3022, 7
        %v3024 = vsub.s32 0, %v3023
        %v3025 = vrot.slane %v3019, %v3024
        %v3026 = vlaneseq
        %v3027 = vshrl.u32 %v3026, 7
        %v3028 = vsub.s32 0, %v3027
        %v3029 = vrot.slane %v3021, %v3028
        %v3030 = vmul.f32 %v2763, %v3025
        %v3031 = vmul.f32 %v2765, %v3029
        %v3032 = vmul.f32 %v2769, %v3025
        %v3033 = vmul.f32 %v2771, %v3029
        %v3034 = vadd.f32 %v1711, %v3030
        %v3035 = vadd.f32 %v1712, %v3031
        %v3036 = vadd.f32 %v1713, %v3032
        %v3037 = vadd.f32 %v1714, %v3033
        %3038 = vst [vmem:[#allocation2 + $0x10] sm:$0xff] %v3034
        %3039 = vst [vmem:[#allocation2 + $0x18] sm:$0xff] %v3035
        %3040 = vst [vmem:[#allocation2 + $0x20] sm:$0xff] %v3036
        %3041 = vst [vmem:[#allocation2 + $0x28] sm:$0xff] %v3037
        %v3042 = vld [vmem:[#allocation2] sm:$0x80]
        %v3043 = vld [vmem:[#allocation2 + $0x8] sm:$0x80]
        %v3044 = vld [vmem:[#allocation2 + $0x10] sm:$0xff]
        %v3045 = vld [vmem:[#allocation2 + $0x18] sm:$0xff]
        %v3046 = vld [vmem:[#allocation2 + $0x20] sm:$0x7f]
        %v3047 = vld [vmem:[#allocation2 + $0x28] sm:$0x7f]
        %v3048 = vld [vmem:[#allocation2 + $0x20] sm:$0xff]
        %v3049 = vld [vmem:[#allocation2 + $0x28] sm:$0xff]
        %v3050 = vld [vmem:[#allocation2 + $0x10] sm:$0xfe]
        %v3051 = vld [vmem:[#allocation2 + $0x18] sm:$0xfe]
        %v3052 = vld [vmem:[#allocation2 + $0x20] sm:$0xff]
        %v3053 = vld [vmem:[#allocation2 + $0x28] sm:$0xff]
        %v3054 = vld [vmem:[#allocation2 + $0x30] sm:$0x1]
        %v3055 = vld [vmem:[#allocation2 + $0x38] sm:$0x1]
        %v3060 = vrot.slane %v3044, 1
        %v3061 = vrot.slane %v3045, 1
        %v3062 = vrot.slane %v3048, 1
        %v3063 = vsel %vm417, %v3060, %v3062
        %v3064 = vrot.slane %v3049, 1
        %v3065 = vsel %vm417, %v3061, %v3064
        %v3072 = vrot.slane %v3050, 2
        %v3073 = vrot.slane %v3051, 2
        %v3074 = vrot.slane %v3052, 2
        %v3075 = vsel %vm430, %v3072, %v3074
        %v3076 = vrot.slane %v3053, 2
        %v3077 = vsel %vm430, %v3073, %v3076
        %v3078 = vrot.slane %v3054, 2
        %v3079 = vsel %vm430, %v3074, %v3078
        %v3080 = vrot.slane %v3055, 2
        %v3081 = vsel %vm430, %v3076, %v3080
        %s3082 = scalar_lea.vmem [#allocation6], 6144
        %v3083 = vld [vmem:[%s3082] sm:$0xff]
        %v3084 = vld [vmem:[%s3082 + $0x8] sm:$0xff]
        %v3085 = vld [vmem:[%s3082 + $0x10] sm:$0xff]
        %v3086 = vld [vmem:[%s3082 + $0x18] sm:$0xff]
        %v3087 = vld [vmem:[%s3082 + $0x20] sm:$0xff]
        %v3088 = vld [vmem:[%s3082 + $0x28] sm:$0xff]
        %v3089 = vld [vmem:[%s3082 + $0x30] sm:$0xff]
        %v3090 = vld [vmem:[%s3082 + $0x38] sm:$0xff]
        %v3091 = vld [vmem:[%s3082 + $0x40] sm:$0xff]
        %v3092 = vld [vmem:[%s3082 + $0x48] sm:$0xff]
        %v3093 = vld [vmem:[%s3082 + $0x50] sm:$0xff]
        %v3094 = vld [vmem:[%s3082 + $0x58] sm:$0xff]
        %v3095 = vld [vmem:[%s3082 + $0x60] sm:$0xff]
        %v3096 = vld [vmem:[%s3082 + $0x68] sm:$0xff]
        %v3097 = vld [vmem:[%s3082 + $0x70] sm:$0xff]
        %v3098 = vld [vmem:[%s3082 + $0x78] sm:$0xff]
        %v3099 = vld [vmem:[%s3082 + $0x80] sm:$0xff]
        %v3100 = vld [vmem:[%s3082 + $0x88] sm:$0xff]
        %v3101 = vld [vmem:[%s3082 + $0x90] sm:$0xff]
        %v3102 = vld [vmem:[%s3082 + $0x98] sm:$0xff]
        %v3103 = vld [vmem:[%s3082 + $0xa0] sm:$0xff]
        %v3104 = vld [vmem:[%s3082 + $0xa8] sm:$0xff]
        %v3105 = vld [vmem:[%s3082 + $0xb0] sm:$0xff]
        %v3106 = vld [vmem:[%s3082 + $0xb8] sm:$0xff]
        %v3107 = vld [vmem:[%s3082 + $0xc0] sm:$0xff]
        %v3108 = vld [vmem:[%s3082 + $0xc8] sm:$0xff]
        %v3109 = vld [vmem:[%s3082 + $0xd0] sm:$0xff]
        %v3110 = vld [vmem:[%s3082 + $0xd8] sm:$0xff]
        %v3111 = vld [vmem:[%s3082 + $0xe0] sm:$0xff]
        %v3112 = vld [vmem:[%s3082 + $0xe8] sm:$0xff]
        %v3113 = vld [vmem:[%s3082 + $0xf0] sm:$0xff]
        %v3114 = vld [vmem:[%s3082 + $0xf8] sm:$0xff]
        %v3115 = vld [vmem:[%s3082 + $0x100] sm:$0xff]
        %v3116 = vld [vmem:[%s3082 + $0x108] sm:$0xff]
        %v3117 = vld [vmem:[%s3082 + $0x110] sm:$0xff]
        %v3118 = vld [vmem:[%s3082 + $0x118] sm:$0xff]
        %v3119 = vld [vmem:[%s3082 + $0x120] sm:$0xff]
        %v3120 = vld [vmem:[%s3082 + $0x128] sm:$0xff]
        %v3121 = vld [vmem:[%s3082 + $0x130] sm:$0xff]
        %v3122 = vld [vmem:[%s3082 + $0x138] sm:$0xff]
        %v3123 = vld [vmem:[%s3082 + $0x140] sm:$0xff]
        %v3124 = vld [vmem:[%s3082 + $0x148] sm:$0xff]
        %v3125 = vld [vmem:[%s3082 + $0x150] sm:$0xff]
        %v3126 = vld [vmem:[%s3082 + $0x158] sm:$0xff]
        %v3127 = vld [vmem:[%s3082 + $0x160] sm:$0xff]
        %v3128 = vld [vmem:[%s3082 + $0x168] sm:$0xff]
        %v3129 = vld [vmem:[%s3082 + $0x170] sm:$0xff]
        %v3130 = vld [vmem:[%s3082 + $0x178] sm:$0xff]
        %v3131 = vld [vmem:[%s3082 + $0x180] sm:$0xff]
        %v3132 = vld [vmem:[%s3082 + $0x188] sm:$0xff]
        %v3133 = vld [vmem:[%s3082 + $0x190] sm:$0xff]
        %v3134 = vld [vmem:[%s3082 + $0x198] sm:$0xff]
        %v3135 = vld [vmem:[%s3082 + $0x1a0] sm:$0xff]
        %v3136 = vld [vmem:[%s3082 + $0x1a8] sm:$0xff]
        %v3137 = vld [vmem:[%s3082 + $0x1b0] sm:$0xff]
        %v3138 = vld [vmem:[%s3082 + $0x1b8] sm:$0xff]
        %v3139 = vld [vmem:[%s3082 + $0x1c0] sm:$0xff]
        %v3140 = vld [vmem:[%s3082 + $0x1c8] sm:$0xff]
        %v3141 = vld [vmem:[%s3082 + $0x1d0] sm:$0xff]
        %v3142 = vld [vmem:[%s3082 + $0x1d8] sm:$0xff]
        %v3143 = vld [vmem:[%s3082 + $0x1e0] sm:$0xff]
        %v3144 = vld [vmem:[%s3082 + $0x1e8] sm:$0xff]
        %v3145 = vld [vmem:[%s3082 + $0x1f0] sm:$0xff]
        %v3146 = vld [vmem:[%s3082 + $0x1f8] sm:$0xff]
        %v3147 = vld [vmem:[%s3082 + $0x200] sm:$0xff]
        %v3148 = vld [vmem:[%s3082 + $0x208] sm:$0xff]
        %v3149 = vld [vmem:[%s3082 + $0x210] sm:$0xff]
        %v3150 = vld [vmem:[%s3082 + $0x218] sm:$0xff]
        %v3151 = vld [vmem:[%s3082 + $0x220] sm:$0xff]
        %v3152 = vld [vmem:[%s3082 + $0x228] sm:$0xff]
        %v3153 = vld [vmem:[%s3082 + $0x230] sm:$0xff]
        %v3154 = vld [vmem:[%s3082 + $0x238] sm:$0xff]
        %v3155 = vld [vmem:[%s3082 + $0x240] sm:$0xff]
        %v3156 = vld [vmem:[%s3082 + $0x248] sm:$0xff]
        %v3157 = vld [vmem:[%s3082 + $0x250] sm:$0xff]
        %v3158 = vld [vmem:[%s3082 + $0x258] sm:$0xff]
        %v3159 = vld [vmem:[%s3082 + $0x260] sm:$0xff]
        %v3160 = vld [vmem:[%s3082 + $0x268] sm:$0xff]
        %v3161 = vld [vmem:[%s3082 + $0x270] sm:$0xff]
        %v3162 = vld [vmem:[%s3082 + $0x278] sm:$0xff]
        %v3163 = vld [vmem:[%s3082 + $0x280] sm:$0xff]
        %v3164 = vld [vmem:[%s3082 + $0x288] sm:$0xff]
        %v3165 = vld [vmem:[%s3082 + $0x290] sm:$0xff]
        %v3166 = vld [vmem:[%s3082 + $0x298] sm:$0xff]
        %v3167 = vld [vmem:[%s3082 + $0x2a0] sm:$0xff]
        %v3168 = vld [vmem:[%s3082 + $0x2a8] sm:$0xff]
        %v3169 = vld [vmem:[%s3082 + $0x2b0] sm:$0xff]
        %v3170 = vld [vmem:[%s3082 + $0x2b8] sm:$0xff]
        %v3171 = vld [vmem:[%s3082 + $0x2c0] sm:$0xff]
        %v3172 = vld [vmem:[%s3082 + $0x2c8] sm:$0xff]
        %v3173 = vld [vmem:[%s3082 + $0x2d0] sm:$0xff]
        %v3174 = vld [vmem:[%s3082 + $0x2d8] sm:$0xff]
        %v3175 = vld [vmem:[%s3082 + $0x2e0] sm:$0xff]
        %v3176 = vld [vmem:[%s3082 + $0x2e8] sm:$0xff]
        %v3177 = vld [vmem:[%s3082 + $0x2f0] sm:$0xff]
        %v3178 = vld [vmem:[%s3082 + $0x2f8] sm:$0xff]
        %v3179 = vld [vmem:[%s3082 + $0x300] sm:$0xff]
        %v3180 = vld [vmem:[%s3082 + $0x308] sm:$0xff]
        %v3181 = vld [vmem:[%s3082 + $0x310] sm:$0xff]
        %v3182 = vld [vmem:[%s3082 + $0x318] sm:$0xff]
        %v3183 = vld [vmem:[%s3082 + $0x320] sm:$0xff]
        %v3184 = vld [vmem:[%s3082 + $0x328] sm:$0xff]
        %v3185 = vld [vmem:[%s3082 + $0x330] sm:$0xff]
        %v3186 = vld [vmem:[%s3082 + $0x338] sm:$0xff]
        %v3187 = vld [vmem:[%s3082 + $0x340] sm:$0xff]
        %v3188 = vld [vmem:[%s3082 + $0x348] sm:$0xff]
        %v3189 = vld [vmem:[%s3082 + $0x350] sm:$0xff]
        %v3190 = vld [vmem:[%s3082 + $0x358] sm:$0xff]
        %v3191 = vld [vmem:[%s3082 + $0x360] sm:$0xff]
        %v3192 = vld [vmem:[%s3082 + $0x368] sm:$0xff]
        %v3193 = vld [vmem:[%s3082 + $0x370] sm:$0xff]
        %v3194 = vld [vmem:[%s3082 + $0x378] sm:$0xff]
        %v3195 = vld [vmem:[%s3082 + $0x380] sm:$0xff]
        %v3196 = vld [vmem:[%s3082 + $0x388] sm:$0xff]
        %v3197 = vld [vmem:[%s3082 + $0x390] sm:$0xff]
        %v3198 = vld [vmem:[%s3082 + $0x398] sm:$0xff]
        %v3199 = vld [vmem:[%s3082 + $0x3a0] sm:$0xff]
        %v3200 = vld [vmem:[%s3082 + $0x3a8] sm:$0xff]
        %v3201 = vld [vmem:[%s3082 + $0x3b0] sm:$0xff]
        %v3202 = vld [vmem:[%s3082 + $0x3b8] sm:$0xff]
        %v3203 = vld [vmem:[%s3082 + $0x3c0] sm:$0xff]
        %v3204 = vld [vmem:[%s3082 + $0x3c8] sm:$0xff]
        %v3205 = vld [vmem:[%s3082 + $0x3d0] sm:$0xff]
        %v3206 = vld [vmem:[%s3082 + $0x3d8] sm:$0xff]
        %v3207 = vld [vmem:[%s3082 + $0x3e0] sm:$0xff]
        %v3208 = vld [vmem:[%s3082 + $0x3e8] sm:$0xff]
        %v3209 = vld [vmem:[%s3082 + $0x3f0] sm:$0xff]
        %v3210 = vld [vmem:[%s3082 + $0x3f8] sm:$0xff]
        %v3211 = vld [vmem:[%s3082 + $0x400] sm:$0xff]
        %v3212 = vld [vmem:[%s3082 + $0x408] sm:$0xff]
        %v3213 = vld [vmem:[%s3082 + $0x410] sm:$0xff]
        %v3214 = vld [vmem:[%s3082 + $0x418] sm:$0xff]
        %v3215 = vld [vmem:[%s3082 + $0x420] sm:$0xff]
        %v3216 = vld [vmem:[%s3082 + $0x428] sm:$0xff]
        %v3217 = vld [vmem:[%s3082 + $0x430] sm:$0xff]
        %v3218 = vld [vmem:[%s3082 + $0x438] sm:$0xff]
        %v3219 = vld [vmem:[%s3082 + $0x440] sm:$0xff]
        %v3220 = vld [vmem:[%s3082 + $0x448] sm:$0xff]
        %v3221 = vld [vmem:[%s3082 + $0x450] sm:$0xff]
        %v3222 = vld [vmem:[%s3082 + $0x458] sm:$0xff]
        %v3223 = vld [vmem:[%s3082 + $0x460] sm:$0xff]
        %v3224 = vld [vmem:[%s3082 + $0x468] sm:$0xff]
        %v3225 = vld [vmem:[%s3082 + $0x470] sm:$0xff]
        %v3226 = vld [vmem:[%s3082 + $0x478] sm:$0xff]
        %v3227 = vld [vmem:[%s3082 + $0x480] sm:$0xff]
        %v3228 = vld [vmem:[%s3082 + $0x488] sm:$0xff]
        %v3229 = vld [vmem:[%s3082 + $0x490] sm:$0xff]
        %v3230 = vld [vmem:[%s3082 + $0x498] sm:$0xff]
        %v3231 = vld [vmem:[%s3082 + $0x4a0] sm:$0xff]
        %v3232 = vld [vmem:[%s3082 + $0x4a8] sm:$0xff]
        %v3233 = vld [vmem:[%s3082 + $0x4b0] sm:$0xff]
        %v3234 = vld [vmem:[%s3082 + $0x4b8] sm:$0xff]
        %v3235 = vld [vmem:[%s3082 + $0x4c0] sm:$0xff]
        %v3236 = vld [vmem:[%s3082 + $0x4c8] sm:$0xff]
        %v3237 = vld [vmem:[%s3082 + $0x4d0] sm:$0xff]
        %v3238 = vld [vmem:[%s3082 + $0x4d8] sm:$0xff]
        %v3239 = vld [vmem:[%s3082 + $0x4e0] sm:$0xff]
        %v3240 = vld [vmem:[%s3082 + $0x4e8] sm:$0xff]
        %v3241 = vld [vmem:[%s3082 + $0x4f0] sm:$0xff]
        %v3242 = vld [vmem:[%s3082 + $0x4f8] sm:$0xff]
        %v3243 = vld [vmem:[%s3082 + $0x500] sm:$0xff]
        %v3244 = vld [vmem:[%s3082 + $0x508] sm:$0xff]
        %v3245 = vld [vmem:[%s3082 + $0x510] sm:$0xff]
        %v3246 = vld [vmem:[%s3082 + $0x518] sm:$0xff]
        %v3247 = vld [vmem:[%s3082 + $0x520] sm:$0xff]
        %v3248 = vld [vmem:[%s3082 + $0x528] sm:$0xff]
        %v3249 = vld [vmem:[%s3082 + $0x530] sm:$0xff]
        %v3250 = vld [vmem:[%s3082 + $0x538] sm:$0xff]
        %v3251 = vld [vmem:[%s3082 + $0x540] sm:$0xff]
        %v3252 = vld [vmem:[%s3082 + $0x548] sm:$0xff]
        %v3253 = vld [vmem:[%s3082 + $0x550] sm:$0xff]
        %v3254 = vld [vmem:[%s3082 + $0x558] sm:$0xff]
        %v3255 = vld [vmem:[%s3082 + $0x560] sm:$0xff]
        %v3256 = vld [vmem:[%s3082 + $0x568] sm:$0xff]
        %v3257 = vld [vmem:[%s3082 + $0x570] sm:$0xff]
        %v3258 = vld [vmem:[%s3082 + $0x578] sm:$0xff]
        %v3259 = vld [vmem:[%s3082 + $0x580] sm:$0xff]
        %v3260 = vld [vmem:[%s3082 + $0x588] sm:$0xff]
        %v3261 = vld [vmem:[%s3082 + $0x590] sm:$0xff]
        %v3262 = vld [vmem:[%s3082 + $0x598] sm:$0xff]
        %v3263 = vld [vmem:[%s3082 + $0x5a0] sm:$0xff]
        %v3264 = vld [vmem:[%s3082 + $0x5a8] sm:$0xff]
        %v3265 = vld [vmem:[%s3082 + $0x5b0] sm:$0xff]
        %v3266 = vld [vmem:[%s3082 + $0x5b8] sm:$0xff]
        %v3267 = vld [vmem:[%s3082 + $0x5c0] sm:$0xff]
        %v3268 = vld [vmem:[%s3082 + $0x5c8] sm:$0xff]
        %v3269 = vld [vmem:[%s3082 + $0x5d0] sm:$0xff]
        %v3270 = vld [vmem:[%s3082 + $0x5d8] sm:$0xff]
        %v3271 = vld [vmem:[%s3082 + $0x5e0] sm:$0xff]
        %v3272 = vld [vmem:[%s3082 + $0x5e8] sm:$0xff]
        %v3273 = vld [vmem:[%s3082 + $0x5f0] sm:$0xff]
        %v3274 = vld [vmem:[%s3082 + $0x5f8] sm:$0xff]
        %s3275 = scalar_lea.vmem [#allocation8], 8
        %v3276 = vld [vmem:[%s3275] sm:$0x3]
        %v3278 = vlaneseq
        %v3279 = vshrl.u32 %v3278, 7
        %v3280 = vsub.s32 0, %v3279
        %v3281 = vrot.slane %v3276, %v3280
        %v3282 = vlaneseq
        %v3283 = vshrl.u32 %v3282, 7
        %v3284 = vsub.s32 1, %v3283
        %v3285 = vrot.slane %v3276, %v3284
        %v3292 = vrot.slane %v3042, 7
        %v3293 = vrot.slane %v3044, 7
        %v3294 = vsel %vm649, %v3292, %v3293
        %v3295 = vrot.slane %v3043, 7
        %v3296 = vrot.slane %v3045, 7
        %v3297 = vsel %vm649, %v3295, %v3296
        %v3298 = vrot.slane %v3060, 7
        %v3299 = vrot.slane %v3063, 7
        %v3300 = vsel %vm649, %v3298, %v3299
        %v3301 = vrot.slane %v3061, 7
        %v3302 = vrot.slane %v3065, 7
        %v3303 = vsel %vm649, %v3301, %v3302
        %v3304 = vrot.slane %v3072, 7
        %v3305 = vrot.slane %v3075, 7
        %v3306 = vsel %vm649, %v3304, %v3305
        %v3307 = vrot.slane %v3073, 7
        %v3308 = vrot.slane %v3077, 7
        %v3309 = vsel %vm649, %v3307, %v3308
        %v3310 = vrot.slane %v3046, 7
        %v3311 = vsel %vm649, %v3293, %v3310
        %v3312 = vrot.slane %v3047, 7
        %v3313 = vsel %vm649, %v3296, %v3312
        %v3314 = vrot.slane %v3062, 7
        %v3315 = vsel %vm649, %v3299, %v3314
        %v3316 = vrot.slane %v3064, 7
        %v3317 = vsel %vm649, %v3302, %v3316
        %v3318 = vrot.slane %v3079, 7
        %v3319 = vsel %vm649, %v3305, %v3318
        %v3320 = vrot.slane %v3081, 7
        %v3321 = vsel %vm649, %v3308, %v3320
        %3334 = vmatprep.subr.mxu0 %v3084
        %3335 = vmatpush1.msra.mxu0 %v3083
        %3336 = vmatprep.subr.mxu0 %v3086
        %3337 = vmatpush1.msra.mxu0 %v3085
        %3338 = vmatprep.subr.mxu0 %v3088
        %3339 = vmatpush1.msra.mxu0 %v3087
        %3340 = vmatprep.subr.mxu0 %v3090
        %3341 = vmatpush1.msra.mxu0 %v3089
        %3342 = vmatprep.subr.mxu0 %v3092
        %3343 = vmatpush1.msra.mxu0 %v3091
        %3344 = vmatprep.subr.mxu0 %v3094
        %3345 = vmatpush1.msra.mxu0 %v3093
        %3346 = vmatprep.subr.mxu0 %v3096
        %3347 = vmatpush1.msra.mxu0 %v3095
        %3348 = vmatprep.subr.mxu0 %v3098
        %3349 = vmatpush1.msra.mxu0 %v3097
        %3350 = vmatprep.subr.mxu0 %v3100
        %3351 = vmatpush1.msra.mxu0 %v3099
        %3352 = vmatprep.subr.mxu0 %v3102
        %3353 = vmatpush1.msra.mxu0 %v3101
        %3354 = vmatprep.subr.mxu0 %v3104
        %3355 = vmatpush1.msra.mxu0 %v3103
        %3356 = vmatprep.subr.mxu0 %v3106
        %3357 = vmatpush1.msra.mxu0 %v3105
        %3358 = vmatprep.subr.mxu0 %v3108
        %3359 = vmatpush1.msra.mxu0 %v3107
        %3360 = vmatprep.subr.mxu0 %v3110
        %3361 = vmatpush1.msra.mxu0 %v3109
        %3362 = vmatprep.subr.mxu0 %v3112
        %3363 = vmatpush1.msra.mxu0 %v3111
        %3364 = vmatprep.subr.mxu0 %v3114
        %3365 = vmatpush1.msra.mxu0 %v3113
        %3366 = vmatprep.subr.mxu0 %v3116
        %3367 = vmatpush1.msra.mxu0 %v3115
        %3368 = vmatprep.subr.mxu0 %v3118
        %3369 = vmatpush1.msra.mxu0 %v3117
        %3370 = vmatprep.subr.mxu0 %v3120
        %3371 = vmatpush1.msra.mxu0 %v3119
        %3372 = vmatprep.subr.mxu0 %v3122
        %3373 = vmatpush1.msra.mxu0 %v3121
        %3374 = vmatprep.subr.mxu0 %v3124
        %3375 = vmatpush1.msra.mxu0 %v3123
        %3376 = vmatprep.subr.mxu0 %v3126
        %3377 = vmatpush1.msra.mxu0 %v3125
        %3378 = vmatprep.subr.mxu0 %v3128
        %3379 = vmatpush1.msra.mxu0 %v3127
        %3380 = vmatprep.subr.mxu0 %v3130
        %3381 = vmatpush1.msra.mxu0 %v3129
        %3382 = vmatprep.subr.mxu0 %v3132
        %3383 = vmatpush1.msra.mxu0 %v3131
        %3384 = vmatprep.subr.mxu0 %v3134
        %3385 = vmatpush1.msra.mxu0 %v3133
        %3386 = vmatprep.subr.mxu0 %v3136
        %3387 = vmatpush1.msra.mxu0 %v3135
        %3388 = vmatprep.subr.mxu0 %v3138
        %3389 = vmatpush1.msra.mxu0 %v3137
        %3390 = vmatprep.subr.mxu0 %v3140
        %3391 = vmatpush1.msra.mxu0 %v3139
        %3392 = vmatprep.subr.mxu0 %v3142
        %3393 = vmatpush1.msra.mxu0 %v3141
        %3394 = vmatprep.subr.mxu0 %v3144
        %3395 = vmatpush1.msra.mxu0 %v3143
        %3396 = vmatprep.subr.mxu0 %v3146
        %3397 = vmatpush1.msra.mxu0 %v3145
        %3398 = vmatprep.mubr.f32.mxu0 %v3297
        %3399 = vmatmul.mubr.f32.gmra.mrb[0].mxu0 %v3294
        %v3400 = vpop.f32.mrb[0].mxu0
        %v3401 = vadd.f32 %v3281, %v3400
        %v3402 = vpop.f32.mrb[0].mxu0
        %v3403 = vadd.f32 %v3285, %v3402
        %3404 = vmatprep.mubr.f32.mxu0 %v3313
        %3405 = vmatmul.mubr.f32.gmra.mrb[0].mxu0 %v3311
        %v3406 = vpop.f32.mrb[0].mxu0
        %v3407 = vadd.f32 %v3281, %v3406
        %v3408 = vpop.f32.mrb[0].mxu0
        %v3409 = vadd.f32 %v3285, %v3408
        %3410 = vdwg.mxu0
        %3411 = vmatprep.subr.mxu0 %v3148
        %3412 = vmatpush1.msra.mxu0 %v3147
        %3413 = vmatprep.subr.mxu0 %v3150
        %3414 = vmatpush1.msra.mxu0 %v3149
        %3415 = vmatprep.subr.mxu0 %v3152
        %3416 = vmatpush1.msra.mxu0 %v3151
        %3417 = vmatprep.subr.mxu0 %v3154
        %3418 = vmatpush1.msra.mxu0 %v3153
        %3419 = vmatprep.subr.mxu0 %v3156
        %3420 = vmatpush1.msra.mxu0 %v3155
        %3421 = vmatprep.subr.mxu0 %v3158
        %3422 = vmatpush1.msra.mxu0 %v3157
        %3423 = vmatprep.subr.mxu0 %v3160
        %3424 = vmatpush1.msra.mxu0 %v3159
        %3425 = vmatprep.subr.mxu0 %v3162
        %3426 = vmatpush1.msra.mxu0 %v3161
        %3427 = vmatprep.subr.mxu0 %v3164
        %3428 = vmatpush1.msra.mxu0 %v3163
        %3429 = vmatprep.subr.mxu0 %v3166
        %3430 = vmatpush1.msra.mxu0 %v3165
        %3431 = vmatprep.subr.mxu0 %v3168
        %3432 = vmatpush1.msra.mxu0 %v3167
        %3433 = vmatprep.subr.mxu0 %v3170
        %3434 = vmatpush1.msra.mxu0 %v3169
        %3435 = vmatprep.subr.mxu0 %v3172
        %3436 = vmatpush1.msra.mxu0 %v3171
        %3437 = vmatprep.subr.mxu0 %v3174
        %3438 = vmatpush1.msra.mxu0 %v3173
        %3439 = vmatprep.subr.mxu0 %v3176
        %3440 = vmatpush1.msra.mxu0 %v3175
        %3441 = vmatprep.subr.mxu0 %v3178
        %3442 = vmatpush1.msra.mxu0 %v3177
        %3443 = vmatprep.subr.mxu0 %v3180
        %3444 = vmatpush1.msra.mxu0 %v3179
        %3445 = vmatprep.subr.mxu0 %v3182
        %3446 = vmatpush1.msra.mxu0 %v3181
        %3447 = vmatprep.subr.mxu0 %v3184
        %3448 = vmatpush1.msra.mxu0 %v3183
        %3449 = vmatprep.subr.mxu0 %v3186
        %3450 = vmatpush1.msra.mxu0 %v3185
        %3451 = vmatprep.subr.mxu0 %v3188
        %3452 = vmatpush1.msra.mxu0 %v3187
        %3453 = vmatprep.subr.mxu0 %v3190
        %3454 = vmatpush1.msra.mxu0 %v3189
        %3455 = vmatprep.subr.mxu0 %v3192
        %3456 = vmatpush1.msra.mxu0 %v3191
        %3457 = vmatprep.subr.mxu0 %v3194
        %3458 = vmatpush1.msra.mxu0 %v3193
        %3459 = vmatprep.subr.mxu0 %v3196
        %3460 = vmatpush1.msra.mxu0 %v3195
        %3461 = vmatprep.subr.mxu0 %v3198
        %3462 = vmatpush1.msra.mxu0 %v3197
        %3463 = vmatprep.subr.mxu0 %v3200
        %3464 = vmatpush1.msra.mxu0 %v3199
        %3465 = vmatprep.subr.mxu0 %v3202
        %3466 = vmatpush1.msra.mxu0 %v3201
        %3467 = vmatprep.subr.mxu0 %v3204
        %3468 = vmatpush1.msra.mxu0 %v3203
        %3469 = vmatprep.subr.mxu0 %v3206
        %3470 = vmatpush1.msra.mxu0 %v3205
        %3471 = vmatprep.subr.mxu0 %v3208
        %3472 = vmatpush1.msra.mxu0 %v3207
        %3473 = vmatprep.subr.mxu0 %v3210
        %3474 = vmatpush1.msra.mxu0 %v3209
        %3475 = vmatprep.mubr.f32.mxu0 %v3303
        %3476 = vmatmul.mubr.f32.gmra.mrb[0].mxu0 %v3300
        %v3477 = vpop.f32.mrb[0].mxu0
        %v3478 = vadd.f32 %v3401, %v3477
        %v3479 = vpop.f32.mrb[0].mxu0
        %v3480 = vadd.f32 %v3403, %v3479
        %3481 = vmatprep.mubr.f32.mxu0 %v3317
        %3482 = vmatmul.mubr.f32.gmra.mrb[0].mxu0 %v3315
        %v3483 = vpop.f32.mrb[0].mxu0
        %v3484 = vadd.f32 %v3407, %v3483
        %v3485 = vpop.f32.mrb[0].mxu0
        %v3486 = vadd.f32 %v3409, %v3485
        %3487 = vdwg.mxu0
        %3488 = vmatprep.subr.mxu0 %v3212
        %3489 = vmatpush1.msra.mxu0 %v3211
        %3490 = vmatprep.subr.mxu0 %v3214
        %3491 = vmatpush1.msra.mxu0 %v3213
        %3492 = vmatprep.subr.mxu0 %v3216
        %3493 = vmatpush1.msra.mxu0 %v3215
        %3494 = vmatprep.subr.mxu0 %v3218
        %3495 = vmatpush1.msra.mxu0 %v3217
        %3496 = vmatprep.subr.mxu0 %v3220
        %3497 = vmatpush1.msra.mxu0 %v3219
        %3498 = vmatprep.subr.mxu0 %v3222
        %3499 = vmatpush1.msra.mxu0 %v3221
        %3500 = vmatprep.subr.mxu0 %v3224
        %3501 = vmatpush1.msra.mxu0 %v3223
        %3502 = vmatprep.subr.mxu0 %v3226
        %3503 = vmatpush1.msra.mxu0 %v3225
        %3504 = vmatprep.subr.mxu0 %v3228
        %3505 = vmatpush1.msra.mxu0 %v3227
        %3506 = vmatprep.subr.mxu0 %v3230
        %3507 = vmatpush1.msra.mxu0 %v3229
        %3508 = vmatprep.subr.mxu0 %v3232
        %3509 = vmatpush1.msra.mxu0 %v3231
        %3510 = vmatprep.subr.mxu0 %v3234
        %3511 = vmatpush1.msra.mxu0 %v3233
        %3512 = vmatprep.subr.mxu0 %v3236
        %3513 = vmatpush1.msra.mxu0 %v3235
        %3514 = vmatprep.subr.mxu0 %v3238
        %3515 = vmatpush1.msra.mxu0 %v3237
        %3516 = vmatprep.subr.mxu0 %v3240
        %3517 = vmatpush1.msra.mxu0 %v3239
        %3518 = vmatprep.subr.mxu0 %v3242
        %3519 = vmatpush1.msra.mxu0 %v3241
        %3520 = vmatprep.subr.mxu0 %v3244
        %3521 = vmatpush1.msra.mxu0 %v3243
        %3522 = vmatprep.subr.mxu0 %v3246
        %3523 = vmatpush1.msra.mxu0 %v3245
        %3524 = vmatprep.subr.mxu0 %v3248
        %3525 = vmatpush1.msra.mxu0 %v3247
        %3526 = vmatprep.subr.mxu0 %v3250
        %3527 = vmatpush1.msra.mxu0 %v3249
        %3528 = vmatprep.subr.mxu0 %v3252
        %3529 = vmatpush1.msra.mxu0 %v3251
        %3530 = vmatprep.subr.mxu0 %v3254
        %3531 = vmatpush1.msra.mxu0 %v3253
        %3532 = vmatprep.subr.mxu0 %v3256
        %3533 = vmatpush1.msra.mxu0 %v3255
        %3534 = vmatprep.subr.mxu0 %v3258
        %3535 = vmatpush1.msra.mxu0 %v3257
        %3536 = vmatprep.subr.mxu0 %v3260
        %3537 = vmatpush1.msra.mxu0 %v3259
        %3538 = vmatprep.subr.mxu0 %v3262
        %3539 = vmatpush1.msra.mxu0 %v3261
        %3540 = vmatprep.subr.mxu0 %v3264
        %3541 = vmatpush1.msra.mxu0 %v3263
        %3542 = vmatprep.subr.mxu0 %v3266
        %3543 = vmatpush1.msra.mxu0 %v3265
        %3544 = vmatprep.subr.mxu0 %v3268
        %3545 = vmatpush1.msra.mxu0 %v3267
        %3546 = vmatprep.subr.mxu0 %v3270
        %3547 = vmatpush1.msra.mxu0 %v3269
        %3548 = vmatprep.subr.mxu0 %v3272
        %3549 = vmatpush1.msra.mxu0 %v3271
        %3550 = vmatprep.subr.mxu0 %v3274
        %3551 = vmatpush1.msra.mxu0 %v3273
        %3552 = vmatprep.mubr.f32.mxu0 %v3309
        %3553 = vmatmul.mubr.f32.gmra.mrb[0].mxu0 %v3306
        %v3554 = vpop.f32.mrb[0].mxu0
        %v3555 = vadd.f32 %v3478, %v3554
        %v3556 = vpop.f32.mrb[0].mxu0
        %v3557 = vadd.f32 %v3480, %v3556
        %3558 = vmatprep.mubr.f32.mxu0 %v3321
        %3559 = vmatmul.mubr.f32.gmra.mrb[0].mxu0 %v3319
        %v3560 = vpop.f32.mrb[0].mxu0
        %v3561 = vadd.f32 %v3484, %v3560
        %v3562 = vpop.f32.mrb[0].mxu0
        %v3563 = vadd.f32 %v3486, %v3562
        %3564 = vdwg.mxu0
        %v3565 = vadd.f32 %v391, %v3555
        %v3566 = vadd.f32 %v392, %v3557
        %v3567 = vadd.f32 %v393, %v3561
        %v3568 = vadd.f32 %v394, %v3563
        %3569 = vst [vmem:[%s384] sm:$0xff] %v3565
        %3570 = vst [vmem:[%s384 + $0x8] sm:$0xff] %v3566
        %3571 = vst [vmem:[%s384 + $0x10] sm:$0xff] %v3567
        %3572 = vst [vmem:[%s384 + $0x18] sm:$0xff] %v3568
        %s3573 = sand.u32 %s187, 1
        %s3574 = scalar_lea.sflag [#allocation5], %s3573
        %s3575 = sand.u32 %s187, 1
        %s3576 = smul.addr %s3575, 32
        %s3577 = scalar_lea.vmem [#allocation15], %s3576
        // Predicated region
        $region77: #{tpu_custom_call.1} parent=47 // pred_check
          %p3578 = pneg %p197
        $region78: #{tpu_custom_call.1} parent=47 // pred_check_branch
          %3580 = sbr.rel (%p3578) target = $region80
        $region79: #{tpu_custom_call.1} parent=47 // pred_region
          %s3581 = smul.u32 2, %s27
          %s3583 = ssub.s32 512, 512
          %3584 = vsyncadd %s3574, %s3583
          %s3585 = smul.addr %s3581, 2
          %s3586 = smul.addr %s3585, 128
          %s3587 = scalar_lea.hbm %s7, %s3586
          %s3588 = sshll.u32 %s3577, 4
          %s3589 = int_to_ptr.vmem [resolvable:$true] %s3588
          %3594 = dma.vmem_to_hbm [thread:$0]  %s3589, 512, %s3587, %s3574, 256, 256, 16
        $region80: #{tpu_custom_call.1} parent=47 // pred_fallthru
          _
      $region48: #{tpu_custom_call.1} parent=5 // pred_fallthru
        _
      %p3595 = scmp.le.s32.totalorder 2, %s22
      // Predicated region
      $region81: #{tpu_custom_call.1} parent=5 // pred_check
        %p3596 = pneg %p3595
      $region82: #{tpu_custom_call.1} parent=5 // pred_check_branch
        %3598 = sbr.rel (%p3596) target = $region84
      $region83: #{tpu_custom_call.1} parent=5 // pred_region
        %s3599 = ssub.s32 %s22, 2
        // Predicated region
        $region85: #{tpu_custom_call.1} parent=83 // pred_check
          %p3600 = pneg %p203
        $region86: #{tpu_custom_call.1} parent=83 // pred_check_branch
          %3602 = sbr.rel (%p3600) target = $region88
        $region87: #{tpu_custom_call.1} parent=83 // pred_region
          %s3603 = sand.u32 %s188, 1
          %s3604 = scalar_lea.sflag [#allocation5], %s3603
          %s3605 = sand.u32 %s188, 1
          %s3606 = smul.addr %s3605, 32
          %s3607 = scalar_lea.vmem [#allocation15], %s3606
          %3608 = dma.done %s3604, 512
        $region88: #{tpu_custom_call.1} parent=83 // pred_fallthru
          _
      $region84: #{tpu_custom_call.1} parent=5 // pred_fallthru
        _
    $region6: #{tpu_custom_call.1} parent=1 // loop_footer
      %s26 = sadd.s32 1, %s22
    $region7: #{tpu_custom_call.1} parent=1 // loop_footer_branch
      %21 = sbr.rel target = $region3
    $region8: #{tpu_custom_call.1} parent=1 // loop_exit
      _
    %3609 = vsyncpa [#allocation4], 1
    %s3610 = scalar_lea.sflag [#allocation4], 1
    %3611 = vsyncpa %s3610, 1
    %3612 = vsyncpa [#allocation7], 1
    %3613 = vsyncpa [#allocation10], 1
    %3614 = vsyncpa [#allocation13], 1
    %3615 = vsyncpa [#allocation5], 1
    %s3616 = scalar_lea.sflag [#allocation5], 1
    %3617 = vsyncpa %s3616, 1

</llo_original>
